<compile_context>
chip_gen: v7x
topology: tpu7x:2x2x1
jax: 0.10.0
libtpu: 0.0.40
codegen_flags: <defaults>
</compile_context>

<pallas_src>
import jax
import jax.numpy as jnp
from jax import lax
from jax.experimental import pallas as pl
from jax.experimental.pallas import tpu as pltpu


def make_char_lstm_kernel(n_layers: int, hidden_size: int, seq_len: int,
                          batch: int, v_pad: int):
    L, H, T, B = n_layers, hidden_size, seq_len, batch

    def kernel(x_ref, h0_ref, c0_ref, wih0_ref, whh0_ref, wcat_ref, b_ref,
               wfc_ref, bfc_ref, out_ref, h_ref, c_ref, htop_ref):
        # ---- Prologue -------------------------------------------------------
        # Layer-0 input projection for ALL timesteps at once (rows = t*B + b),
        # with the layer-0 bias folded in: (T*B, H) @ (H, 4H) + (1, 4H).
        xproj0 = (jnp.dot(x_ref[...], wih0_ref[...],
                          preferred_element_type=jnp.float32)
                  + b_ref[0])

        # Hoist all weight / bias loads out of the recurrence.
        whh0 = whh0_ref[...]
        wcat = [wcat_ref[l - 1] for l in range(1, L)]
        bias = [b_ref[l] for l in range(1, L)]

        # Recurrent state carried as traced values; time loop is a static
        # unroll so the scheduler sees the whole dependence chain at once.
        h_st = [h0_ref[l] for l in range(L)]
        c_st = [c0_ref[l] for l in range(L)]

        def gate_math(gates, c_prev):
            # Full 4H-lane-wide transcendentals (one sigmoid pass, one tanh
            # pass on the EUP), then slice PyTorch-ordered i, f, g, o slabs.
            sg = jax.nn.sigmoid(gates)
            tg = jnp.tanh(gates)
            i_g = sg[:, 0 * H:1 * H]
            f_g = sg[:, 1 * H:2 * H]
            g_g = tg[:, 2 * H:3 * H]
            o_g = sg[:, 3 * H:4 * H]
            c_new = f_g * c_prev + i_g * g_g
            h_new = o_g * jnp.tanh(c_new)
            return h_new, c_new

        # ---- Recurrence (static unroll over T) ------------------------------
        for t in range(T):
            # Layer 0: input projection precomputed, only h @ W_hh remains.
            gates = (xproj0[t * B:(t + 1) * B]
                     + jnp.dot(h_st[0], whh0,
                               preferred_element_type=jnp.float32))
            h_st[0], c_st[0] = gate_math(gates, c_st[0])
            x_t = h_st[0]

            # Layers >= 1: one fused matmul [x_t, h_prev] @ [W_ih; W_hh].
            for l in range(1, L):
                cat = jnp.concatenate([x_t, h_st[l]], axis=-1)     # (B, 2H)
                gates = (jnp.dot(cat, wcat[l - 1],
                                 preferred_element_type=jnp.float32)
                         + bias[l - 1])
                h_st[l], c_st[l] = gate_math(gates, c_st[l])
                x_t = h_st[l]

            # Stash the top-layer output; the fc projection is hoisted out of
            # the recurrence into a single epilogue matmul.
            htop_ref[t * B:(t + 1) * B, :] = x_t

        # ---- Epilogue -------------------------------------------------------
        # One (T*B, H) @ (H, Vpad) matmul + one lane-dense (T*B, 128) store,
        # instead of T tiny matmuls and T partial stores.
        out_ref[...] = (jnp.dot(htop_ref[...], wfc_ref[...],
                                preferred_element_type=jnp.float32)
                        + bfc_ref[...])

        # Final hidden / cell state.
        for l in range(L):
            h_ref[l] = h_st[l]
            c_ref[l] = c_st[l]

    return kernel


def char_lstm_forward(x_tokens, hidden, params):
    """x_tokens: (B, T) int32; hidden: (h0, c0) each (L, B, H).
    Returns (logits (B*T, V), (h_n, c_n)) matching the PyTorch module."""
    emb, w_ih_t, w_hh_t, b_gates, w_fc_t, b_fc = params
    h0, c0 = hidden
    B, T = x_tokens.shape
    L, _, H = h0.shape
    V = w_fc_t.shape[1]
    V_pad = max(128, ((V + 127) // 128) * 128)

    # TODO(synk): L == 1 would need the fused-weight (layers >= 1) path removed.
    assert L >= 2, "kernel packs layers >= 1 into one fused [W_ih; W_hh] weight"

    # JAX glue: embedding gather (data-dependent) + layout plumbing.
    x_emb = emb[x_tokens]                                        # (B, T, H)
    x_flat = jnp.transpose(x_emb, (1, 0, 2)).reshape(T * B, H)   # rows = t*B + b

    w_ih0 = w_ih_t[0]                                            # (H, 4H)
    w_hh0 = w_hh_t[0]                                            # (H, 4H)
    w_cat = jnp.concatenate([w_ih_t[1:], w_hh_t[1:]], axis=1)    # (L-1, 2H, 4H)
    b_g = b_gates.reshape(L, 1, 4 * H)                           # (L, 1, 4H)
    w_fc_pad = jnp.zeros((H, V_pad), jnp.float32).at[:, :V].set(w_fc_t)
    b_fc_pad = jnp.zeros((1, V_pad), jnp.float32).at[0, :V].set(b_fc)

    vmem = pl.BlockSpec(memory_space=pltpu.MemorySpace.VMEM)
    logits_tb, h_n, c_n = pl.pallas_call(
        make_char_lstm_kernel(L, H, T, B, V_pad),
        out_shape=(
            jax.ShapeDtypeStruct((T * B, V_pad), jnp.float32),
            jax.ShapeDtypeStruct((L, B, H), jnp.float32),
            jax.ShapeDtypeStruct((L, B, H), jnp.float32),
        ),
        in_specs=[vmem] * 9,
        out_specs=(vmem, vmem, vmem),
        scratch_shapes=[pltpu.VMEM((T * B, H), jnp.float32)],
    )(x_flat, h0, c0, w_ih0, w_hh0, w_cat, b_g, w_fc_pad, b_fc_pad)

    # Match PyTorch: output.reshape(B*T, H) @ fc -> row index = b*T + t.
    # Kernel rows are t*B + b; the tiny (8 KB) reorder + pad-drop stays in XLA.
    logits = (logits_tb.reshape(T, B, V_pad)
              .transpose(1, 0, 2)
              .reshape(B * T, V_pad)[:, :V])
    return logits, (h_n, c_n)


def init_params(key, vocab_size, hidden_size, n_layers):
    H, V, L = hidden_size, vocab_size, n_layers
    k = 1.0 / jnp.sqrt(jnp.float32(H))
    keys = jax.random.split(key, 6)
    emb = jax.random.normal(keys[0], (V, H), jnp.float32)
    # LSTM weights stored pre-transposed: (L, H, 4H) so gates = x @ W^T + h @ W^T + b.
    w_ih_t = jax.random.uniform(keys[1], (L, H, 4 * H), jnp.float32, -k, k)
    w_hh_t = jax.random.uniform(keys[2], (L, H, 4 * H), jnp.float32, -k, k)
    b_gates = jax.random.uniform(keys[3], (L, 4 * H), jnp.float32, -k, k)  # b_ih + b_hh fused
    w_fc_t = jax.random.uniform(keys[4], (H, V), jnp.float32, -k, k)
    b_fc = jax.random.uniform(keys[5], (V,), jnp.float32, -k, k)
    return (emb, w_ih_t, w_hh_t, b_gates, w_fc_t, b_fc)


def reference_forward(x_tokens, hidden, params):
    """Pure-JAX reference mirroring the PyTorch semantics (numerical check)."""
    emb, w_ih_t, w_hh_t, b_gates, w_fc_t, b_fc = params
    h0, c0 = hidden
    B, T = x_tokens.shape
    L, _, H = h0.shape
    hp = lax.Precision.HIGHEST
    h = [h0[l] for l in range(L)]
    c = [c0[l] for l in range(L)]
    xs = emb[x_tokens]
    outs = []
    for t in range(T):
        x_t = xs[:, t, :]
        for l in range(L):
            gates = (jnp.dot(x_t, w_ih_t[l], precision=hp)
                     + jnp.dot(h[l], w_hh_t[l], precision=hp) + b_gates[l])
            i_g = jax.nn.sigmoid(gates[:, :H])
            f_g = jax.nn.sigmoid(gates[:, H:2 * H])
            g_g = jnp.tanh(gates[:, 2 * H:3 * H])
            o_g = jax.nn.sigmoid(gates[:, 3 * H:])
            c[l] = f_g * c[l] + i_g * g_g
            h[l] = o_g * jnp.tanh(c[l])
            x_t = h[l]
        outs.append(jnp.dot(x_t, w_fc_t, precision=hp) + b_fc)
    logits = jnp.stack(outs, axis=1).reshape(B * T, -1)
    return logits, (jnp.stack(h), jnp.stack(c))


if __name__ == "__main__":
    VOCAB, HIDDEN, LAYERS = 64, 32, 3
    B, T = 2, 8

    key = jax.random.PRNGKey(0)
    kp, kx, kh, kc = jax.random.split(key, 4)
    params = init_params(kp, VOCAB, HIDDEN, LAYERS)
    x_tokens = jax.random.randint(kx, (B, T), 0, VOCAB, dtype=jnp.int32)
    # init_hidden would be zeros; use small random state to exercise the state path.
    h0 = 0.1 * jax.random.normal(kh, (LAYERS, B, HIDDEN), jnp.float32)
    c0 = 0.1 * jax.random.normal(kc, (LAYERS, B, HIDDEN), jnp.float32)

    logits, (h_n, c_n) = jax.block_until_ready(
        char_lstm_forward(x_tokens, (h0, c0), params))

    ref_logits, (ref_h, ref_c) = reference_forward(x_tokens, (h0, c0), params)
    assert logits.shape == (B * T, VOCAB)
    assert h_n.shape == (LAYERS, B, HIDDEN) and c_n.shape == (LAYERS, B, HIDDEN)
    assert jnp.allclose(logits, ref_logits, atol=2e-3, rtol=2e-3)
    assert jnp.allclose(h_n, ref_h, atol=2e-3, rtol=2e-3)
    assert jnp.allclose(c_n, ref_c, atol=2e-3, rtol=2e-3)

    print("KERNEL_OK")
</pallas_src>

<mosaic_0001>
module attributes {stable_mosaic.version = 11 : i64} {
  func.func @kernel(%arg0: memref<16x32xf32, #tpu.memory_space<vmem>>, %arg1: memref<3x2x32xf32, #tpu.memory_space<vmem>>, %arg2: memref<3x2x32xf32, #tpu.memory_space<vmem>>, %arg3: memref<32x128xf32, #tpu.memory_space<vmem>>, %arg4: memref<32x128xf32, #tpu.memory_space<vmem>>, %arg5: memref<2x64x128xf32, #tpu.memory_space<vmem>>, %arg6: memref<3x1x128xf32, #tpu.memory_space<vmem>>, %arg7: memref<32x128xf32, #tpu.memory_space<vmem>>, %arg8: memref<1x128xf32, #tpu.memory_space<vmem>>, %arg9: memref<16x128xf32, #tpu.memory_space<vmem>>, %arg10: memref<3x2x32xf32, #tpu.memory_space<vmem>>, %arg11: memref<3x2x32xf32, #tpu.memory_space<vmem>>, %arg12: memref<16x32xf32, #tpu.memory_space<vmem>>) attributes {dimension_semantics = [], scalar_prefetch = 0 : i64, scratch_operands = 1 : i64, tpu.core_type = #tpu.core_type<tc>} {
    %c0 = arith.constant 0 : index
    %c0_0 = arith.constant 0 : index
    %0 = vector.load %arg0[%c0, %c0_0] : memref<16x32xf32, #tpu.memory_space<vmem>>, vector<16x32xf32>
    %c0_1 = arith.constant 0 : index
    %c0_2 = arith.constant 0 : index
    %1 = vector.load %arg3[%c0_1, %c0_2] : memref<32x128xf32, #tpu.memory_space<vmem>>, vector<32x128xf32>
    %cst = arith.constant dense<0.000000e+00> : vector<16x128xf32>
    %2 = tpu.matmul %0, %1, %cst {dimension_numbers = #tpu.dot_dimension_numbers<[1], [0], [0], [1], [0, 0, 1, 1], [], []>} : vector<16x32xf32>, vector<32x128xf32>, vector<16x128xf32> -> vector<16x128xf32>
    %c0_3 = arith.constant 0 : index
    %c0_4 = arith.constant 0 : index
    %c0_5 = arith.constant 0 : index
    %3 = vector.load %arg6[%c0_3, %c0_4, %c0_5] : memref<3x1x128xf32, #tpu.memory_space<vmem>>, vector<1x1x128xf32>
    %4 = vector.shape_cast %3 : vector<1x1x128xf32> to vector<1x128xf32>
    %5 = vector.broadcast %4 : vector<1x128xf32> to vector<16x128xf32>
    %6 = arith.addf %2, %5 : vector<16x128xf32>
    %c0_6 = arith.constant 0 : index
    %c0_7 = arith.constant 0 : index
    %7 = vector.load %arg4[%c0_6, %c0_7] : memref<32x128xf32, #tpu.memory_space<vmem>>, vector<32x128xf32>
    %c0_8 = arith.constant 0 : index
    %c0_9 = arith.constant 0 : index
    %c0_10 = arith.constant 0 : index
    %8 = vector.load %arg5[%c0_8, %c0_9, %c0_10] : memref<2x64x128xf32, #tpu.memory_space<vmem>>, vector<1x64x128xf32>
    %9 = vector.shape_cast %8 : vector<1x64x128xf32> to vector<64x128xf32>
    %c1 = arith.constant 1 : index
    %c0_11 = arith.constant 0 : index
    %c0_12 = arith.constant 0 : index
    %10 = vector.load %arg5[%c1, %c0_11, %c0_12] : memref<2x64x128xf32, #tpu.memory_space<vmem>>, vector<1x64x128xf32>
    %11 = vector.shape_cast %10 : vector<1x64x128xf32> to vector<64x128xf32>
    %c1_13 = arith.constant 1 : index
    %c0_14 = arith.constant 0 : index
    %c0_15 = arith.constant 0 : index
    %12 = vector.load %arg6[%c1_13, %c0_14, %c0_15] : memref<3x1x128xf32, #tpu.memory_space<vmem>>, vector<1x1x128xf32>
    %13 = vector.shape_cast %12 : vector<1x1x128xf32> to vector<1x128xf32>
    %c2 = arith.constant 2 : index
    %c0_16 = arith.constant 0 : index
    %c0_17 = arith.constant 0 : index
    %14 = vector.load %arg6[%c2, %c0_16, %c0_17] : memref<3x1x128xf32, #tpu.memory_space<vmem>>, vector<1x1x128xf32>
    %15 = vector.shape_cast %14 : vector<1x1x128xf32> to vector<1x128xf32>
    %c0_18 = arith.constant 0 : index
    %c0_19 = arith.constant 0 : index
    %c0_20 = arith.constant 0 : index
    %16 = vector.load %arg1[%c0_18, %c0_19, %c0_20] : memref<3x2x32xf32, #tpu.memory_space<vmem>>, vector<1x2x32xf32>
    %17 = vector.shape_cast %16 : vector<1x2x32xf32> to vector<2x32xf32>
    %c1_21 = arith.constant 1 : index
    %c0_22 = arith.constant 0 : index
    %c0_23 = arith.constant 0 : index
    %18 = vector.load %arg1[%c1_21, %c0_22, %c0_23] : memref<3x2x32xf32, #tpu.memory_space<vmem>>, vector<1x2x32xf32>
    %19 = vector.shape_cast %18 : vector<1x2x32xf32> to vector<2x32xf32>
    %c2_24 = arith.constant 2 : index
    %c0_25 = arith.constant 0 : index
    %c0_26 = arith.constant 0 : index
    %20 = vector.load %arg1[%c2_24, %c0_25, %c0_26] : memref<3x2x32xf32, #tpu.memory_space<vmem>>, vector<1x2x32xf32>
    %21 = vector.shape_cast %20 : vector<1x2x32xf32> to vector<2x32xf32>
    %c0_27 = arith.constant 0 : index
    %c0_28 = arith.constant 0 : index
    %c0_29 = arith.constant 0 : index
    %22 = vector.load %arg2[%c0_27, %c0_28, %c0_29] : memref<3x2x32xf32, #tpu.memory_space<vmem>>, vector<1x2x32xf32>
    %23 = vector.shape_cast %22 : vector<1x2x32xf32> to vector<2x32xf32>
    %c1_30 = arith.constant 1 : index
    %c0_31 = arith.constant 0 : index
    %c0_32 = arith.constant 0 : index
    %24 = vector.load %arg2[%c1_30, %c0_31, %c0_32] : memref<3x2x32xf32, #tpu.memory_space<vmem>>, vector<1x2x32xf32>
    %25 = vector.shape_cast %24 : vector<1x2x32xf32> to vector<2x32xf32>
    %c2_33 = arith.constant 2 : index
    %c0_34 = arith.constant 0 : index
    %c0_35 = arith.constant 0 : index
    %26 = vector.load %arg2[%c2_33, %c0_34, %c0_35] : memref<3x2x32xf32, #tpu.memory_space<vmem>>, vector<1x2x32xf32>
    %27 = vector.shape_cast %26 : vector<1x2x32xf32> to vector<2x32xf32>
    %28 = vector.extract_strided_slice %6 {offsets = [0, 0], sizes = [2, 128], strides = [1, 1]} : vector<16x128xf32> to vector<2x128xf32>
    %cst_36 = arith.constant dense<0.000000e+00> : vector<2x128xf32>
    %29 = tpu.matmul %17, %7, %cst_36 {dimension_numbers = #tpu.dot_dimension_numbers<[1], [0], [0], [1], [0, 0, 1, 1], [], []>} : vector<2x32xf32>, vector<32x128xf32>, vector<2x128xf32> -> vector<2x128xf32>
    %30 = arith.addf %28, %29 : vector<2x128xf32>
    %31 = arith.negf %30 : vector<2x128xf32>
    %32 = math.exp %31 : vector<2x128xf32>
    %cst_37 = arith.constant 1.000000e+00 : f32
    %33 = vector.broadcast %cst_37 : f32 to vector<2x128xf32>
    %34 = arith.addf %33, %32 : vector<2x128xf32>
    %35 = arith.divf %33, %34 : vector<2x128xf32>
    %36 = math.tanh %30 : vector<2x128xf32>
    %37 = vector.extract_strided_slice %35 {offsets = [0, 0], sizes = [2, 32], strides = [1, 1]} : vector<2x128xf32> to vector<2x32xf32>
    %38 = vector.extract_strided_slice %35 {offsets = [0, 32], sizes = [2, 32], strides = [1, 1]} : vector<2x128xf32> to vector<2x32xf32>
    %39 = vector.extract_strided_slice %36 {offsets = [0, 64], sizes = [2, 32], strides = [1, 1]} : vector<2x128xf32> to vector<2x32xf32>
    %40 = vector.extract_strided_slice %35 {offsets = [0, 96], sizes = [2, 32], strides = [1, 1]} : vector<2x128xf32> to vector<2x32xf32>
    %41 = arith.mulf %38, %23 : vector<2x32xf32>
    %42 = arith.mulf %37, %39 : vector<2x32xf32>
    %43 = arith.addf %41, %42 : vector<2x32xf32>
    %44 = math.tanh %43 : vector<2x32xf32>
    %45 = arith.mulf %40, %44 : vector<2x32xf32>
    %46 = tpu.concatenate %45, %19 in 1 : vector<2x32xf32>, vector<2x32xf32> -> vector<2x64xf32>
    %cst_38 = arith.constant dense<0.000000e+00> : vector<2x128xf32>
    %47 = tpu.matmul %46, %9, %cst_38 {dimension_numbers = #tpu.dot_dimension_numbers<[1], [0], [0], [1], [0, 0, 1, 1], [], []>} : vector<2x64xf32>, vector<64x128xf32>, vector<2x128xf32> -> vector<2x128xf32>
    %48 = vector.broadcast %13 : vector<1x128xf32> to vector<2x128xf32>
    %49 = arith.addf %47, %48 : vector<2x128xf32>
    %50 = arith.negf %49 : vector<2x128xf32>
    %51 = math.exp %50 : vector<2x128xf32>
    %cst_39 = arith.constant 1.000000e+00 : f32
    %52 = vector.broadcast %cst_39 : f32 to vector<2x128xf32>
    %53 = arith.addf %52, %51 : vector<2x128xf32>
    %54 = arith.divf %52, %53 : vector<2x128xf32>
    %55 = math.tanh %49 : vector<2x128xf32>
    %56 = vector.extract_strided_slice %54 {offsets = [0, 0], sizes = [2, 32], strides = [1, 1]} : vector<2x128xf32> to vector<2x32xf32>
    %57 = vector.extract_strided_slice %54 {offsets = [0, 32], sizes = [2, 32], strides = [1, 1]} : vector<2x128xf32> to vector<2x32xf32>
    %58 = vector.extract_strided_slice %55 {offsets = [0, 64], sizes = [2, 32], strides = [1, 1]} : vector<2x128xf32> to vector<2x32xf32>
    %59 = vector.extract_strided_slice %54 {offsets = [0, 96], sizes = [2, 32], strides = [1, 1]} : vector<2x128xf32> to vector<2x32xf32>
    %60 = arith.mulf %57, %25 : vector<2x32xf32>
    %61 = arith.mulf %56, %58 : vector<2x32xf32>
    %62 = arith.addf %60, %61 : vector<2x32xf32>
    %63 = math.tanh %62 : vector<2x32xf32>
    %64 = arith.mulf %59, %63 : vector<2x32xf32>
    %65 = tpu.concatenate %64, %21 in 1 : vector<2x32xf32>, vector<2x32xf32> -> vector<2x64xf32>
    %cst_40 = arith.constant dense<0.000000e+00> : vector<2x128xf32>
    %66 = tpu.matmul %65, %11, %cst_40 {dimension_numbers = #tpu.dot_dimension_numbers<[1], [0], [0], [1], [0, 0, 1, 1], [], []>} : vector<2x64xf32>, vector<64x128xf32>, vector<2x128xf32> -> vector<2x128xf32>
    %67 = vector.broadcast %15 : vector<1x128xf32> to vector<2x128xf32>
    %68 = arith.addf %66, %67 : vector<2x128xf32>
    %69 = arith.negf %68 : vector<2x128xf32>
    %70 = math.exp %69 : vector<2x128xf32>
    %cst_41 = arith.constant 1.000000e+00 : f32
    %71 = vector.broadcast %cst_41 : f32 to vector<2x128xf32>
    %72 = arith.addf %71, %70 : vector<2x128xf32>
    %73 = arith.divf %71, %72 : vector<2x128xf32>
    %74 = math.tanh %68 : vector<2x128xf32>
    %75 = vector.extract_strided_slice %73 {offsets = [0, 0], sizes = [2, 32], strides = [1, 1]} : vector<2x128xf32> to vector<2x32xf32>
    %76 = vector.extract_strided_slice %73 {offsets = [0, 32], sizes = [2, 32], strides = [1, 1]} : vector<2x128xf32> to vector<2x32xf32>
    %77 = vector.extract_strided_slice %74 {offsets = [0, 64], sizes = [2, 32], strides = [1, 1]} : vector<2x128xf32> to vector<2x32xf32>
    %78 = vector.extract_strided_slice %73 {offsets = [0, 96], sizes = [2, 32], strides = [1, 1]} : vector<2x128xf32> to vector<2x32xf32>
    %79 = arith.mulf %76, %27 : vector<2x32xf32>
    %80 = arith.mulf %75, %77 : vector<2x32xf32>
    %81 = arith.addf %79, %80 : vector<2x32xf32>
    %82 = math.tanh %81 : vector<2x32xf32>
    %83 = arith.mulf %78, %82 : vector<2x32xf32>
    %c0_42 = arith.constant 0 : index
    %c0_43 = arith.constant 0 : index
    %84 = vector.load %arg12[%c0_42, %c0_43] : memref<16x32xf32, #tpu.memory_space<vmem>>, vector<2x32xf32>
    tpu.vector_store %arg12[%c0_42, %c0_43], %83 {strides = array<i32>} : memref<16x32xf32, #tpu.memory_space<vmem>>, vector<2x32xf32>,
    %85 = vector.extract_strided_slice %6 {offsets = [2, 0], sizes = [2, 128], strides = [1, 1]} : vector<16x128xf32> to vector<2x128xf32>
    %cst_44 = arith.constant dense<0.000000e+00> : vector<2x128xf32>
    %86 = tpu.matmul %45, %7, %cst_44 {dimension_numbers = #tpu.dot_dimension_numbers<[1], [0], [0], [1], [0, 0, 1, 1], [], []>} : vector<2x32xf32>, vector<32x128xf32>, vector<2x128xf32> -> vector<2x128xf32>
    %87 = arith.addf %85, %86 : vector<2x128xf32>
    %88 = arith.negf %87 : vector<2x128xf32>
    %89 = math.exp %88 : vector<2x128xf32>
    %cst_45 = arith.constant 1.000000e+00 : f32
    %90 = vector.broadcast %cst_45 : f32 to vector<2x128xf32>
    %91 = arith.addf %90, %89 : vector<2x128xf32>
    %92 = arith.divf %90, %91 : vector<2x128xf32>
    %93 = math.tanh %87 : vector<2x128xf32>
    %94 = vector.extract_strided_slice %92 {offsets = [0, 0], sizes = [2, 32], strides = [1, 1]} : vector<2x128xf32> to vector<2x32xf32>
    %95 = vector.extract_strided_slice %92 {offsets = [0, 32], sizes = [2, 32], strides = [1, 1]} : vector<2x128xf32> to vector<2x32xf32>
    %96 = vector.extract_strided_slice %93 {offsets = [0, 64], sizes = [2, 32], strides = [1, 1]} : vector<2x128xf32> to vector<2x32xf32>
    %97 = vector.extract_strided_slice %92 {offsets = [0, 96], sizes = [2, 32], strides = [1, 1]} : vector<2x128xf32> to vector<2x32xf32>
    %98 = arith.mulf %95, %43 : vector<2x32xf32>
    %99 = arith.mulf %94, %96 : vector<2x32xf32>
    %100 = arith.addf %98, %99 : vector<2x32xf32>
    %101 = math.tanh %100 : vector<2x32xf32>
    %102 = arith.mulf %97, %101 : vector<2x32xf32>
    %103 = tpu.concatenate %102, %64 in 1 : vector<2x32xf32>, vector<2x32xf32> -> vector<2x64xf32>
    %cst_46 = arith.constant dense<0.000000e+00> : vector<2x128xf32>
    %104 = tpu.matmul %103, %9, %cst_46 {dimension_numbers = #tpu.dot_dimension_numbers<[1], [0], [0], [1], [0, 0, 1, 1], [], []>} : vector<2x64xf32>, vector<64x128xf32>, vector<2x128xf32> -> vector<2x128xf32>
    %105 = vector.broadcast %13 : vector<1x128xf32> to vector<2x128xf32>
    %106 = arith.addf %104, %105 : vector<2x128xf32>
    %107 = arith.negf %106 : vector<2x128xf32>
    %108 = math.exp %107 : vector<2x128xf32>
    %cst_47 = arith.constant 1.000000e+00 : f32
    %109 = vector.broadcast %cst_47 : f32 to vector<2x128xf32>
    %110 = arith.addf %109, %108 : vector<2x128xf32>
    %111 = arith.divf %109, %110 : vector<2x128xf32>
    %112 = math.tanh %106 : vector<2x128xf32>
    %113 = vector.extract_strided_slice %111 {offsets = [0, 0], sizes = [2, 32], strides = [1, 1]} : vector<2x128xf32> to vector<2x32xf32>
    %114 = vector.extract_strided_slice %111 {offsets = [0, 32], sizes = [2, 32], strides = [1, 1]} : vector<2x128xf32> to vector<2x32xf32>
    %115 = vector.extract_strided_slice %112 {offsets = [0, 64], sizes = [2, 32], strides = [1, 1]} : vector<2x128xf32> to vector<2x32xf32>
    %116 = vector.extract_strided_slice %111 {offsets = [0, 96], sizes = [2, 32], strides = [1, 1]} : vector<2x128xf32> to vector<2x32xf32>
    %117 = arith.mulf %114, %62 : vector<2x32xf32>
    %118 = arith.mulf %113, %115 : vector<2x32xf32>
    %119 = arith.addf %117, %118 : vector<2x32xf32>
    %120 = math.tanh %119 : vector<2x32xf32>
    %121 = arith.mulf %116, %120 : vector<2x32xf32>
    %122 = tpu.concatenate %121, %83 in 1 : vector<2x32xf32>, vector<2x32xf32> -> vector<2x64xf32>
    %cst_48 = arith.constant dense<0.000000e+00> : vector<2x128xf32>
    %123 = tpu.matmul %122, %11, %cst_48 {dimension_numbers = #tpu.dot_dimension_numbers<[1], [0], [0], [1], [0, 0, 1, 1], [], []>} : vector<2x64xf32>, vector<64x128xf32>, vector<2x128xf32> -> vector<2x128xf32>
    %124 = vector.broadcast %15 : vector<1x128xf32> to vector<2x128xf32>
    %125 = arith.addf %123, %124 : vector<2x128xf32>
    %126 = arith.negf %125 : vector<2x128xf32>
    %127 = math.exp %126 : vector<2x128xf32>
    %cst_49 = arith.constant 1.000000e+00 : f32
    %128 = vector.broadcast %cst_49 : f32 to vector<2x128xf32>
    %129 = arith.addf %128, %127 : vector<2x128xf32>
    %130 = arith.divf %128, %129 : vector<2x128xf32>
    %131 = math.tanh %125 : vector<2x128xf32>
    %132 = vector.extract_strided_slice %130 {offsets = [0, 0], sizes = [2, 32], strides = [1, 1]} : vector<2x128xf32> to vector<2x32xf32>
    %133 = vector.extract_strided_slice %130 {offsets = [0, 32], sizes = [2, 32], strides = [1, 1]} : vector<2x128xf32> to vector<2x32xf32>
    %134 = vector.extract_strided_slice %131 {offsets = [0, 64], sizes = [2, 32], strides = [1, 1]} : vector<2x128xf32> to vector<2x32xf32>
    %135 = vector.extract_strided_slice %130 {offsets = [0, 96], sizes = [2, 32], strides = [1, 1]} : vector<2x128xf32> to vector<2x32xf32>
    %136 = arith.mulf %133, %81 : vector<2x32xf32>
    %137 = arith.mulf %132, %134 : vector<2x32xf32>
    %138 = arith.addf %136, %137 : vector<2x32xf32>
    %139 = math.tanh %138 : vector<2x32xf32>
    %140 = arith.mulf %135, %139 : vector<2x32xf32>
    %c2_50 = arith.constant 2 : index
    %c0_51 = arith.constant 0 : index
    %141 = vector.load %arg12[%c2_50, %c0_51] : memref<16x32xf32, #tpu.memory_space<vmem>>, vector<2x32xf32>
    tpu.vector_store %arg12[%c2_50, %c0_51], %140 {strides = array<i32>} : memref<16x32xf32, #tpu.memory_space<vmem>>, vector<2x32xf32>,
    %142 = vector.extract_strided_slice %6 {offsets = [4, 0], sizes = [2, 128], strides = [1, 1]} : vector<16x128xf32> to vector<2x128xf32>
    %cst_52 = arith.constant dense<0.000000e+00> : vector<2x128xf32>
    %143 = tpu.matmul %102, %7, %cst_52 {dimension_numbers = #tpu.dot_dimension_numbers<[1], [0], [0], [1], [0, 0, 1, 1], [], []>} : vector<2x32xf32>, vector<32x128xf32>, vector<2x128xf32> -> vector<2x128xf32>
    %144 = arith.addf %142, %143 : vector<2x128xf32>
    %145 = arith.negf %144 : vector<2x128xf32>
    %146 = math.exp %145 : vector<2x128xf32>
    %cst_53 = arith.constant 1.000000e+00 : f32
    %147 = vector.broadcast %cst_53 : f32 to vector<2x128xf32>
    %148 = arith.addf %147, %146 : vector<2x128xf32>
    %149 = arith.divf %147, %148 : vector<2x128xf32>
    %150 = math.tanh %144 : vector<2x128xf32>
    %151 = vector.extract_strided_slice %149 {offsets = [0, 0], sizes = [2, 32], strides = [1, 1]} : vector<2x128xf32> to vector<2x32xf32>
    %152 = vector.extract_strided_slice %149 {offsets = [0, 32], sizes = [2, 32], strides = [1, 1]} : vector<2x128xf32> to vector<2x32xf32>
    %153 = vector.extract_strided_slice %150 {offsets = [0, 64], sizes = [2, 32], strides = [1, 1]} : vector<2x128xf32> to vector<2x32xf32>
    %154 = vector.extract_strided_slice %149 {offsets = [0, 96], sizes = [2, 32], strides = [1, 1]} : vector<2x128xf32> to vector<2x32xf32>
    %155 = arith.mulf %152, %100 : vector<2x32xf32>
    %156 = arith.mulf %151, %153 : vector<2x32xf32>
    %157 = arith.addf %155, %156 : vector<2x32xf32>
    %158 = math.tanh %157 : vector<2x32xf32>
    %159 = arith.mulf %154, %158 : vector<2x32xf32>
    %160 = tpu.concatenate %159, %121 in 1 : vector<2x32xf32>, vector<2x32xf32> -> vector<2x64xf32>
    %cst_54 = arith.constant dense<0.000000e+00> : vector<2x128xf32>
    %161 = tpu.matmul %160, %9, %cst_54 {dimension_numbers = #tpu.dot_dimension_numbers<[1], [0], [0], [1], [0, 0, 1, 1], [], []>} : vector<2x64xf32>, vector<64x128xf32>, vector<2x128xf32> -> vector<2x128xf32>
    %162 = vector.broadcast %13 : vector<1x128xf32> to vector<2x128xf32>
    %163 = arith.addf %161, %162 : vector<2x128xf32>
    %164 = arith.negf %163 : vector<2x128xf32>
    %165 = math.exp %164 : vector<2x128xf32>
    %cst_55 = arith.constant 1.000000e+00 : f32
    %166 = vector.broadcast %cst_55 : f32 to vector<2x128xf32>
    %167 = arith.addf %166, %165 : vector<2x128xf32>
    %168 = arith.divf %166, %167 : vector<2x128xf32>
    %169 = math.tanh %163 : vector<2x128xf32>
    %170 = vector.extract_strided_slice %168 {offsets = [0, 0], sizes = [2, 32], strides = [1, 1]} : vector<2x128xf32> to vector<2x32xf32>
    %171 = vector.extract_strided_slice %168 {offsets = [0, 32], sizes = [2, 32], strides = [1, 1]} : vector<2x128xf32> to vector<2x32xf32>
    %172 = vector.extract_strided_slice %169 {offsets = [0, 64], sizes = [2, 32], strides = [1, 1]} : vector<2x128xf32> to vector<2x32xf32>
    %173 = vector.extract_strided_slice %168 {offsets = [0, 96], sizes = [2, 32], strides = [1, 1]} : vector<2x128xf32> to vector<2x32xf32>
    %174 = arith.mulf %171, %119 : vector<2x32xf32>
    %175 = arith.mulf %170, %172 : vector<2x32xf32>
    %176 = arith.addf %174, %175 : vector<2x32xf32>
    %177 = math.tanh %176 : vector<2x32xf32>
    %178 = arith.mulf %173, %177 : vector<2x32xf32>
    %179 = tpu.concatenate %178, %140 in 1 : vector<2x32xf32>, vector<2x32xf32> -> vector<2x64xf32>
    %cst_56 = arith.constant dense<0.000000e+00> : vector<2x128xf32>
    %180 = tpu.matmul %179, %11, %cst_56 {dimension_numbers = #tpu.dot_dimension_numbers<[1], [0], [0], [1], [0, 0, 1, 1], [], []>} : vector<2x64xf32>, vector<64x128xf32>, vector<2x128xf32> -> vector<2x128xf32>
    %181 = vector.broadcast %15 : vector<1x128xf32> to vector<2x128xf32>
    %182 = arith.addf %180, %181 : vector<2x128xf32>
    %183 = arith.negf %182 : vector<2x128xf32>
    %184 = math.exp %183 : vector<2x128xf32>
    %cst_57 = arith.constant 1.000000e+00 : f32
    %185 = vector.broadcast %cst_57 : f32 to vector<2x128xf32>
    %186 = arith.addf %185, %184 : vector<2x128xf32>
    %187 = arith.divf %185, %186 : vector<2x128xf32>
    %188 = math.tanh %182 : vector<2x128xf32>
    %189 = vector.extract_strided_slice %187 {offsets = [0, 0], sizes = [2, 32], strides = [1, 1]} : vector<2x128xf32> to vector<2x32xf32>
    %190 = vector.extract_strided_slice %187 {offsets = [0, 32], sizes = [2, 32], strides = [1, 1]} : vector<2x128xf32> to vector<2x32xf32>
    %191 = vector.extract_strided_slice %188 {offsets = [0, 64], sizes = [2, 32], strides = [1, 1]} : vector<2x128xf32> to vector<2x32xf32>
    %192 = vector.extract_strided_slice %187 {offsets = [0, 96], sizes = [2, 32], strides = [1, 1]} : vector<2x128xf32> to vector<2x32xf32>
    %193 = arith.mulf %190, %138 : vector<2x32xf32>
    %194 = arith.mulf %189, %191 : vector<2x32xf32>
    %195 = arith.addf %193, %194 : vector<2x32xf32>
    %196 = math.tanh %195 : vector<2x32xf32>
    %197 = arith.mulf %192, %196 : vector<2x32xf32>
    %c4 = arith.constant 4 : index
    %c0_58 = arith.constant 0 : index
    %198 = vector.load %arg12[%c4, %c0_58] : memref<16x32xf32, #tpu.memory_space<vmem>>, vector<2x32xf32>
    tpu.vector_store %arg12[%c4, %c0_58], %197 {strides = array<i32>} : memref<16x32xf32, #tpu.memory_space<vmem>>, vector<2x32xf32>,
    %199 = vector.extract_strided_slice %6 {offsets = [6, 0], sizes = [2, 128], strides = [1, 1]} : vector<16x128xf32> to vector<2x128xf32>
    %cst_59 = arith.constant dense<0.000000e+00> : vector<2x128xf32>
    %200 = tpu.matmul %159, %7, %cst_59 {dimension_numbers = #tpu.dot_dimension_numbers<[1], [0], [0], [1], [0, 0, 1, 1], [], []>} : vector<2x32xf32>, vector<32x128xf32>, vector<2x128xf32> -> vector<2x128xf32>
    %201 = arith.addf %199, %200 : vector<2x128xf32>
    %202 = arith.negf %201 : vector<2x128xf32>
    %203 = math.exp %202 : vector<2x128xf32>
    %cst_60 = arith.constant 1.000000e+00 : f32
    %204 = vector.broadcast %cst_60 : f32 to vector<2x128xf32>
    %205 = arith.addf %204, %203 : vector<2x128xf32>
    %206 = arith.divf %204, %205 : vector<2x128xf32>
    %207 = math.tanh %201 : vector<2x128xf32>
    %208 = vector.extract_strided_slice %206 {offsets = [0, 0], sizes = [2, 32], strides = [1, 1]} : vector<2x128xf32> to vector<2x32xf32>
    %209 = vector.extract_strided_slice %206 {offsets = [0, 32], sizes = [2, 32], strides = [1, 1]} : vector<2x128xf32> to vector<2x32xf32>
    %210 = vector.extract_strided_slice %207 {offsets = [0, 64], sizes = [2, 32], strides = [1, 1]} : vector<2x128xf32> to vector<2x32xf32>
    %211 = vector.extract_strided_slice %206 {offsets = [0, 96], sizes = [2, 32], strides = [1, 1]} : vector<2x128xf32> to vector<2x32xf32>
    %212 = arith.mulf %209, %157 : vector<2x32xf32>
    %213 = arith.mulf %208, %210 : vector<2x32xf32>
    %214 = arith.addf %212, %213 : vector<2x32xf32>
    %215 = math.tanh %214 : vector<2x32xf32>
    %216 = arith.mulf %211, %215 : vector<2x32xf32>
    %217 = tpu.concatenate %216, %178 in 1 : vector<2x32xf32>, vector<2x32xf32> -> vector<2x64xf32>
    %cst_61 = arith.constant dense<0.000000e+00> : vector<2x128xf32>
    %218 = tpu.matmul %217, %9, %cst_61 {dimension_numbers = #tpu.dot_dimension_numbers<[1], [0], [0], [1], [0, 0, 1, 1], [], []>} : vector<2x64xf32>, vector<64x128xf32>, vector<2x128xf32> -> vector<2x128xf32>
    %219 = vector.broadcast %13 : vector<1x128xf32> to vector<2x128xf32>
    %220 = arith.addf %218, %219 : vector<2x128xf32>
    %221 = arith.negf %220 : vector<2x128xf32>
    %222 = math.exp %221 : vector<2x128xf32>
    %cst_62 = arith.constant 1.000000e+00 : f32
    %223 = vector.broadcast %cst_62 : f32 to vector<2x128xf32>
    %224 = arith.addf %223, %222 : vector<2x128xf32>
    %225 = arith.divf %223, %224 : vector<2x128xf32>
    %226 = math.tanh %220 : vector<2x128xf32>
    %227 = vector.extract_strided_slice %225 {offsets = [0, 0], sizes = [2, 32], strides = [1, 1]} : vector<2x128xf32> to vector<2x32xf32>
    %228 = vector.extract_strided_slice %225 {offsets = [0, 32], sizes = [2, 32], strides = [1, 1]} : vector<2x128xf32> to vector<2x32xf32>
    %229 = vector.extract_strided_slice %226 {offsets = [0, 64], sizes = [2, 32], strides = [1, 1]} : vector<2x128xf32> to vector<2x32xf32>
    %230 = vector.extract_strided_slice %225 {offsets = [0, 96], sizes = [2, 32], strides = [1, 1]} : vector<2x128xf32> to vector<2x32xf32>
    %231 = arith.mulf %228, %176 : vector<2x32xf32>
    %232 = arith.mulf %227, %229 : vector<2x32xf32>
    %233 = arith.addf %231, %232 : vector<2x32xf32>
    %234 = math.tanh %233 : vector<2x32xf32>
    %235 = arith.mulf %230, %234 : vector<2x32xf32>
    %236 = tpu.concatenate %235, %197 in 1 : vector<2x32xf32>, vector<2x32xf32> -> vector<2x64xf32>
    %cst_63 = arith.constant dense<0.000000e+00> : vector<2x128xf32>
    %237 = tpu.matmul %236, %11, %cst_63 {dimension_numbers = #tpu.dot_dimension_numbers<[1], [0], [0], [1], [0, 0, 1, 1], [], []>} : vector<2x64xf32>, vector<64x128xf32>, vector<2x128xf32> -> vector<2x128xf32>
    %238 = vector.broadcast %15 : vector<1x128xf32> to vector<2x128xf32>
    %239 = arith.addf %237, %238 : vector<2x128xf32>
    %240 = arith.negf %239 : vector<2x128xf32>
    %241 = math.exp %240 : vector<2x128xf32>
    %cst_64 = arith.constant 1.000000e+00 : f32
    %242 = vector.broadcast %cst_64 : f32 to vector<2x128xf32>
    %243 = arith.addf %242, %241 : vector<2x128xf32>
    %244 = arith.divf %242, %243 : vector<2x128xf32>
    %245 = math.tanh %239 : vector<2x128xf32>
    %246 = vector.extract_strided_slice %244 {offsets = [0, 0], sizes = [2, 32], strides = [1, 1]} : vector<2x128xf32> to vector<2x32xf32>
    %247 = vector.extract_strided_slice %244 {offsets = [0, 32], sizes = [2, 32], strides = [1, 1]} : vector<2x128xf32> to vector<2x32xf32>
    %248 = vector.extract_strided_slice %245 {offsets = [0, 64], sizes = [2, 32], strides = [1, 1]} : vector<2x128xf32> to vector<2x32xf32>
    %249 = vector.extract_strided_slice %244 {offsets = [0, 96], sizes = [2, 32], strides = [1, 1]} : vector<2x128xf32> to vector<2x32xf32>
    %250 = arith.mulf %247, %195 : vector<2x32xf32>
    %251 = arith.mulf %246, %248 : vector<2x32xf32>
    %252 = arith.addf %250, %251 : vector<2x32xf32>
    %253 = math.tanh %252 : vector<2x32xf32>
    %254 = arith.mulf %249, %253 : vector<2x32xf32>
    %c6 = arith.constant 6 : index
    %c0_65 = arith.constant 0 : index
    %255 = vector.load %arg12[%c6, %c0_65] : memref<16x32xf32, #tpu.memory_space<vmem>>, vector<2x32xf32>
    tpu.vector_store %arg12[%c6, %c0_65], %254 {strides = array<i32>} : memref<16x32xf32, #tpu.memory_space<vmem>>, vector<2x32xf32>,
    %256 = vector.extract_strided_slice %6 {offsets = [8, 0], sizes = [2, 128], strides = [1, 1]} : vector<16x128xf32> to vector<2x128xf32>
    %cst_66 = arith.constant dense<0.000000e+00> : vector<2x128xf32>
    %257 = tpu.matmul %216, %7, %cst_66 {dimension_numbers = #tpu.dot_dimension_numbers<[1], [0], [0], [1], [0, 0, 1, 1], [], []>} : vector<2x32xf32>, vector<32x128xf32>, vector<2x128xf32> -> vector<2x128xf32>
    %258 = arith.addf %256, %257 : vector<2x128xf32>
    %259 = arith.negf %258 : vector<2x128xf32>
    %260 = math.exp %259 : vector<2x128xf32>
    %cst_67 = arith.constant 1.000000e+00 : f32
    %261 = vector.broadcast %cst_67 : f32 to vector<2x128xf32>
    %262 = arith.addf %261, %260 : vector<2x128xf32>
    %263 = arith.divf %261, %262 : vector<2x128xf32>
    %264 = math.tanh %258 : vector<2x128xf32>
    %265 = vector.extract_strided_slice %263 {offsets = [0, 0], sizes = [2, 32], strides = [1, 1]} : vector<2x128xf32> to vector<2x32xf32>
    %266 = vector.extract_strided_slice %263 {offsets = [0, 32], sizes = [2, 32], strides = [1, 1]} : vector<2x128xf32> to vector<2x32xf32>
    %267 = vector.extract_strided_slice %264 {offsets = [0, 64], sizes = [2, 32], strides = [1, 1]} : vector<2x128xf32> to vector<2x32xf32>
    %268 = vector.extract_strided_slice %263 {offsets = [0, 96], sizes = [2, 32], strides = [1, 1]} : vector<2x128xf32> to vector<2x32xf32>
    %269 = arith.mulf %266, %214 : vector<2x32xf32>
    %270 = arith.mulf %265, %267 : vector<2x32xf32>
    %271 = arith.addf %269, %270 : vector<2x32xf32>
    %272 = math.tanh %271 : vector<2x32xf32>
    %273 = arith.mulf %268, %272 : vector<2x32xf32>
    %274 = tpu.concatenate %273, %235 in 1 : vector<2x32xf32>, vector<2x32xf32> -> vector<2x64xf32>
    %cst_68 = arith.constant dense<0.000000e+00> : vector<2x128xf32>
    %275 = tpu.matmul %274, %9, %cst_68 {dimension_numbers = #tpu.dot_dimension_numbers<[1], [0], [0], [1], [0, 0, 1, 1], [], []>} : vector<2x64xf32>, vector<64x128xf32>, vector<2x128xf32> -> vector<2x128xf32>
    %276 = vector.broadcast %13 : vector<1x128xf32> to vector<2x128xf32>
    %277 = arith.addf %275, %276 : vector<2x128xf32>
    %278 = arith.negf %277 : vector<2x128xf32>
    %279 = math.exp %278 : vector<2x128xf32>
    %cst_69 = arith.constant 1.000000e+00 : f32
    %280 = vector.broadcast %cst_69 : f32 to vector<2x128xf32>
    %281 = arith.addf %280, %279 : vector<2x128xf32>
    %282 = arith.divf %280, %281 : vector<2x128xf32>
    %283 = math.tanh %277 : vector<2x128xf32>
    %284 = vector.extract_strided_slice %282 {offsets = [0, 0], sizes = [2, 32], strides = [1, 1]} : vector<2x128xf32> to vector<2x32xf32>
    %285 = vector.extract_strided_slice %282 {offsets = [0, 32], sizes = [2, 32], strides = [1, 1]} : vector<2x128xf32> to vector<2x32xf32>
    %286 = vector.extract_strided_slice %283 {offsets = [0, 64], sizes = [2, 32], strides = [1, 1]} : vector<2x128xf32> to vector<2x32xf32>
    %287 = vector.extract_strided_slice %282 {offsets = [0, 96], sizes = [2, 32], strides = [1, 1]} : vector<2x128xf32> to vector<2x32xf32>
    %288 = arith.mulf %285, %233 : vector<2x32xf32>
    %289 = arith.mulf %284, %286 : vector<2x32xf32>
    %290 = arith.addf %288, %289 : vector<2x32xf32>
    %291 = math.tanh %290 : vector<2x32xf32>
    %292 = arith.mulf %287, %291 : vector<2x32xf32>
    %293 = tpu.concatenate %292, %254 in 1 : vector<2x32xf32>, vector<2x32xf32> -> vector<2x64xf32>
    %cst_70 = arith.constant dense<0.000000e+00> : vector<2x128xf32>
    %294 = tpu.matmul %293, %11, %cst_70 {dimension_numbers = #tpu.dot_dimension_numbers<[1], [0], [0], [1], [0, 0, 1, 1], [], []>} : vector<2x64xf32>, vector<64x128xf32>, vector<2x128xf32> -> vector<2x128xf32>
    %295 = vector.broadcast %15 : vector<1x128xf32> to vector<2x128xf32>
    %296 = arith.addf %294, %295 : vector<2x128xf32>
    %297 = arith.negf %296 : vector<2x128xf32>
    %298 = math.exp %297 : vector<2x128xf32>
    %cst_71 = arith.constant 1.000000e+00 : f32
    %299 = vector.broadcast %cst_71 : f32 to vector<2x128xf32>
    %300 = arith.addf %299, %298 : vector<2x128xf32>
    %301 = arith.divf %299, %300 : vector<2x128xf32>
    %302 = math.tanh %296 : vector<2x128xf32>
    %303 = vector.extract_strided_slice %301 {offsets = [0, 0], sizes = [2, 32], strides = [1, 1]} : vector<2x128xf32> to vector<2x32xf32>
    %304 = vector.extract_strided_slice %301 {offsets = [0, 32], sizes = [2, 32], strides = [1, 1]} : vector<2x128xf32> to vector<2x32xf32>
    %305 = vector.extract_strided_slice %302 {offsets = [0, 64], sizes = [2, 32], strides = [1, 1]} : vector<2x128xf32> to vector<2x32xf32>
    %306 = vector.extract_strided_slice %301 {offsets = [0, 96], sizes = [2, 32], strides = [1, 1]} : vector<2x128xf32> to vector<2x32xf32>
    %307 = arith.mulf %304, %252 : vector<2x32xf32>
    %308 = arith.mulf %303, %305 : vector<2x32xf32>
    %309 = arith.addf %307, %308 : vector<2x32xf32>
    %310 = math.tanh %309 : vector<2x32xf32>
    %311 = arith.mulf %306, %310 : vector<2x32xf32>
    %c8 = arith.constant 8 : index
    %c0_72 = arith.constant 0 : index
    %312 = vector.load %arg12[%c8, %c0_72] : memref<16x32xf32, #tpu.memory_space<vmem>>, vector<2x32xf32>
    tpu.vector_store %arg12[%c8, %c0_72], %311 {strides = array<i32>} : memref<16x32xf32, #tpu.memory_space<vmem>>, vector<2x32xf32>,
    %313 = vector.extract_strided_slice %6 {offsets = [10, 0], sizes = [2, 128], strides = [1, 1]} : vector<16x128xf32> to vector<2x128xf32>
    %cst_73 = arith.constant dense<0.000000e+00> : vector<2x128xf32>
    %314 = tpu.matmul %273, %7, %cst_73 {dimension_numbers = #tpu.dot_dimension_numbers<[1], [0], [0], [1], [0, 0, 1, 1], [], []>} : vector<2x32xf32>, vector<32x128xf32>, vector<2x128xf32> -> vector<2x128xf32>
    %315 = arith.addf %313, %314 : vector<2x128xf32>
    %316 = arith.negf %315 : vector<2x128xf32>
    %317 = math.exp %316 : vector<2x128xf32>
    %cst_74 = arith.constant 1.000000e+00 : f32
    %318 = vector.broadcast %cst_74 : f32 to vector<2x128xf32>
    %319 = arith.addf %318, %317 : vector<2x128xf32>
    %320 = arith.divf %318, %319 : vector<2x128xf32>
    %321 = math.tanh %315 : vector<2x128xf32>
    %322 = vector.extract_strided_slice %320 {offsets = [0, 0], sizes = [2, 32], strides = [1, 1]} : vector<2x128xf32> to vector<2x32xf32>
    %323 = vector.extract_strided_slice %320 {offsets = [0, 32], sizes = [2, 32], strides = [1, 1]} : vector<2x128xf32> to vector<2x32xf32>
    %324 = vector.extract_strided_slice %321 {offsets = [0, 64], sizes = [2, 32], strides = [1, 1]} : vector<2x128xf32> to vector<2x32xf32>
    %325 = vector.extract_strided_slice %320 {offsets = [0, 96], sizes = [2, 32], strides = [1, 1]} : vector<2x128xf32> to vector<2x32xf32>
    %326 = arith.mulf %323, %271 : vector<2x32xf32>
    %327 = arith.mulf %322, %324 : vector<2x32xf32>
    %328 = arith.addf %326, %327 : vector<2x32xf32>
    %329 = math.tanh %328 : vector<2x32xf32>
    %330 = arith.mulf %325, %329 : vector<2x32xf32>
    %331 = tpu.concatenate %330, %292 in 1 : vector<2x32xf32>, vector<2x32xf32> -> vector<2x64xf32>
    %cst_75 = arith.constant dense<0.000000e+00> : vector<2x128xf32>
    %332 = tpu.matmul %331, %9, %cst_75 {dimension_numbers = #tpu.dot_dimension_numbers<[1], [0], [0], [1], [0, 0, 1, 1], [], []>} : vector<2x64xf32>, vector<64x128xf32>, vector<2x128xf32> -> vector<2x128xf32>
    %333 = vector.broadcast %13 : vector<1x128xf32> to vector<2x128xf32>
    %334 = arith.addf %332, %333 : vector<2x128xf32>
    %335 = arith.negf %334 : vector<2x128xf32>
    %336 = math.exp %335 : vector<2x128xf32>
    %cst_76 = arith.constant 1.000000e+00 : f32
    %337 = vector.broadcast %cst_76 : f32 to vector<2x128xf32>
    %338 = arith.addf %337, %336 : vector<2x128xf32>
    %339 = arith.divf %337, %338 : vector<2x128xf32>
    %340 = math.tanh %334 : vector<2x128xf32>
    %341 = vector.extract_strided_slice %339 {offsets = [0, 0], sizes = [2, 32], strides = [1, 1]} : vector<2x128xf32> to vector<2x32xf32>
    %342 = vector.extract_strided_slice %339 {offsets = [0, 32], sizes = [2, 32], strides = [1, 1]} : vector<2x128xf32> to vector<2x32xf32>
    %343 = vector.extract_strided_slice %340 {offsets = [0, 64], sizes = [2, 32], strides = [1, 1]} : vector<2x128xf32> to vector<2x32xf32>
    %344 = vector.extract_strided_slice %339 {offsets = [0, 96], sizes = [2, 32], strides = [1, 1]} : vector<2x128xf32> to vector<2x32xf32>
    %345 = arith.mulf %342, %290 : vector<2x32xf32>
    %346 = arith.mulf %341, %343 : vector<2x32xf32>
    %347 = arith.addf %345, %346 : vector<2x32xf32>
    %348 = math.tanh %347 : vector<2x32xf32>
    %349 = arith.mulf %344, %348 : vector<2x32xf32>
    %350 = tpu.concatenate %349, %311 in 1 : vector<2x32xf32>, vector<2x32xf32> -> vector<2x64xf32>
    %cst_77 = arith.constant dense<0.000000e+00> : vector<2x128xf32>
    %351 = tpu.matmul %350, %11, %cst_77 {dimension_numbers = #tpu.dot_dimension_numbers<[1], [0], [0], [1], [0, 0, 1, 1], [], []>} : vector<2x64xf32>, vector<64x128xf32>, vector<2x128xf32> -> vector<2x128xf32>
    %352 = vector.broadcast %15 : vector<1x128xf32> to vector<2x128xf32>
    %353 = arith.addf %351, %352 : vector<2x128xf32>
    %354 = arith.negf %353 : vector<2x128xf32>
    %355 = math.exp %354 : vector<2x128xf32>
    %cst_78 = arith.constant 1.000000e+00 : f32
    %356 = vector.broadcast %cst_78 : f32 to vector<2x128xf32>
    %357 = arith.addf %356, %355 : vector<2x128xf32>
    %358 = arith.divf %356, %357 : vector<2x128xf32>
    %359 = math.tanh %353 : vector<2x128xf32>
    %360 = vector.extract_strided_slice %358 {offsets = [0, 0], sizes = [2, 32], strides = [1, 1]} : vector<2x128xf32> to vector<2x32xf32>
    %361 = vector.extract_strided_slice %358 {offsets = [0, 32], sizes = [2, 32], strides = [1, 1]} : vector<2x128xf32> to vector<2x32xf32>
    %362 = vector.extract_strided_slice %359 {offsets = [0, 64], sizes = [2, 32], strides = [1, 1]} : vector<2x128xf32> to vector<2x32xf32>
    %363 = vector.extract_strided_slice %358 {offsets = [0, 96], sizes = [2, 32], strides = [1, 1]} : vector<2x128xf32> to vector<2x32xf32>
    %364 = arith.mulf %361, %309 : vector<2x32xf32>
    %365 = arith.mulf %360, %362 : vector<2x32xf32>
    %366 = arith.addf %364, %365 : vector<2x32xf32>
    %367 = math.tanh %366 : vector<2x32xf32>
    %368 = arith.mulf %363, %367 : vector<2x32xf32>
    %c10 = arith.constant 10 : index
    %c0_79 = arith.constant 0 : index
    %369 = vector.load %arg12[%c10, %c0_79] : memref<16x32xf32, #tpu.memory_space<vmem>>, vector<2x32xf32>
    tpu.vector_store %arg12[%c10, %c0_79], %368 {strides = array<i32>} : memref<16x32xf32, #tpu.memory_space<vmem>>, vector<2x32xf32>,
    %370 = vector.extract_strided_slice %6 {offsets = [12, 0], sizes = [2, 128], strides = [1, 1]} : vector<16x128xf32> to vector<2x128xf32>
    %cst_80 = arith.constant dense<0.000000e+00> : vector<2x128xf32>
    %371 = tpu.matmul %330, %7, %cst_80 {dimension_numbers = #tpu.dot_dimension_numbers<[1], [0], [0], [1], [0, 0, 1, 1], [], []>} : vector<2x32xf32>, vector<32x128xf32>, vector<2x128xf32> -> vector<2x128xf32>
    %372 = arith.addf %370, %371 : vector<2x128xf32>
    %373 = arith.negf %372 : vector<2x128xf32>
    %374 = math.exp %373 : vector<2x128xf32>
    %cst_81 = arith.constant 1.000000e+00 : f32
    %375 = vector.broadcast %cst_81 : f32 to vector<2x128xf32>
    %376 = arith.addf %375, %374 : vector<2x128xf32>
    %377 = arith.divf %375, %376 : vector<2x128xf32>
    %378 = math.tanh %372 : vector<2x128xf32>
    %379 = vector.extract_strided_slice %377 {offsets = [0, 0], sizes = [2, 32], strides = [1, 1]} : vector<2x128xf32> to vector<2x32xf32>
    %380 = vector.extract_strided_slice %377 {offsets = [0, 32], sizes = [2, 32], strides = [1, 1]} : vector<2x128xf32> to vector<2x32xf32>
    %381 = vector.extract_strided_slice %378 {offsets = [0, 64], sizes = [2, 32], strides = [1, 1]} : vector<2x128xf32> to vector<2x32xf32>
    %382 = vector.extract_strided_slice %377 {offsets = [0, 96], sizes = [2, 32], strides = [1, 1]} : vector<2x128xf32> to vector<2x32xf32>
    %383 = arith.mulf %380, %328 : vector<2x32xf32>
    %384 = arith.mulf %379, %381 : vector<2x32xf32>
    %385 = arith.addf %383, %384 : vector<2x32xf32>
    %386 = math.tanh %385 : vector<2x32xf32>
    %387 = arith.mulf %382, %386 : vector<2x32xf32>
    %388 = tpu.concatenate %387, %349 in 1 : vector<2x32xf32>, vector<2x32xf32> -> vector<2x64xf32>
    %cst_82 = arith.constant dense<0.000000e+00> : vector<2x128xf32>
    %389 = tpu.matmul %388, %9, %cst_82 {dimension_numbers = #tpu.dot_dimension_numbers<[1], [0], [0], [1], [0, 0, 1, 1], [], []>} : vector<2x64xf32>, vector<64x128xf32>, vector<2x128xf32> -> vector<2x128xf32>
    %390 = vector.broadcast %13 : vector<1x128xf32> to vector<2x128xf32>
    %391 = arith.addf %389, %390 : vector<2x128xf32>
    %392 = arith.negf %391 : vector<2x128xf32>
    %393 = math.exp %392 : vector<2x128xf32>
    %cst_83 = arith.constant 1.000000e+00 : f32
    %394 = vector.broadcast %cst_83 : f32 to vector<2x128xf32>
    %395 = arith.addf %394, %393 : vector<2x128xf32>
    %396 = arith.divf %394, %395 : vector<2x128xf32>
    %397 = math.tanh %391 : vector<2x128xf32>
    %398 = vector.extract_strided_slice %396 {offsets = [0, 0], sizes = [2, 32], strides = [1, 1]} : vector<2x128xf32> to vector<2x32xf32>
    %399 = vector.extract_strided_slice %396 {offsets = [0, 32], sizes = [2, 32], strides = [1, 1]} : vector<2x128xf32> to vector<2x32xf32>
    %400 = vector.extract_strided_slice %397 {offsets = [0, 64], sizes = [2, 32], strides = [1, 1]} : vector<2x128xf32> to vector<2x32xf32>
    %401 = vector.extract_strided_slice %396 {offsets = [0, 96], sizes = [2, 32], strides = [1, 1]} : vector<2x128xf32> to vector<2x32xf32>
    %402 = arith.mulf %399, %347 : vector<2x32xf32>
    %403 = arith.mulf %398, %400 : vector<2x32xf32>
    %404 = arith.addf %402, %403 : vector<2x32xf32>
    %405 = math.tanh %404 : vector<2x32xf32>
    %406 = arith.mulf %401, %405 : vector<2x32xf32>
    %407 = tpu.concatenate %406, %368 in 1 : vector<2x32xf32>, vector<2x32xf32> -> vector<2x64xf32>
    %cst_84 = arith.constant dense<0.000000e+00> : vector<2x128xf32>
    %408 = tpu.matmul %407, %11, %cst_84 {dimension_numbers = #tpu.dot_dimension_numbers<[1], [0], [0], [1], [0, 0, 1, 1], [], []>} : vector<2x64xf32>, vector<64x128xf32>, vector<2x128xf32> -> vector<2x128xf32>
    %409 = vector.broadcast %15 : vector<1x128xf32> to vector<2x128xf32>
    %410 = arith.addf %408, %409 : vector<2x128xf32>
    %411 = arith.negf %410 : vector<2x128xf32>
    %412 = math.exp %411 : vector<2x128xf32>
    %cst_85 = arith.constant 1.000000e+00 : f32
    %413 = vector.broadcast %cst_85 : f32 to vector<2x128xf32>
    %414 = arith.addf %413, %412 : vector<2x128xf32>
    %415 = arith.divf %413, %414 : vector<2x128xf32>
    %416 = math.tanh %410 : vector<2x128xf32>
    %417 = vector.extract_strided_slice %415 {offsets = [0, 0], sizes = [2, 32], strides = [1, 1]} : vector<2x128xf32> to vector<2x32xf32>
    %418 = vector.extract_strided_slice %415 {offsets = [0, 32], sizes = [2, 32], strides = [1, 1]} : vector<2x128xf32> to vector<2x32xf32>
    %419 = vector.extract_strided_slice %416 {offsets = [0, 64], sizes = [2, 32], strides = [1, 1]} : vector<2x128xf32> to vector<2x32xf32>
    %420 = vector.extract_strided_slice %415 {offsets = [0, 96], sizes = [2, 32], strides = [1, 1]} : vector<2x128xf32> to vector<2x32xf32>
    %421 = arith.mulf %418, %366 : vector<2x32xf32>
    %422 = arith.mulf %417, %419 : vector<2x32xf32>
    %423 = arith.addf %421, %422 : vector<2x32xf32>
    %424 = math.tanh %423 : vector<2x32xf32>
    %425 = arith.mulf %420, %424 : vector<2x32xf32>
    %c12 = arith.constant 12 : index
    %c0_86 = arith.constant 0 : index
    %426 = vector.load %arg12[%c12, %c0_86] : memref<16x32xf32, #tpu.memory_space<vmem>>, vector<2x32xf32>
    tpu.vector_store %arg12[%c12, %c0_86], %425 {strides = array<i32>} : memref<16x32xf32, #tpu.memory_space<vmem>>, vector<2x32xf32>,
    %427 = vector.extract_strided_slice %6 {offsets = [14, 0], sizes = [2, 128], strides = [1, 1]} : vector<16x128xf32> to vector<2x128xf32>
    %cst_87 = arith.constant dense<0.000000e+00> : vector<2x128xf32>
    %428 = tpu.matmul %387, %7, %cst_87 {dimension_numbers = #tpu.dot_dimension_numbers<[1], [0], [0], [1], [0, 0, 1, 1], [], []>} : vector<2x32xf32>, vector<32x128xf32>, vector<2x128xf32> -> vector<2x128xf32>
    %429 = arith.addf %427, %428 : vector<2x128xf32>
    %430 = arith.negf %429 : vector<2x128xf32>
    %431 = math.exp %430 : vector<2x128xf32>
    %cst_88 = arith.constant 1.000000e+00 : f32
    %432 = vector.broadcast %cst_88 : f32 to vector<2x128xf32>
    %433 = arith.addf %432, %431 : vector<2x128xf32>
    %434 = arith.divf %432, %433 : vector<2x128xf32>
    %435 = math.tanh %429 : vector<2x128xf32>
    %436 = vector.extract_strided_slice %434 {offsets = [0, 0], sizes = [2, 32], strides = [1, 1]} : vector<2x128xf32> to vector<2x32xf32>
    %437 = vector.extract_strided_slice %434 {offsets = [0, 32], sizes = [2, 32], strides = [1, 1]} : vector<2x128xf32> to vector<2x32xf32>
    %438 = vector.extract_strided_slice %435 {offsets = [0, 64], sizes = [2, 32], strides = [1, 1]} : vector<2x128xf32> to vector<2x32xf32>
    %439 = vector.extract_strided_slice %434 {offsets = [0, 96], sizes = [2, 32], strides = [1, 1]} : vector<2x128xf32> to vector<2x32xf32>
    %440 = arith.mulf %437, %385 : vector<2x32xf32>
    %441 = arith.mulf %436, %438 : vector<2x32xf32>
    %442 = arith.addf %440, %441 : vector<2x32xf32>
    %443 = math.tanh %442 : vector<2x32xf32>
    %444 = arith.mulf %439, %443 : vector<2x32xf32>
    %445 = tpu.concatenate %444, %406 in 1 : vector<2x32xf32>, vector<2x32xf32> -> vector<2x64xf32>
    %cst_89 = arith.constant dense<0.000000e+00> : vector<2x128xf32>
    %446 = tpu.matmul %445, %9, %cst_89 {dimension_numbers = #tpu.dot_dimension_numbers<[1], [0], [0], [1], [0, 0, 1, 1], [], []>} : vector<2x64xf32>, vector<64x128xf32>, vector<2x128xf32> -> vector<2x128xf32>
    %447 = vector.broadcast %13 : vector<1x128xf32> to vector<2x128xf32>
    %448 = arith.addf %446, %447 : vector<2x128xf32>
    %449 = arith.negf %448 : vector<2x128xf32>
    %450 = math.exp %449 : vector<2x128xf32>
    %cst_90 = arith.constant 1.000000e+00 : f32
    %451 = vector.broadcast %cst_90 : f32 to vector<2x128xf32>
    %452 = arith.addf %451, %450 : vector<2x128xf32>
    %453 = arith.divf %451, %452 : vector<2x128xf32>
    %454 = math.tanh %448 : vector<2x128xf32>
    %455 = vector.extract_strided_slice %453 {offsets = [0, 0], sizes = [2, 32], strides = [1, 1]} : vector<2x128xf32> to vector<2x32xf32>
    %456 = vector.extract_strided_slice %453 {offsets = [0, 32], sizes = [2, 32], strides = [1, 1]} : vector<2x128xf32> to vector<2x32xf32>
    %457 = vector.extract_strided_slice %454 {offsets = [0, 64], sizes = [2, 32], strides = [1, 1]} : vector<2x128xf32> to vector<2x32xf32>
    %458 = vector.extract_strided_slice %453 {offsets = [0, 96], sizes = [2, 32], strides = [1, 1]} : vector<2x128xf32> to vector<2x32xf32>
    %459 = arith.mulf %456, %404 : vector<2x32xf32>
    %460 = arith.mulf %455, %457 : vector<2x32xf32>
    %461 = arith.addf %459, %460 : vector<2x32xf32>
    %462 = math.tanh %461 : vector<2x32xf32>
    %463 = arith.mulf %458, %462 : vector<2x32xf32>
    %464 = tpu.concatenate %463, %425 in 1 : vector<2x32xf32>, vector<2x32xf32> -> vector<2x64xf32>
    %cst_91 = arith.constant dense<0.000000e+00> : vector<2x128xf32>
    %465 = tpu.matmul %464, %11, %cst_91 {dimension_numbers = #tpu.dot_dimension_numbers<[1], [0], [0], [1], [0, 0, 1, 1], [], []>} : vector<2x64xf32>, vector<64x128xf32>, vector<2x128xf32> -> vector<2x128xf32>
    %466 = vector.broadcast %15 : vector<1x128xf32> to vector<2x128xf32>
    %467 = arith.addf %465, %466 : vector<2x128xf32>
    %468 = arith.negf %467 : vector<2x128xf32>
    %469 = math.exp %468 : vector<2x128xf32>
    %cst_92 = arith.constant 1.000000e+00 : f32
    %470 = vector.broadcast %cst_92 : f32 to vector<2x128xf32>
    %471 = arith.addf %470, %469 : vector<2x128xf32>
    %472 = arith.divf %470, %471 : vector<2x128xf32>
    %473 = math.tanh %467 : vector<2x128xf32>
    %474 = vector.extract_strided_slice %472 {offsets = [0, 0], sizes = [2, 32], strides = [1, 1]} : vector<2x128xf32> to vector<2x32xf32>
    %475 = vector.extract_strided_slice %472 {offsets = [0, 32], sizes = [2, 32], strides = [1, 1]} : vector<2x128xf32> to vector<2x32xf32>
    %476 = vector.extract_strided_slice %473 {offsets = [0, 64], sizes = [2, 32], strides = [1, 1]} : vector<2x128xf32> to vector<2x32xf32>
    %477 = vector.extract_strided_slice %472 {offsets = [0, 96], sizes = [2, 32], strides = [1, 1]} : vector<2x128xf32> to vector<2x32xf32>
    %478 = arith.mulf %475, %423 : vector<2x32xf32>
    %479 = arith.mulf %474, %476 : vector<2x32xf32>
    %480 = arith.addf %478, %479 : vector<2x32xf32>
    %481 = math.tanh %480 : vector<2x32xf32>
    %482 = arith.mulf %477, %481 : vector<2x32xf32>
    %c14 = arith.constant 14 : index
    %c0_93 = arith.constant 0 : index
    %483 = vector.load %arg12[%c14, %c0_93] : memref<16x32xf32, #tpu.memory_space<vmem>>, vector<2x32xf32>
    tpu.vector_store %arg12[%c14, %c0_93], %482 {strides = array<i32>} : memref<16x32xf32, #tpu.memory_space<vmem>>, vector<2x32xf32>,
    %c0_94 = arith.constant 0 : index
    %c0_95 = arith.constant 0 : index
    %484 = vector.load %arg12[%c0_94, %c0_95] : memref<16x32xf32, #tpu.memory_space<vmem>>, vector<16x32xf32>
    %c0_96 = arith.constant 0 : index
    %c0_97 = arith.constant 0 : index
    %485 = vector.load %arg7[%c0_96, %c0_97] : memref<32x128xf32, #tpu.memory_space<vmem>>, vector<32x128xf32>
    %cst_98 = arith.constant dense<0.000000e+00> : vector<16x128xf32>
    %486 = tpu.matmul %484, %485, %cst_98 {dimension_numbers = #tpu.dot_dimension_numbers<[1], [0], [0], [1], [0, 0, 1, 1], [], []>} : vector<16x32xf32>, vector<32x128xf32>, vector<16x128xf32> -> vector<16x128xf32>
    %c0_99 = arith.constant 0 : index
    %c0_100 = arith.constant 0 : index
    %487 = vector.load %arg8[%c0_99, %c0_100] : memref<1x128xf32, #tpu.memory_space<vmem>>, vector<1x128xf32>
    %488 = vector.broadcast %487 : vector<1x128xf32> to vector<16x128xf32>
    %489 = arith.addf %486, %488 : vector<16x128xf32>
    %c0_101 = arith.constant 0 : index
    %c0_102 = arith.constant 0 : index
    %490 = vector.load %arg9[%c0_101, %c0_102] : memref<16x128xf32, #tpu.memory_space<vmem>>, vector<16x128xf32>
    tpu.vector_store %arg9[%c0_101, %c0_102], %489 {strides = array<i32>} : memref<16x128xf32, #tpu.memory_space<vmem>>, vector<16x128xf32>,
    %c0_103 = arith.constant 0 : index
    %c0_104 = arith.constant 0 : index
    %c0_105 = arith.constant 0 : index
    %491 = vector.load %arg10[%c0_103, %c0_104, %c0_105] : memref<3x2x32xf32, #tpu.memory_space<vmem>>, vector<1x2x32xf32>
    %492 = vector.shape_cast %491 : vector<1x2x32xf32> to vector<2x32xf32>
    %493 = vector.shape_cast %444 : vector<2x32xf32> to vector<1x2x32xf32>
    tpu.vector_store %arg10[%c0_103, %c0_104, %c0_105], %493 {strides = array<i32>} : memref<3x2x32xf32, #tpu.memory_space<vmem>>, vector<1x2x32xf32>,
    %c0_106 = arith.constant 0 : index
    %c0_107 = arith.constant 0 : index
    %c0_108 = arith.constant 0 : index
    %494 = vector.load %arg11[%c0_106, %c0_107, %c0_108] : memref<3x2x32xf32, #tpu.memory_space<vmem>>, vector<1x2x32xf32>
    %495 = vector.shape_cast %494 : vector<1x2x32xf32> to vector<2x32xf32>
    %496 = vector.shape_cast %442 : vector<2x32xf32> to vector<1x2x32xf32>
    tpu.vector_store %arg11[%c0_106, %c0_107, %c0_108], %496 {strides = array<i32>} : memref<3x2x32xf32, #tpu.memory_space<vmem>>, vector<1x2x32xf32>,
    %c1_109 = arith.constant 1 : index
    %c0_110 = arith.constant 0 : index
    %c0_111 = arith.constant 0 : index
    %497 = vector.load %arg10[%c1_109, %c0_110, %c0_111] : memref<3x2x32xf32, #tpu.memory_space<vmem>>, vector<1x2x32xf32>
    %498 = vector.shape_cast %497 : vector<1x2x32xf32> to vector<2x32xf32>
    %499 = vector.shape_cast %463 : vector<2x32xf32> to vector<1x2x32xf32>
    tpu.vector_store %arg10[%c1_109, %c0_110, %c0_111], %499 {strides = array<i32>} : memref<3x2x32xf32, #tpu.memory_space<vmem>>, vector<1x2x32xf32>,
    %c1_112 = arith.constant 1 : index
    %c0_113 = arith.constant 0 : index
    %c0_114 = arith.constant 0 : index
    %500 = vector.load %arg11[%c1_112, %c0_113, %c0_114] : memref<3x2x32xf32, #tpu.memory_space<vmem>>, vector<1x2x32xf32>
    %501 = vector.shape_cast %500 : vector<1x2x32xf32> to vector<2x32xf32>
    %502 = vector.shape_cast %461 : vector<2x32xf32> to vector<1x2x32xf32>
    tpu.vector_store %arg11[%c1_112, %c0_113, %c0_114], %502 {strides = array<i32>} : memref<3x2x32xf32, #tpu.memory_space<vmem>>, vector<1x2x32xf32>,
    %c2_115 = arith.constant 2 : index
    %c0_116 = arith.constant 0 : index
    %c0_117 = arith.constant 0 : index
    %503 = vector.load %arg10[%c2_115, %c0_116, %c0_117] : memref<3x2x32xf32, #tpu.memory_space<vmem>>, vector<1x2x32xf32>
    %504 = vector.shape_cast %503 : vector<1x2x32xf32> to vector<2x32xf32>
    %505 = vector.shape_cast %482 : vector<2x32xf32> to vector<1x2x32xf32>
    tpu.vector_store %arg10[%c2_115, %c0_116, %c0_117], %505 {strides = array<i32>} : memref<3x2x32xf32, #tpu.memory_space<vmem>>, vector<1x2x32xf32>,
    %c2_118 = arith.constant 2 : index
    %c0_119 = arith.constant 0 : index
    %c0_120 = arith.constant 0 : index
    %506 = vector.load %arg11[%c2_118, %c0_119, %c0_120] : memref<3x2x32xf32, #tpu.memory_space<vmem>>, vector<1x2x32xf32>
    %507 = vector.shape_cast %506 : vector<1x2x32xf32> to vector<2x32xf32>
    %508 = vector.shape_cast %480 : vector<2x32xf32> to vector<1x2x32xf32>
    tpu.vector_store %arg11[%c2_118, %c0_119, %c0_120], %508 {strides = array<i32>} : memref<3x2x32xf32, #tpu.memory_space<vmem>>, vector<1x2x32xf32>,
    return
  }
}

</mosaic_0001>

<llo_original>
// kernel: tpu_custom_call.1
$region0: #{tpu_custom_call.1}
  #allocation0 [shape = 'u32[]', space=smem, size = 0x4, offset = 0x4, fixed_abs, tag = 'smem constant byte address 0x4 - core index']
  #allocation1 [shape = 'u32[144,128]{1,0:T(1,128)}', space=vmem, size = 0x12000, scoped, tag = 'internal scratch']
  #allocation2 [shape = 'f32[16,32]{1,0:T(8,128)}', space=vmem, size = 0x2000, scoped, tag = 'scratch operand']
  %s0 = inlined_call_operand.hbm [shape: f32[16,32], index: 0, kind: input, shape index: {}]
  %s1 = inlined_call_operand.hbm [shape: f32[3,2,32], index: 1, kind: input, shape index: {}]
  %s2 = inlined_call_operand.vmem [shape: f32[3,2,32], index: 2, kind: input, shape index: {}]
  %s3 = inlined_call_operand.hbm [shape: f32[32,128], index: 3, kind: input, shape index: {}]
  %s4 = inlined_call_operand.hbm [shape: f32[32,128], index: 4, kind: input, shape index: {}]
  %s5 = inlined_call_operand.hbm [shape: f32[2,64,128], index: 5, kind: input, shape index: {}]
  %s6 = inlined_call_operand.vmem [shape: f32[3,1,128], index: 6, kind: input, shape index: {}]
  %s7 = inlined_call_operand.hbm [shape: f32[32,128], index: 7, kind: input, shape index: {}]
  %s8 = inlined_call_operand.vmem [shape: f32[1,128], index: 8, kind: input, shape index: {}]
  %s9 = inlined_call_operand.hbm [shape: f32[16,128], index: 9, kind: output, shape index: {0}]
  %s10 = inlined_call_operand.hbm [shape: f32[3,2,32], index: 10, kind: output, shape index: {1}]
  %s11 = inlined_call_operand.hbm [shape: f32[3,2,32], index: 11, kind: output, shape index: {2}]
  %12 = xla_tuple %s9, %s10, %s11
  %s13 = sld [smem:[#allocation0]]
  $region86: #{tpu_custom_call.1} parent=0
    _
  %s15 = ssub.s32 1, %s13
  %s16 = scalar_select 0, %s15, %s13
  $region1: #{tpu_custom_call.1} parent=0
    #allocation3 [shape = 'u8[8192]{0}', space=vmem, size = 0x2000, scoped, tag = 'input window, operand 0, single buffered']
    #allocation4 [shape = 's32[1]{0}', space=sflag, size = 0x4, scoped, tag = 'scoped memory for tpu_custom_call.1']
    #allocation5 [shape = 's32[1]{0}', space=sflag, size = 0x4, scoped, tag = 'scoped memory for tpu_custom_call.1']
    #allocation6 [shape = 'u8[3072]{0}', space=vmem, size = 0xc00, scoped, tag = 'input window, operand 1, single buffered']
    #allocation7 [shape = 's32[1]{0}', space=sflag, size = 0x4, scoped, tag = 'scoped memory for tpu_custom_call.1']
    #allocation8 [shape = 'u8[16384]{0}', space=vmem, size = 0x4000, scoped, tag = 'input window, operand 3, single buffered']
    #allocation9 [shape = 'u8[16384]{0}', space=vmem, size = 0x4000, scoped, tag = 'input window, operand 4, single buffered']
    #allocation10 [shape = 's32[1]{0}', space=sflag, size = 0x4, scoped, tag = 'scoped memory for tpu_custom_call.1']
    #allocation11 [shape = 'u8[65536]{0}', space=vmem, size = 0x10000, scoped, tag = 'input window, operand 5, single buffered']
    #allocation12 [shape = 'u8[16384]{0}', space=vmem, size = 0x4000, scoped, tag = 'input window, operand 7, single buffered']
    #allocation13 [shape = 's32[1]{0}', space=sflag, size = 0x4, scoped, tag = 'scoped memory for tpu_custom_call.1']
    #allocation14 [shape = 'u8[8192]{0}', space=vmem, size = 0x2000, scoped, tag = 'output window, operand 0, single buffered']
    #allocation15 [shape = 'u8[3072]{0}', space=vmem, size = 0xc00, scoped, tag = 'output window, operand 1, single buffered']
    #allocation16 [shape = 's32[1]{0}', space=sflag, size = 0x4, scoped, tag = 'scoped memory for tpu_custom_call.1']
    #allocation17 [shape = 'u8[3072]{0}', space=vmem, size = 0xc00, scoped, tag = 'output window, operand 2, single buffered']
    %17 = vsyncpa [#allocation4], 0
    %18 = vsyncpa [#allocation7], 0
    %19 = vsyncpa [#allocation10], 0
    %20 = vsyncpa [#allocation13], 0
    %21 = vsyncpa [#allocation5], 0
    %22 = vsyncpa [#allocation16], 0
    // Predicated region
    $region2: #{tpu_custom_call.1} parent=1 // pred_check
      _
    $region3: #{tpu_custom_call.1} parent=1 // pred_check_branch
      %24 = sbr.rel (0) target = $region5
    $region4: #{tpu_custom_call.1} parent=1 // pred_region
      %s26 = ssub.s32 256, 256
      %27 = vsyncadd [#allocation4], %s26
      %s28 = sshll.u32 [#allocation3], 4
      %s29 = int_to_ptr.vmem [resolvable:$true] %s28
      %34 = dma.hbm_to_vmem [thread:$0]  %s0, 256, %s29, [#allocation4], 128, 128, 8
    $region5: #{tpu_custom_call.1} parent=1 // pred_fallthru
      _
    // Predicated region
    $region6: #{tpu_custom_call.1} parent=1 // pred_check
      _
    $region7: #{tpu_custom_call.1} parent=1 // pred_check_branch
      %36 = sbr.rel (0) target = $region9
    $region8: #{tpu_custom_call.1} parent=1 // pred_region
      %s38 = ssub.s32 96, 96
      %39 = vsyncadd [#allocation7], %s38
      %s40 = sshll.u32 [#allocation6], 4
      %s41 = int_to_ptr.vmem [resolvable:$true] %s40
      %46 = dma.hbm_to_vmem [thread:$0]  %s1, 96, %s41, [#allocation7], 32, 32, 2
    $region9: #{tpu_custom_call.1} parent=1 // pred_fallthru
      _
    // Predicated region
    $region10: #{tpu_custom_call.1} parent=1 // pred_check
      _
    $region11: #{tpu_custom_call.1} parent=1 // pred_check_branch
      %48 = sbr.rel (0) target = $region13
    $region12: #{tpu_custom_call.1} parent=1 // pred_region
      _
    $region13: #{tpu_custom_call.1} parent=1 // pred_fallthru
      _
    // Predicated region
    $region14: #{tpu_custom_call.1} parent=1 // pred_check
      _
    $region15: #{tpu_custom_call.1} parent=1 // pred_check_branch
      %50 = sbr.rel (0) target = $region17
    $region16: #{tpu_custom_call.1} parent=1 // pred_region
      %s52 = ssub.s32 512, 512
      %53 = vsyncadd [#allocation7], %s52
      %s54 = sshll.u32 [#allocation8], 4
      %s55 = int_to_ptr.vmem [resolvable:$true] %s54
      %60 = dma.hbm_to_vmem [thread:$0]  %s3, 512, %s55, [#allocation7], 128, 128, 8
    $region17: #{tpu_custom_call.1} parent=1 // pred_fallthru
      _
    // Predicated region
    $region18: #{tpu_custom_call.1} parent=1 // pred_check
      _
    $region19: #{tpu_custom_call.1} parent=1 // pred_check_branch
      %62 = sbr.rel (0) target = $region21
    $region20: #{tpu_custom_call.1} parent=1 // pred_region
      %s64 = ssub.s32 512, 512
      %65 = vsyncadd [#allocation10], %s64
      %s66 = sshll.u32 [#allocation9], 4
      %s67 = int_to_ptr.vmem [resolvable:$true] %s66
      %72 = dma.hbm_to_vmem [thread:$0]  %s4, 512, %s67, [#allocation10], 128, 128, 8
    $region21: #{tpu_custom_call.1} parent=1 // pred_fallthru
      _
    // Predicated region
    $region22: #{tpu_custom_call.1} parent=1 // pred_check
      _
    $region23: #{tpu_custom_call.1} parent=1 // pred_check_branch
      %74 = sbr.rel (0) target = $region25
    $region24: #{tpu_custom_call.1} parent=1 // pred_region
      %s76 = ssub.s32 2048, 2048
      %77 = vsyncadd [#allocation10], %s76
      %s78 = sshll.u32 [#allocation11], 4
      %s79 = int_to_ptr.vmem [resolvable:$true] %s78
      %84 = dma.hbm_to_vmem [thread:$0]  %s5, 2048, %s79, [#allocation10], 128, 128, 8
    $region25: #{tpu_custom_call.1} parent=1 // pred_fallthru
      _
    // Predicated region
    $region26: #{tpu_custom_call.1} parent=1 // pred_check
      _
    $region27: #{tpu_custom_call.1} parent=1 // pred_check_branch
      %86 = sbr.rel (0) target = $region29
    $region28: #{tpu_custom_call.1} parent=1 // pred_region
      _
    $region29: #{tpu_custom_call.1} parent=1 // pred_fallthru
      _
    // Predicated region
    $region30: #{tpu_custom_call.1} parent=1 // pred_check
      _
    $region31: #{tpu_custom_call.1} parent=1 // pred_check_branch
      %88 = sbr.rel (0) target = $region33
    $region32: #{tpu_custom_call.1} parent=1 // pred_region
      %s90 = ssub.s32 512, 512
      %91 = vsyncadd [#allocation13], %s90
      %s92 = sshll.u32 [#allocation12], 4
      %s93 = int_to_ptr.vmem [resolvable:$true] %s92
      %98 = dma.hbm_to_vmem [thread:$0]  %s7, 512, %s93, [#allocation13], 128, 128, 8
    $region33: #{tpu_custom_call.1} parent=1 // pred_fallthru
      _
    // Predicated region
    $region34: #{tpu_custom_call.1} parent=1 // pred_check
      _
    $region35: #{tpu_custom_call.1} parent=1 // pred_check_branch
      %100 = sbr.rel (0) target = $region37
    $region36: #{tpu_custom_call.1} parent=1 // pred_region
      _
    $region37: #{tpu_custom_call.1} parent=1 // pred_fallthru
      _
    // Predicated region
    $region38: #{tpu_custom_call.1} parent=1 // pred_check
      _
    $region39: #{tpu_custom_call.1} parent=1 // pred_check_branch
      %102 = sbr.rel (0) target = $region41
    $region40: #{tpu_custom_call.1} parent=1 // pred_region
      %103 = dma.done [#allocation4], 256
    $region41: #{tpu_custom_call.1} parent=1 // pred_fallthru
      _
    // Predicated region
    $region42: #{tpu_custom_call.1} parent=1 // pred_check
      _
    $region43: #{tpu_custom_call.1} parent=1 // pred_check_branch
      %105 = sbr.rel (0) target = $region45
    $region44: #{tpu_custom_call.1} parent=1 // pred_region
      %106 = dma.done [#allocation7], 96
    $region45: #{tpu_custom_call.1} parent=1 // pred_fallthru
      _
    // Predicated region
    $region46: #{tpu_custom_call.1} parent=1 // pred_check
      _
    $region47: #{tpu_custom_call.1} parent=1 // pred_check_branch
      %108 = sbr.rel (0) target = $region49
    $region48: #{tpu_custom_call.1} parent=1 // pred_region
      %109 = dma.done [#allocation7], 512
    $region49: #{tpu_custom_call.1} parent=1 // pred_fallthru
      _
    // Predicated region
    $region50: #{tpu_custom_call.1} parent=1 // pred_check
      _
    $region51: #{tpu_custom_call.1} parent=1 // pred_check_branch
      %111 = sbr.rel (0) target = $region53
    $region52: #{tpu_custom_call.1} parent=1 // pred_region
      %112 = dma.done [#allocation10], 512
    $region53: #{tpu_custom_call.1} parent=1 // pred_fallthru
      _
    // Predicated region
    $region54: #{tpu_custom_call.1} parent=1 // pred_check
      _
    $region55: #{tpu_custom_call.1} parent=1 // pred_check_branch
      %114 = sbr.rel (0) target = $region57
    $region56: #{tpu_custom_call.1} parent=1 // pred_region
      %115 = dma.done [#allocation10], 2048
    $region57: #{tpu_custom_call.1} parent=1 // pred_fallthru
      _
    // Predicated region
    $region58: #{tpu_custom_call.1} parent=1 // pred_check
      _
    $region59: #{tpu_custom_call.1} parent=1 // pred_check_branch
      %117 = sbr.rel (0) target = $region61
    $region60: #{tpu_custom_call.1} parent=1 // pred_region
      %118 = dma.done [#allocation13], 512
    $region61: #{tpu_custom_call.1} parent=1 // pred_fallthru
      _
    %v119 = vld [vmem:[#allocation3] sm:$0xff]
    %v120 = vld [vmem:[#allocation3 + $0x8] sm:$0xff]
    %v121 = vld [vmem:[#allocation8] sm:$0xff]
    %v122 = vld [vmem:[#allocation8 + $0x8] sm:$0xff]
    %v123 = vld [vmem:[#allocation8 + $0x10] sm:$0xff]
    %v124 = vld [vmem:[#allocation8 + $0x18] sm:$0xff]
    %v125 = vld [vmem:[%s6] sm:$0x1]
    %v127 = vlaneseq
    %v128 = vshrl.u32 %v127, 7
    %v129 = vsub.s32 0, %v128
    %v130 = vrot.slane %v125, %v129
    %vm132 = vcmask 261120
    %v134 = vsel %vm132, %v119, 0
    %v137 = vsel %vm132, %v120, 0
    %139 = vmatprep.subr.mxu0 0.0
    %140 = vmatpush1.msra.mxu0 %v121
    %141 = vmatprep.subr.mxu0 0.0
    %142 = vmatpush1.msra.mxu0 %v122
    %143 = vmatprep.subr.mxu0 0.0
    %144 = vmatpush1.msra.mxu0 %v123
    %145 = vmatprep.subr.mxu0 0.0
    %146 = vmatpush1.msra.mxu0 %v124
    %147 = vmatprep.subr.mxu0 0.0
    %148 = vmatpush1.msra.mxu0 0.0
    %149 = vmatprep.subr.mxu0 0.0
    %150 = vmatpush1.msra.mxu0 0.0
    %151 = vmatprep.subr.mxu0 0.0
    %152 = vmatpush1.msra.mxu0 0.0
    %153 = vmatprep.subr.mxu0 0.0
    %154 = vmatpush1.msra.mxu0 0.0
    %155 = vmatprep.subr.mxu0 0.0
    %156 = vmatpush1.msra.mxu0 0.0
    %157 = vmatprep.subr.mxu0 0.0
    %158 = vmatpush1.msra.mxu0 0.0
    %159 = vmatprep.subr.mxu0 0.0
    %160 = vmatpush1.msra.mxu0 0.0
    %161 = vmatprep.subr.mxu0 0.0
    %162 = vmatpush1.msra.mxu0 0.0
    %163 = vmatprep.subr.mxu0 0.0
    %164 = vmatpush1.msra.mxu0 0.0
    %165 = vmatprep.subr.mxu0 0.0
    %166 = vmatpush1.msra.mxu0 0.0
    %167 = vmatprep.subr.mxu0 0.0
    %168 = vmatpush1.msra.mxu0 0.0
    %169 = vmatprep.subr.mxu0 0.0
    %170 = vmatpush1.msra.mxu0 0.0
    %171 = vmatprep.subr.mxu0 0.0
    %172 = vmatpush1.msra.mxu0 0.0
    %173 = vmatprep.subr.mxu0 0.0
    %174 = vmatpush1.msra.mxu0 0.0
    %175 = vmatprep.subr.mxu0 0.0
    %176 = vmatpush1.msra.mxu0 0.0
    %177 = vmatprep.subr.mxu0 0.0
    %178 = vmatpush1.msra.mxu0 0.0
    %179 = vmatprep.subr.mxu0 0.0
    %180 = vmatpush1.msra.mxu0 0.0
    %181 = vmatprep.subr.mxu0 0.0
    %182 = vmatpush1.msra.mxu0 0.0
    %183 = vmatprep.subr.mxu0 0.0
    %184 = vmatpush1.msra.mxu0 0.0
    %185 = vmatprep.subr.mxu0 0.0
    %186 = vmatpush1.msra.mxu0 0.0
    %187 = vmatprep.subr.mxu0 0.0
    %188 = vmatpush1.msra.mxu0 0.0
    %189 = vmatprep.subr.mxu0 0.0
    %190 = vmatpush1.msra.mxu0 0.0
    %191 = vmatprep.subr.mxu0 0.0
    %192 = vmatpush1.msra.mxu0 0.0
    %193 = vmatprep.subr.mxu0 0.0
    %194 = vmatpush1.msra.mxu0 0.0
    %195 = vmatprep.subr.mxu0 0.0
    %196 = vmatpush1.msra.mxu0 0.0
    %197 = vmatprep.subr.mxu0 0.0
    %198 = vmatpush1.msra.mxu0 0.0
    %199 = vmatprep.subr.mxu0 0.0
    %200 = vmatpush1.msra.mxu0 0.0
    %201 = vmatprep.subr.mxu0 0.0
    %202 = vmatpush1.msra.mxu0 0.0
    %203 = vmatprep.mubr.f32.mxu0 0.0
    %204 = vmatmul.mubr.f32.gmra.mrb[0].mxu0 %v134
    %v205 = vpop.f32.mrb[0].mxu0
    %v206 = vadd.f32 %v130, %v205
    %v207 = vpop.f32.mrb[0].mxu0
    %208 = vmatprep.mubr.f32.mxu0 0.0
    %209 = vmatmul.mubr.f32.gmra.mrb[0].mxu0 %v137
    %v210 = vpop.f32.mrb[0].mxu0
    %v211 = vadd.f32 %v130, %v210
    %v212 = vpop.f32.mrb[0].mxu0
    %213 = vdwg.mxu0
    %v214 = vld [vmem:[#allocation9] sm:$0xff]
    %v215 = vld [vmem:[#allocation9 + $0x8] sm:$0xff]
    %v216 = vld [vmem:[#allocation9 + $0x10] sm:$0xff]
    %v217 = vld [vmem:[#allocation9 + $0x18] sm:$0xff]
    %v218 = vld [vmem:[#allocation11] sm:$0xff]
    %v219 = vld [vmem:[#allocation11 + $0x8] sm:$0xff]
    %v220 = vld [vmem:[#allocation11 + $0x10] sm:$0xff]
    %v221 = vld [vmem:[#allocation11 + $0x18] sm:$0xff]
    %v222 = vld [vmem:[#allocation11 + $0x20] sm:$0xff]
    %v223 = vld [vmem:[#allocation11 + $0x28] sm:$0xff]
    %v224 = vld [vmem:[#allocation11 + $0x30] sm:$0xff]
    %v225 = vld [vmem:[#allocation11 + $0x38] sm:$0xff]
    %s226 = scalar_lea.vmem [#allocation11], 64
    %v227 = vld [vmem:[%s226] sm:$0xff]
    %v228 = vld [vmem:[%s226 + $0x8] sm:$0xff]
    %v229 = vld [vmem:[%s226 + $0x10] sm:$0xff]
    %v230 = vld [vmem:[%s226 + $0x18] sm:$0xff]
    %v231 = vld [vmem:[%s226 + $0x20] sm:$0xff]
    %v232 = vld [vmem:[%s226 + $0x28] sm:$0xff]
    %v233 = vld [vmem:[%s226 + $0x30] sm:$0xff]
    %v234 = vld [vmem:[%s226 + $0x38] sm:$0xff]
    %s235 = scalar_lea.vmem %s6, 1
    %v236 = vld [vmem:[%s235] sm:$0x1]
    %s237 = scalar_lea.vmem %s6, 2
    %v238 = vld [vmem:[%s237] sm:$0x1]
    %v239 = vld [vmem:[#allocation6] sm:$0x3]
    %s240 = scalar_lea.vmem [#allocation6], 2
    %v241 = vld [vmem:[%s240] sm:$0x3]
    %s242 = scalar_lea.vmem [#allocation6], 4
    %v243 = vld [vmem:[%s242] sm:$0x3]
    %v244 = vld [vmem:[%s2] sm:$0x3]
    %s245 = scalar_lea.vmem %s2, 2
    %v246 = vld [vmem:[%s245] sm:$0x3]
    %s247 = scalar_lea.vmem %s2, 4
    %v248 = vld [vmem:[%s247] sm:$0x3]
    %v250 = vsel %vm132, %v239, 0
    %252 = vmatprep.subr.mxu0 0.0
    %253 = vmatpush1.msra.mxu0 %v214
    %254 = vmatprep.subr.mxu0 0.0
    %255 = vmatpush1.msra.mxu0 %v215
    %256 = vmatprep.subr.mxu0 0.0
    %257 = vmatpush1.msra.mxu0 %v216
    %258 = vmatprep.subr.mxu0 0.0
    %259 = vmatpush1.msra.mxu0 %v217
    %260 = vmatprep.subr.mxu0 0.0
    %261 = vmatpush1.msra.mxu0 0.0
    %262 = vmatprep.subr.mxu0 0.0
    %263 = vmatpush1.msra.mxu0 0.0
    %264 = vmatprep.subr.mxu0 0.0
    %265 = vmatpush1.msra.mxu0 0.0
    %266 = vmatprep.subr.mxu0 0.0
    %267 = vmatpush1.msra.mxu0 0.0
    %268 = vmatprep.subr.mxu0 0.0
    %269 = vmatpush1.msra.mxu0 0.0
    %270 = vmatprep.subr.mxu0 0.0
    %271 = vmatpush1.msra.mxu0 0.0
    %272 = vmatprep.subr.mxu0 0.0
    %273 = vmatpush1.msra.mxu0 0.0
    %274 = vmatprep.subr.mxu0 0.0
    %275 = vmatpush1.msra.mxu0 0.0
    %276 = vmatprep.subr.mxu0 0.0
    %277 = vmatpush1.msra.mxu0 0.0
    %278 = vmatprep.subr.mxu0 0.0
    %279 = vmatpush1.msra.mxu0 0.0
    %280 = vmatprep.subr.mxu0 0.0
    %281 = vmatpush1.msra.mxu0 0.0
    %282 = vmatprep.subr.mxu0 0.0
    %283 = vmatpush1.msra.mxu0 0.0
    %284 = vmatprep.subr.mxu0 0.0
    %285 = vmatpush1.msra.mxu0 0.0
    %286 = vmatprep.subr.mxu0 0.0
    %287 = vmatpush1.msra.mxu0 0.0
    %288 = vmatprep.subr.mxu0 0.0
    %289 = vmatpush1.msra.mxu0 0.0
    %290 = vmatprep.subr.mxu0 0.0
    %291 = vmatpush1.msra.mxu0 0.0
    %292 = vmatprep.subr.mxu0 0.0
    %293 = vmatpush1.msra.mxu0 0.0
    %294 = vmatprep.subr.mxu0 0.0
    %295 = vmatpush1.msra.mxu0 0.0
    %296 = vmatprep.subr.mxu0 0.0
    %297 = vmatpush1.msra.mxu0 0.0
    %298 = vmatprep.subr.mxu0 0.0
    %299 = vmatpush1.msra.mxu0 0.0
    %300 = vmatprep.subr.mxu0 0.0
    %301 = vmatpush1.msra.mxu0 0.0
    %302 = vmatprep.subr.mxu0 0.0
    %303 = vmatpush1.msra.mxu0 0.0
    %304 = vmatprep.subr.mxu0 0.0
    %305 = vmatpush1.msra.mxu0 0.0
    %306 = vmatprep.subr.mxu0 0.0
    %307 = vmatpush1.msra.mxu0 0.0
    %308 = vmatprep.subr.mxu0 0.0
    %309 = vmatpush1.msra.mxu0 0.0
    %310 = vmatprep.subr.mxu0 0.0
    %311 = vmatpush1.msra.mxu0 0.0
    %312 = vmatprep.subr.mxu0 0.0
    %313 = vmatpush1.msra.mxu0 0.0
    %314 = vmatprep.subr.mxu0 0.0
    %315 = vmatpush1.msra.mxu0 0.0
    %316 = vmatprep.mubr.f32.mxu0 0.0
    %317 = vmatmul.mubr.f32.gmra.mrb[0].mxu0 %v250
    %v318 = vpop.f32.mrb[0].mxu0
    %v319 = vadd.f32 0.0, %v318
    %v320 = vpop.f32.mrb[0].mxu0
    %321 = vdwg.mxu0
    %v322 = vadd.f32 %v206, %v319
    %v323 = vxor.u32 %v322, 2147483648
    %v324 = vmul.f32 %v323, 1.442695
    %v325 = vpow.pop %v324
    %v326 = vadd.f32 %v325, 1.0
    %v327 = vrcp.pop %v326
    %v328 = vmul.f32 1.0, %v327
    %v329 = vtanh.pop %v322
    %331 = vrot.lane.b32.xlu0 %v244, 32
    %v332 = vpop.permute.xlu0 %331
    %v334 = vmul.f32 %v328, %v332
    %336 = vrot.lane.b32.xlu0 %v329, 64
    %v337 = vpop.permute.xlu0 %336
    %v339 = vmul.f32 %v328, %v337
    %341 = vrot.lane.b32.xlu0 %v339, 32
    %v342 = vpop.permute.xlu0 %341
    %v344 = vadd.f32 %v334, %v342
    %v345 = vtanh.pop %v344
    %347 = vrot.lane.b32.xlu0 %v345, 64
    %v348 = vpop.permute.xlu0 %347
    %v350 = vmul.f32 %v328, %v348
    %352 = vrot.lane.b32.xlu0 %v350, 32
    %v353 = vpop.permute.xlu0 %352
    %356 = vrot.lane.b32.xlu0 %v241, 32
    %v357 = vpop.permute.xlu0 %356
    %v359 = vsel %vm132, %v353, %v357
    %v361 = vlaneseq
    %v362 = vshrl.u32 %v361, 7
    %v363 = vsub.s32 0, %v362
    %v364 = vrot.slane %v236, %v363
    %vm366 = vcmask 523264
    %v368 = vsel %vm366, %v359, 0
    %370 = vmatprep.subr.mxu0 0.0
    %371 = vmatpush1.msra.mxu0 %v218
    %372 = vmatprep.subr.mxu0 0.0
    %373 = vmatpush1.msra.mxu0 %v219
    %374 = vmatprep.subr.mxu0 0.0
    %375 = vmatpush1.msra.mxu0 %v220
    %376 = vmatprep.subr.mxu0 0.0
    %377 = vmatpush1.msra.mxu0 %v221
    %378 = vmatprep.subr.mxu0 0.0
    %379 = vmatpush1.msra.mxu0 %v222
    %380 = vmatprep.subr.mxu0 0.0
    %381 = vmatpush1.msra.mxu0 %v223
    %382 = vmatprep.subr.mxu0 0.0
    %383 = vmatpush1.msra.mxu0 %v224
    %384 = vmatprep.subr.mxu0 0.0
    %385 = vmatpush1.msra.mxu0 %v225
    %386 = vmatprep.subr.mxu0 0.0
    %387 = vmatpush1.msra.mxu0 0.0
    %388 = vmatprep.subr.mxu0 0.0
    %389 = vmatpush1.msra.mxu0 0.0
    %390 = vmatprep.subr.mxu0 0.0
    %391 = vmatpush1.msra.mxu0 0.0
    %392 = vmatprep.subr.mxu0 0.0
    %393 = vmatpush1.msra.mxu0 0.0
    %394 = vmatprep.subr.mxu0 0.0
    %395 = vmatpush1.msra.mxu0 0.0
    %396 = vmatprep.subr.mxu0 0.0
    %397 = vmatpush1.msra.mxu0 0.0
    %398 = vmatprep.subr.mxu0 0.0
    %399 = vmatpush1.msra.mxu0 0.0
    %400 = vmatprep.subr.mxu0 0.0
    %401 = vmatpush1.msra.mxu0 0.0
    %402 = vmatprep.subr.mxu0 0.0
    %403 = vmatpush1.msra.mxu0 0.0
    %404 = vmatprep.subr.mxu0 0.0
    %405 = vmatpush1.msra.mxu0 0.0
    %406 = vmatprep.subr.mxu0 0.0
    %407 = vmatpush1.msra.mxu0 0.0
    %408 = vmatprep.subr.mxu0 0.0
    %409 = vmatpush1.msra.mxu0 0.0
    %410 = vmatprep.subr.mxu0 0.0
    %411 = vmatpush1.msra.mxu0 0.0
    %412 = vmatprep.subr.mxu0 0.0
    %413 = vmatpush1.msra.mxu0 0.0
    %414 = vmatprep.subr.mxu0 0.0
    %415 = vmatpush1.msra.mxu0 0.0
    %416 = vmatprep.subr.mxu0 0.0
    %417 = vmatpush1.msra.mxu0 0.0
    %418 = vmatprep.subr.mxu0 0.0
    %419 = vmatpush1.msra.mxu0 0.0
    %420 = vmatprep.subr.mxu0 0.0
    %421 = vmatpush1.msra.mxu0 0.0
    %422 = vmatprep.subr.mxu0 0.0
    %423 = vmatpush1.msra.mxu0 0.0
    %424 = vmatprep.subr.mxu0 0.0
    %425 = vmatpush1.msra.mxu0 0.0
    %426 = vmatprep.subr.mxu0 0.0
    %427 = vmatpush1.msra.mxu0 0.0
    %428 = vmatprep.subr.mxu0 0.0
    %429 = vmatpush1.msra.mxu0 0.0
    %430 = vmatprep.subr.mxu0 0.0
    %431 = vmatpush1.msra.mxu0 0.0
    %432 = vmatprep.subr.mxu0 0.0
    %433 = vmatpush1.msra.mxu0 0.0
    %434 = vmatprep.mubr.f32.mxu0 0.0
    %435 = vmatmul.mubr.f32.gmra.mrb[0].mxu0 %v368
    %v436 = vpop.f32.mrb[0].mxu0
    %v437 = vadd.f32 %v364, %v436
    %v438 = vpop.f32.mrb[0].mxu0
    %439 = vdwg.mxu0
    %v440 = vxor.u32 %v437, 2147483648
    %v441 = vmul.f32 %v440, 1.442695
    %v442 = vpow.pop %v441
    %v443 = vadd.f32 %v442, 1.0
    %v444 = vrcp.pop %v443
    %v445 = vmul.f32 1.0, %v444
    %v446 = vtanh.pop %v437
    %448 = vrot.lane.b32.xlu0 %v246, 32
    %v449 = vpop.permute.xlu0 %448
    %v451 = vmul.f32 %v445, %v449
    %453 = vrot.lane.b32.xlu0 %v446, 64
    %v454 = vpop.permute.xlu0 %453
    %v456 = vmul.f32 %v445, %v454
    %458 = vrot.lane.b32.xlu0 %v456, 32
    %v459 = vpop.permute.xlu0 %458
    %v461 = vadd.f32 %v451, %v459
    %v462 = vtanh.pop %v461
    %464 = vrot.lane.b32.xlu0 %v462, 64
    %v465 = vpop.permute.xlu0 %464
    %v467 = vmul.f32 %v445, %v465
    %469 = vrot.lane.b32.xlu0 %v467, 32
    %v470 = vpop.permute.xlu0 %469
    %473 = vrot.lane.b32.xlu0 %v243, 32
    %v474 = vpop.permute.xlu0 %473
    %v476 = vsel %vm132, %v470, %v474
    %v478 = vlaneseq
    %v479 = vshrl.u32 %v478, 7
    %v480 = vsub.s32 0, %v479
    %v481 = vrot.slane %v238, %v480
    %v484 = vsel %vm366, %v476, 0
    %486 = vmatprep.subr.mxu0 0.0
    %487 = vmatpush1.msra.mxu0 %v227
    %488 = vmatprep.subr.mxu0 0.0
    %489 = vmatpush1.msra.mxu0 %v228
    %490 = vmatprep.subr.mxu0 0.0
    %491 = vmatpush1.msra.mxu0 %v229
    %492 = vmatprep.subr.mxu0 0.0
    %493 = vmatpush1.msra.mxu0 %v230
    %494 = vmatprep.subr.mxu0 0.0
    %495 = vmatpush1.msra.mxu0 %v231
    %496 = vmatprep.subr.mxu0 0.0
    %497 = vmatpush1.msra.mxu0 %v232
    %498 = vmatprep.subr.mxu0 0.0
    %499 = vmatpush1.msra.mxu0 %v233
    %500 = vmatprep.subr.mxu0 0.0
    %501 = vmatpush1.msra.mxu0 %v234
    %502 = vmatprep.subr.mxu0 0.0
    %503 = vmatpush1.msra.mxu0 0.0
    %504 = vmatprep.subr.mxu0 0.0
    %505 = vmatpush1.msra.mxu0 0.0
    %506 = vmatprep.subr.mxu0 0.0
    %507 = vmatpush1.msra.mxu0 0.0
    %508 = vmatprep.subr.mxu0 0.0
    %509 = vmatpush1.msra.mxu0 0.0
    %510 = vmatprep.subr.mxu0 0.0
    %511 = vmatpush1.msra.mxu0 0.0
    %512 = vmatprep.subr.mxu0 0.0
    %513 = vmatpush1.msra.mxu0 0.0
    %514 = vmatprep.subr.mxu0 0.0
    %515 = vmatpush1.msra.mxu0 0.0
    %516 = vmatprep.subr.mxu0 0.0
    %517 = vmatpush1.msra.mxu0 0.0
    %518 = vmatprep.subr.mxu0 0.0
    %519 = vmatpush1.msra.mxu0 0.0
    %520 = vmatprep.subr.mxu0 0.0
    %521 = vmatpush1.msra.mxu0 0.0
    %522 = vmatprep.subr.mxu0 0.0
    %523 = vmatpush1.msra.mxu0 0.0
    %524 = vmatprep.subr.mxu0 0.0
    %525 = vmatpush1.msra.mxu0 0.0
    %526 = vmatprep.subr.mxu0 0.0
    %527 = vmatpush1.msra.mxu0 0.0
    %528 = vmatprep.subr.mxu0 0.0
    %529 = vmatpush1.msra.mxu0 0.0
    %530 = vmatprep.subr.mxu0 0.0
    %531 = vmatpush1.msra.mxu0 0.0
    %532 = vmatprep.subr.mxu0 0.0
    %533 = vmatpush1.msra.mxu0 0.0
    %534 = vmatprep.subr.mxu0 0.0
    %535 = vmatpush1.msra.mxu0 0.0
    %536 = vmatprep.subr.mxu0 0.0
    %537 = vmatpush1.msra.mxu0 0.0
    %538 = vmatprep.subr.mxu0 0.0
    %539 = vmatpush1.msra.mxu0 0.0
    %540 = vmatprep.subr.mxu0 0.0
    %541 = vmatpush1.msra.mxu0 0.0
    %542 = vmatprep.subr.mxu0 0.0
    %543 = vmatpush1.msra.mxu0 0.0
    %544 = vmatprep.subr.mxu0 0.0
    %545 = vmatpush1.msra.mxu0 0.0
    %546 = vmatprep.subr.mxu0 0.0
    %547 = vmatpush1.msra.mxu0 0.0
    %548 = vmatprep.subr.mxu0 0.0
    %549 = vmatpush1.msra.mxu0 0.0
    %550 = vmatprep.mubr.f32.mxu0 0.0
    %551 = vmatmul.mubr.f32.gmra.mrb[0].mxu0 %v484
    %v552 = vpop.f32.mrb[0].mxu0
    %v553 = vadd.f32 %v481, %v552
    %v554 = vpop.f32.mrb[0].mxu0
    %555 = vdwg.mxu0
    %v556 = vxor.u32 %v553, 2147483648
    %v557 = vmul.f32 %v556, 1.442695
    %v558 = vpow.pop %v557
    %v559 = vadd.f32 %v558, 1.0
    %v560 = vrcp.pop %v559
    %v561 = vmul.f32 1.0, %v560
    %v562 = vtanh.pop %v553
    %564 = vrot.lane.b32.xlu0 %v248, 32
    %v565 = vpop.permute.xlu0 %564
    %v567 = vmul.f32 %v561, %v565
    %569 = vrot.lane.b32.xlu0 %v562, 64
    %v570 = vpop.permute.xlu0 %569
    %v572 = vmul.f32 %v561, %v570
    %574 = vrot.lane.b32.xlu0 %v572, 32
    %v575 = vpop.permute.xlu0 %574
    %v577 = vadd.f32 %v567, %v575
    %v578 = vtanh.pop %v577
    %580 = vrot.lane.b32.xlu0 %v578, 64
    %v581 = vpop.permute.xlu0 %580
    %v583 = vmul.f32 %v561, %v581
    %585 = vrot.lane.b32.xlu0 %v583, 32
    %v586 = vpop.permute.xlu0 %585
    %vm588 = vcmask 254976
    %589 = vst.msk [vmem:[#allocation2] sm:$0x3] %vm588, %v586
    %v590 = vsel %vm132, %v353, 0
    %592 = vmatprep.subr.mxu0 0.0
    %593 = vmatpush1.msra.mxu0 %v214
    %594 = vmatprep.subr.mxu0 0.0
    %595 = vmatpush1.msra.mxu0 %v215
    %596 = vmatprep.subr.mxu0 0.0
    %597 = vmatpush1.msra.mxu0 %v216
    %598 = vmatprep.subr.mxu0 0.0
    %599 = vmatpush1.msra.mxu0 %v217
    %600 = vmatprep.subr.mxu0 0.0
    %601 = vmatpush1.msra.mxu0 0.0
    %602 = vmatprep.subr.mxu0 0.0
    %603 = vmatpush1.msra.mxu0 0.0
    %604 = vmatprep.subr.mxu0 0.0
    %605 = vmatpush1.msra.mxu0 0.0
    %606 = vmatprep.subr.mxu0 0.0
    %607 = vmatpush1.msra.mxu0 0.0
    %608 = vmatprep.subr.mxu0 0.0
    %609 = vmatpush1.msra.mxu0 0.0
    %610 = vmatprep.subr.mxu0 0.0
    %611 = vmatpush1.msra.mxu0 0.0
    %612 = vmatprep.subr.mxu0 0.0
    %613 = vmatpush1.msra.mxu0 0.0
    %614 = vmatprep.subr.mxu0 0.0
    %615 = vmatpush1.msra.mxu0 0.0
    %616 = vmatprep.subr.mxu0 0.0
    %617 = vmatpush1.msra.mxu0 0.0
    %618 = vmatprep.subr.mxu0 0.0
    %619 = vmatpush1.msra.mxu0 0.0
    %620 = vmatprep.subr.mxu0 0.0
    %621 = vmatpush1.msra.mxu0 0.0
    %622 = vmatprep.subr.mxu0 0.0
    %623 = vmatpush1.msra.mxu0 0.0
    %624 = vmatprep.subr.mxu0 0.0
    %625 = vmatpush1.msra.mxu0 0.0
    %626 = vmatprep.subr.mxu0 0.0
    %627 = vmatpush1.msra.mxu0 0.0
    %628 = vmatprep.subr.mxu0 0.0
    %629 = vmatpush1.msra.mxu0 0.0
    %630 = vmatprep.subr.mxu0 0.0
    %631 = vmatpush1.msra.mxu0 0.0
    %632 = vmatprep.subr.mxu0 0.0
    %633 = vmatpush1.msra.mxu0 0.0
    %634 = vmatprep.subr.mxu0 0.0
    %635 = vmatpush1.msra.mxu0 0.0
    %636 = vmatprep.subr.mxu0 0.0
    %637 = vmatpush1.msra.mxu0 0.0
    %638 = vmatprep.subr.mxu0 0.0
    %639 = vmatpush1.msra.mxu0 0.0
    %640 = vmatprep.subr.mxu0 0.0
    %641 = vmatpush1.msra.mxu0 0.0
    %642 = vmatprep.subr.mxu0 0.0
    %643 = vmatpush1.msra.mxu0 0.0
    %644 = vmatprep.subr.mxu0 0.0
    %645 = vmatpush1.msra.mxu0 0.0
    %646 = vmatprep.subr.mxu0 0.0
    %647 = vmatpush1.msra.mxu0 0.0
    %648 = vmatprep.subr.mxu0 0.0
    %649 = vmatpush1.msra.mxu0 0.0
    %650 = vmatprep.subr.mxu0 0.0
    %651 = vmatpush1.msra.mxu0 0.0
    %652 = vmatprep.subr.mxu0 0.0
    %653 = vmatpush1.msra.mxu0 0.0
    %654 = vmatprep.subr.mxu0 0.0
    %655 = vmatpush1.msra.mxu0 0.0
    %656 = vmatprep.mubr.f32.mxu0 0.0
    %657 = vmatmul.mubr.f32.gmra.mrb[0].mxu0 %v590
    %v658 = vpop.f32.mrb[0].mxu0
    %v659 = vadd.f32 0.0, %v658
    %v660 = vpop.f32.mrb[0].mxu0
    %661 = vdwg.mxu0
    %v663 = vrot.slane %v659, 6
    %v665 = vadd.f32 %v206, %v663
    %v666 = vxor.u32 %v665, 2147483648
    %v667 = vmul.f32 %v666, 1.442695
    %v668 = vpow.pop %v667
    %v669 = vadd.f32 %v668, 1.0
    %v670 = vrcp.pop %v669
    %v671 = vmul.f32 1.0, %v670
    %v672 = vtanh.pop %v665
    %v674 = vrot.slane %v344, 6
    %v676 = vmul.f32 %v671, %v674
    %678 = vrot.lane.b32.xlu0 %v672, 64
    %v679 = vpop.permute.xlu0 %678
    %v681 = vmul.f32 %v671, %v679
    %683 = vrot.lane.b32.xlu0 %v681, 32
    %v684 = vpop.permute.xlu0 %683
    %v686 = vadd.f32 %v676, %v684
    %v687 = vtanh.pop %v686
    %689 = vrot.lane.b32.xlu0 %v687, 64
    %v690 = vpop.permute.xlu0 %689
    %v692 = vmul.f32 %v671, %v690
    %694 = vrot.lane.b32.xlu0 %v692, 32
    %v695 = vpop.permute.xlu0 %694
    %v697 = vrot.slane %v467, 6
    %698 = vrot.lane.b32.xlu0 %v697, 64
    %v699 = vpop.permute.xlu0 %698
    %v701 = vsel %vm132, %v695, %v699
    %v703 = vrot.slane %v701, 2
    %v704 = vsel %vm366, %v703, 0
    %706 = vmatprep.subr.mxu0 0.0
    %707 = vmatpush1.msra.mxu0 %v218
    %708 = vmatprep.subr.mxu0 0.0
    %709 = vmatpush1.msra.mxu0 %v219
    %710 = vmatprep.subr.mxu0 0.0
    %711 = vmatpush1.msra.mxu0 %v220
    %712 = vmatprep.subr.mxu0 0.0
    %713 = vmatpush1.msra.mxu0 %v221
    %714 = vmatprep.subr.mxu0 0.0
    %715 = vmatpush1.msra.mxu0 %v222
    %716 = vmatprep.subr.mxu0 0.0
    %717 = vmatpush1.msra.mxu0 %v223
    %718 = vmatprep.subr.mxu0 0.0
    %719 = vmatpush1.msra.mxu0 %v224
    %720 = vmatprep.subr.mxu0 0.0
    %721 = vmatpush1.msra.mxu0 %v225
    %722 = vmatprep.subr.mxu0 0.0
    %723 = vmatpush1.msra.mxu0 0.0
    %724 = vmatprep.subr.mxu0 0.0
    %725 = vmatpush1.msra.mxu0 0.0
    %726 = vmatprep.subr.mxu0 0.0
    %727 = vmatpush1.msra.mxu0 0.0
    %728 = vmatprep.subr.mxu0 0.0
    %729 = vmatpush1.msra.mxu0 0.0
    %730 = vmatprep.subr.mxu0 0.0
    %731 = vmatpush1.msra.mxu0 0.0
    %732 = vmatprep.subr.mxu0 0.0
    %733 = vmatpush1.msra.mxu0 0.0
    %734 = vmatprep.subr.mxu0 0.0
    %735 = vmatpush1.msra.mxu0 0.0
    %736 = vmatprep.subr.mxu0 0.0
    %737 = vmatpush1.msra.mxu0 0.0
    %738 = vmatprep.subr.mxu0 0.0
    %739 = vmatpush1.msra.mxu0 0.0
    %740 = vmatprep.subr.mxu0 0.0
    %741 = vmatpush1.msra.mxu0 0.0
    %742 = vmatprep.subr.mxu0 0.0
    %743 = vmatpush1.msra.mxu0 0.0
    %744 = vmatprep.subr.mxu0 0.0
    %745 = vmatpush1.msra.mxu0 0.0
    %746 = vmatprep.subr.mxu0 0.0
    %747 = vmatpush1.msra.mxu0 0.0
    %748 = vmatprep.subr.mxu0 0.0
    %749 = vmatpush1.msra.mxu0 0.0
    %750 = vmatprep.subr.mxu0 0.0
    %751 = vmatpush1.msra.mxu0 0.0
    %752 = vmatprep.subr.mxu0 0.0
    %753 = vmatpush1.msra.mxu0 0.0
    %754 = vmatprep.subr.mxu0 0.0
    %755 = vmatpush1.msra.mxu0 0.0
    %756 = vmatprep.subr.mxu0 0.0
    %757 = vmatpush1.msra.mxu0 0.0
    %758 = vmatprep.subr.mxu0 0.0
    %759 = vmatpush1.msra.mxu0 0.0
    %760 = vmatprep.subr.mxu0 0.0
    %761 = vmatpush1.msra.mxu0 0.0
    %762 = vmatprep.subr.mxu0 0.0
    %763 = vmatpush1.msra.mxu0 0.0
    %764 = vmatprep.subr.mxu0 0.0
    %765 = vmatpush1.msra.mxu0 0.0
    %766 = vmatprep.subr.mxu0 0.0
    %767 = vmatpush1.msra.mxu0 0.0
    %768 = vmatprep.subr.mxu0 0.0
    %769 = vmatpush1.msra.mxu0 0.0
    %770 = vmatprep.mubr.f32.mxu0 0.0
    %771 = vmatmul.mubr.f32.gmra.mrb[0].mxu0 %v704
    %v772 = vpop.f32.mrb[0].mxu0
    %v773 = vadd.f32 %v364, %v772
    %v774 = vpop.f32.mrb[0].mxu0
    %775 = vdwg.mxu0
    %v776 = vxor.u32 %v773, 2147483648
    %v777 = vmul.f32 %v776, 1.442695
    %v778 = vpow.pop %v777
    %v779 = vadd.f32 %v778, 1.0
    %v780 = vrcp.pop %v779
    %v781 = vmul.f32 1.0, %v780
    %v782 = vtanh.pop %v773
    %v783 = vmul.f32 %v781, %v461
    %785 = vrot.lane.b32.xlu0 %v782, 64
    %v786 = vpop.permute.xlu0 %785
    %v788 = vmul.f32 %v781, %v786
    %790 = vrot.lane.b32.xlu0 %v788, 32
    %v791 = vpop.permute.xlu0 %790
    %v793 = vadd.f32 %v783, %v791
    %v794 = vtanh.pop %v793
    %796 = vrot.lane.b32.xlu0 %v794, 64
    %v797 = vpop.permute.xlu0 %796
    %v799 = vmul.f32 %v781, %v797
    %801 = vrot.lane.b32.xlu0 %v799, 32
    %v802 = vpop.permute.xlu0 %801
    %804 = vrot.lane.b32.xlu0 %v583, 64
    %v805 = vpop.permute.xlu0 %804
    %v807 = vsel %vm132, %v802, %v805
    %v809 = vsel %vm366, %v807, 0
    %811 = vmatprep.subr.mxu0 0.0
    %812 = vmatpush1.msra.mxu0 %v227
    %813 = vmatprep.subr.mxu0 0.0
    %814 = vmatpush1.msra.mxu0 %v228
    %815 = vmatprep.subr.mxu0 0.0
    %816 = vmatpush1.msra.mxu0 %v229
    %817 = vmatprep.subr.mxu0 0.0
    %818 = vmatpush1.msra.mxu0 %v230
    %819 = vmatprep.subr.mxu0 0.0
    %820 = vmatpush1.msra.mxu0 %v231
    %821 = vmatprep.subr.mxu0 0.0
    %822 = vmatpush1.msra.mxu0 %v232
    %823 = vmatprep.subr.mxu0 0.0
    %824 = vmatpush1.msra.mxu0 %v233
    %825 = vmatprep.subr.mxu0 0.0
    %826 = vmatpush1.msra.mxu0 %v234
    %827 = vmatprep.subr.mxu0 0.0
    %828 = vmatpush1.msra.mxu0 0.0
    %829 = vmatprep.subr.mxu0 0.0
    %830 = vmatpush1.msra.mxu0 0.0
    %831 = vmatprep.subr.mxu0 0.0
    %832 = vmatpush1.msra.mxu0 0.0
    %833 = vmatprep.subr.mxu0 0.0
    %834 = vmatpush1.msra.mxu0 0.0
    %835 = vmatprep.subr.mxu0 0.0
    %836 = vmatpush1.msra.mxu0 0.0
    %837 = vmatprep.subr.mxu0 0.0
    %838 = vmatpush1.msra.mxu0 0.0
    %839 = vmatprep.subr.mxu0 0.0
    %840 = vmatpush1.msra.mxu0 0.0
    %841 = vmatprep.subr.mxu0 0.0
    %842 = vmatpush1.msra.mxu0 0.0
    %843 = vmatprep.subr.mxu0 0.0
    %844 = vmatpush1.msra.mxu0 0.0
    %845 = vmatprep.subr.mxu0 0.0
    %846 = vmatpush1.msra.mxu0 0.0
    %847 = vmatprep.subr.mxu0 0.0
    %848 = vmatpush1.msra.mxu0 0.0
    %849 = vmatprep.subr.mxu0 0.0
    %850 = vmatpush1.msra.mxu0 0.0
    %851 = vmatprep.subr.mxu0 0.0
    %852 = vmatpush1.msra.mxu0 0.0
    %853 = vmatprep.subr.mxu0 0.0
    %854 = vmatpush1.msra.mxu0 0.0
    %855 = vmatprep.subr.mxu0 0.0
    %856 = vmatpush1.msra.mxu0 0.0
    %857 = vmatprep.subr.mxu0 0.0
    %858 = vmatpush1.msra.mxu0 0.0
    %859 = vmatprep.subr.mxu0 0.0
    %860 = vmatpush1.msra.mxu0 0.0
    %861 = vmatprep.subr.mxu0 0.0
    %862 = vmatpush1.msra.mxu0 0.0
    %863 = vmatprep.subr.mxu0 0.0
    %864 = vmatpush1.msra.mxu0 0.0
    %865 = vmatprep.subr.mxu0 0.0
    %866 = vmatpush1.msra.mxu0 0.0
    %867 = vmatprep.subr.mxu0 0.0
    %868 = vmatpush1.msra.mxu0 0.0
    %869 = vmatprep.subr.mxu0 0.0
    %870 = vmatpush1.msra.mxu0 0.0
    %871 = vmatprep.subr.mxu0 0.0
    %872 = vmatpush1.msra.mxu0 0.0
    %873 = vmatprep.subr.mxu0 0.0
    %874 = vmatpush1.msra.mxu0 0.0
    %875 = vmatprep.mubr.f32.mxu0 0.0
    %876 = vmatmul.mubr.f32.gmra.mrb[0].mxu0 %v809
    %v877 = vpop.f32.mrb[0].mxu0
    %v878 = vadd.f32 %v481, %v877
    %v879 = vpop.f32.mrb[0].mxu0
    %880 = vdwg.mxu0
    %v881 = vxor.u32 %v878, 2147483648
    %v882 = vmul.f32 %v881, 1.442695
    %v883 = vpow.pop %v882
    %v884 = vadd.f32 %v883, 1.0
    %v885 = vrcp.pop %v884
    %v886 = vmul.f32 1.0, %v885
    %v887 = vtanh.pop %v878
    %v888 = vmul.f32 %v886, %v577
    %890 = vrot.lane.b32.xlu0 %v887, 64
    %v891 = vpop.permute.xlu0 %890
    %v893 = vmul.f32 %v886, %v891
    %895 = vrot.lane.b32.xlu0 %v893, 32
    %v896 = vpop.permute.xlu0 %895
    %v898 = vadd.f32 %v888, %v896
    %v899 = vtanh.pop %v898
    %901 = vrot.lane.b32.xlu0 %v899, 64
    %v902 = vpop.permute.xlu0 %901
    %v904 = vmul.f32 %v886, %v902
    %906 = vrot.lane.b32.xlu0 %v904, 32
    %v907 = vpop.permute.xlu0 %906
    %909 = vst.msk [vmem:[#allocation2 + $0x2] sm:$0x3] %vm588, %v907
    %v910 = vrot.slane %v692, 2
    %911 = vrot.lane.b32.xlu0 %v910, 32
    %v912 = vpop.permute.xlu0 %911
    %v913 = vsel %vm132, %v912, 0
    %915 = vmatprep.subr.mxu0 0.0
    %916 = vmatpush1.msra.mxu0 %v214
    %917 = vmatprep.subr.mxu0 0.0
    %918 = vmatpush1.msra.mxu0 %v215
    %919 = vmatprep.subr.mxu0 0.0
    %920 = vmatpush1.msra.mxu0 %v216
    %921 = vmatprep.subr.mxu0 0.0
    %922 = vmatpush1.msra.mxu0 %v217
    %923 = vmatprep.subr.mxu0 0.0
    %924 = vmatpush1.msra.mxu0 0.0
    %925 = vmatprep.subr.mxu0 0.0
    %926 = vmatpush1.msra.mxu0 0.0
    %927 = vmatprep.subr.mxu0 0.0
    %928 = vmatpush1.msra.mxu0 0.0
    %929 = vmatprep.subr.mxu0 0.0
    %930 = vmatpush1.msra.mxu0 0.0
    %931 = vmatprep.subr.mxu0 0.0
    %932 = vmatpush1.msra.mxu0 0.0
    %933 = vmatprep.subr.mxu0 0.0
    %934 = vmatpush1.msra.mxu0 0.0
    %935 = vmatprep.subr.mxu0 0.0
    %936 = vmatpush1.msra.mxu0 0.0
    %937 = vmatprep.subr.mxu0 0.0
    %938 = vmatpush1.msra.mxu0 0.0
    %939 = vmatprep.subr.mxu0 0.0
    %940 = vmatpush1.msra.mxu0 0.0
    %941 = vmatprep.subr.mxu0 0.0
    %942 = vmatpush1.msra.mxu0 0.0
    %943 = vmatprep.subr.mxu0 0.0
    %944 = vmatpush1.msra.mxu0 0.0
    %945 = vmatprep.subr.mxu0 0.0
    %946 = vmatpush1.msra.mxu0 0.0
    %947 = vmatprep.subr.mxu0 0.0
    %948 = vmatpush1.msra.mxu0 0.0
    %949 = vmatprep.subr.mxu0 0.0
    %950 = vmatpush1.msra.mxu0 0.0
    %951 = vmatprep.subr.mxu0 0.0
    %952 = vmatpush1.msra.mxu0 0.0
    %953 = vmatprep.subr.mxu0 0.0
    %954 = vmatpush1.msra.mxu0 0.0
    %955 = vmatprep.subr.mxu0 0.0
    %956 = vmatpush1.msra.mxu0 0.0
    %957 = vmatprep.subr.mxu0 0.0
    %958 = vmatpush1.msra.mxu0 0.0
    %959 = vmatprep.subr.mxu0 0.0
    %960 = vmatpush1.msra.mxu0 0.0
    %961 = vmatprep.subr.mxu0 0.0
    %962 = vmatpush1.msra.mxu0 0.0
    %963 = vmatprep.subr.mxu0 0.0
    %964 = vmatpush1.msra.mxu0 0.0
    %965 = vmatprep.subr.mxu0 0.0
    %966 = vmatpush1.msra.mxu0 0.0
    %967 = vmatprep.subr.mxu0 0.0
    %968 = vmatpush1.msra.mxu0 0.0
    %969 = vmatprep.subr.mxu0 0.0
    %970 = vmatpush1.msra.mxu0 0.0
    %971 = vmatprep.subr.mxu0 0.0
    %972 = vmatpush1.msra.mxu0 0.0
    %973 = vmatprep.subr.mxu0 0.0
    %974 = vmatpush1.msra.mxu0 0.0
    %975 = vmatprep.subr.mxu0 0.0
    %976 = vmatpush1.msra.mxu0 0.0
    %977 = vmatprep.subr.mxu0 0.0
    %978 = vmatpush1.msra.mxu0 0.0
    %979 = vmatprep.mubr.f32.mxu0 0.0
    %980 = vmatmul.mubr.f32.gmra.mrb[0].mxu0 %v913
    %v981 = vpop.f32.mrb[0].mxu0
    %v982 = vadd.f32 0.0, %v981
    %v983 = vpop.f32.mrb[0].mxu0
    %984 = vdwg.mxu0
    %v986 = vrot.slane %v982, 4
    %v988 = vadd.f32 %v206, %v986
    %v989 = vxor.u32 %v988, 2147483648
    %v990 = vmul.f32 %v989, 1.442695
    %v991 = vpow.pop %v990
    %v992 = vadd.f32 %v991, 1.0
    %v993 = vrcp.pop %v992
    %v994 = vmul.f32 1.0, %v993
    %v995 = vtanh.pop %v988
    %v997 = vrot.slane %v686, 6
    %v999 = vmul.f32 %v994, %v997
    %1001 = vrot.lane.b32.xlu0 %v995, 64
    %v1002 = vpop.permute.xlu0 %1001
    %v1004 = vmul.f32 %v994, %v1002
    %1006 = vrot.lane.b32.xlu0 %v1004, 32
    %v1007 = vpop.permute.xlu0 %1006
    %v1009 = vadd.f32 %v999, %v1007
    %v1010 = vtanh.pop %v1009
    %1012 = vrot.lane.b32.xlu0 %v1010, 64
    %v1013 = vpop.permute.xlu0 %1012
    %v1015 = vmul.f32 %v994, %v1013
    %1017 = vrot.lane.b32.xlu0 %v1015, 32
    %v1018 = vpop.permute.xlu0 %1017
    %v1020 = vrot.slane %v799, 4
    %1021 = vrot.lane.b32.xlu0 %v1020, 64
    %v1022 = vpop.permute.xlu0 %1021
    %v1024 = vsel %vm132, %v1018, %v1022
    %v1026 = vrot.slane %v1024, 4
    %v1027 = vsel %vm366, %v1026, 0
    %1029 = vmatprep.subr.mxu0 0.0
    %1030 = vmatpush1.msra.mxu0 %v218
    %1031 = vmatprep.subr.mxu0 0.0
    %1032 = vmatpush1.msra.mxu0 %v219
    %1033 = vmatprep.subr.mxu0 0.0
    %1034 = vmatpush1.msra.mxu0 %v220
    %1035 = vmatprep.subr.mxu0 0.0
    %1036 = vmatpush1.msra.mxu0 %v221
    %1037 = vmatprep.subr.mxu0 0.0
    %1038 = vmatpush1.msra.mxu0 %v222
    %1039 = vmatprep.subr.mxu0 0.0
    %1040 = vmatpush1.msra.mxu0 %v223
    %1041 = vmatprep.subr.mxu0 0.0
    %1042 = vmatpush1.msra.mxu0 %v224
    %1043 = vmatprep.subr.mxu0 0.0
    %1044 = vmatpush1.msra.mxu0 %v225
    %1045 = vmatprep.subr.mxu0 0.0
    %1046 = vmatpush1.msra.mxu0 0.0
    %1047 = vmatprep.subr.mxu0 0.0
    %1048 = vmatpush1.msra.mxu0 0.0
    %1049 = vmatprep.subr.mxu0 0.0
    %1050 = vmatpush1.msra.mxu0 0.0
    %1051 = vmatprep.subr.mxu0 0.0
    %1052 = vmatpush1.msra.mxu0 0.0
    %1053 = vmatprep.subr.mxu0 0.0
    %1054 = vmatpush1.msra.mxu0 0.0
    %1055 = vmatprep.subr.mxu0 0.0
    %1056 = vmatpush1.msra.mxu0 0.0
    %1057 = vmatprep.subr.mxu0 0.0
    %1058 = vmatpush1.msra.mxu0 0.0
    %1059 = vmatprep.subr.mxu0 0.0
    %1060 = vmatpush1.msra.mxu0 0.0
    %1061 = vmatprep.subr.mxu0 0.0
    %1062 = vmatpush1.msra.mxu0 0.0
    %1063 = vmatprep.subr.mxu0 0.0
    %1064 = vmatpush1.msra.mxu0 0.0
    %1065 = vmatprep.subr.mxu0 0.0
    %1066 = vmatpush1.msra.mxu0 0.0
    %1067 = vmatprep.subr.mxu0 0.0
    %1068 = vmatpush1.msra.mxu0 0.0
    %1069 = vmatprep.subr.mxu0 0.0
    %1070 = vmatpush1.msra.mxu0 0.0
    %1071 = vmatprep.subr.mxu0 0.0
    %1072 = vmatpush1.msra.mxu0 0.0
    %1073 = vmatprep.subr.mxu0 0.0
    %1074 = vmatpush1.msra.mxu0 0.0
    %1075 = vmatprep.subr.mxu0 0.0
    %1076 = vmatpush1.msra.mxu0 0.0
    %1077 = vmatprep.subr.mxu0 0.0
    %1078 = vmatpush1.msra.mxu0 0.0
    %1079 = vmatprep.subr.mxu0 0.0
    %1080 = vmatpush1.msra.mxu0 0.0
    %1081 = vmatprep.subr.mxu0 0.0
    %1082 = vmatpush1.msra.mxu0 0.0
    %1083 = vmatprep.subr.mxu0 0.0
    %1084 = vmatpush1.msra.mxu0 0.0
    %1085 = vmatprep.subr.mxu0 0.0
    %1086 = vmatpush1.msra.mxu0 0.0
    %1087 = vmatprep.subr.mxu0 0.0
    %1088 = vmatpush1.msra.mxu0 0.0
    %1089 = vmatprep.subr.mxu0 0.0
    %1090 = vmatpush1.msra.mxu0 0.0
    %1091 = vmatprep.subr.mxu0 0.0
    %1092 = vmatpush1.msra.mxu0 0.0
    %1093 = vmatprep.mubr.f32.mxu0 0.0
    %1094 = vmatmul.mubr.f32.gmra.mrb[0].mxu0 %v1027
    %v1095 = vpop.f32.mrb[0].mxu0
    %v1096 = vadd.f32 %v364, %v1095
    %v1097 = vpop.f32.mrb[0].mxu0
    %1098 = vdwg.mxu0
    %v1099 = vxor.u32 %v1096, 2147483648
    %v1100 = vmul.f32 %v1099, 1.442695
    %v1101 = vpow.pop %v1100
    %v1102 = vadd.f32 %v1101, 1.0
    %v1103 = vrcp.pop %v1102
    %v1104 = vmul.f32 1.0, %v1103
    %v1105 = vtanh.pop %v1096
    %v1106 = vmul.f32 %v1104, %v793
    %1108 = vrot.lane.b32.xlu0 %v1105, 64
    %v1109 = vpop.permute.xlu0 %1108
    %v1111 = vmul.f32 %v1104, %v1109
    %1113 = vrot.lane.b32.xlu0 %v1111, 32
    %v1114 = vpop.permute.xlu0 %1113
    %v1116 = vadd.f32 %v1106, %v1114
    %v1117 = vtanh.pop %v1116
    %1119 = vrot.lane.b32.xlu0 %v1117, 64
    %v1120 = vpop.permute.xlu0 %1119
    %v1122 = vmul.f32 %v1104, %v1120
    %1124 = vrot.lane.b32.xlu0 %v1122, 32
    %v1125 = vpop.permute.xlu0 %1124
    %1127 = vrot.lane.b32.xlu0 %v904, 64
    %v1128 = vpop.permute.xlu0 %1127
    %v1130 = vsel %vm132, %v1125, %v1128
    %v1132 = vsel %vm366, %v1130, 0
    %1134 = vmatprep.subr.mxu0 0.0
    %1135 = vmatpush1.msra.mxu0 %v227
    %1136 = vmatprep.subr.mxu0 0.0
    %1137 = vmatpush1.msra.mxu0 %v228
    %1138 = vmatprep.subr.mxu0 0.0
    %1139 = vmatpush1.msra.mxu0 %v229
    %1140 = vmatprep.subr.mxu0 0.0
    %1141 = vmatpush1.msra.mxu0 %v230
    %1142 = vmatprep.subr.mxu0 0.0
    %1143 = vmatpush1.msra.mxu0 %v231
    %1144 = vmatprep.subr.mxu0 0.0
    %1145 = vmatpush1.msra.mxu0 %v232
    %1146 = vmatprep.subr.mxu0 0.0
    %1147 = vmatpush1.msra.mxu0 %v233
    %1148 = vmatprep.subr.mxu0 0.0
    %1149 = vmatpush1.msra.mxu0 %v234
    %1150 = vmatprep.subr.mxu0 0.0
    %1151 = vmatpush1.msra.mxu0 0.0
    %1152 = vmatprep.subr.mxu0 0.0
    %1153 = vmatpush1.msra.mxu0 0.0
    %1154 = vmatprep.subr.mxu0 0.0
    %1155 = vmatpush1.msra.mxu0 0.0
    %1156 = vmatprep.subr.mxu0 0.0
    %1157 = vmatpush1.msra.mxu0 0.0
    %1158 = vmatprep.subr.mxu0 0.0
    %1159 = vmatpush1.msra.mxu0 0.0
    %1160 = vmatprep.subr.mxu0 0.0
    %1161 = vmatpush1.msra.mxu0 0.0
    %1162 = vmatprep.subr.mxu0 0.0
    %1163 = vmatpush1.msra.mxu0 0.0
    %1164 = vmatprep.subr.mxu0 0.0
    %1165 = vmatpush1.msra.mxu0 0.0
    %1166 = vmatprep.subr.mxu0 0.0
    %1167 = vmatpush1.msra.mxu0 0.0
    %1168 = vmatprep.subr.mxu0 0.0
    %1169 = vmatpush1.msra.mxu0 0.0
    %1170 = vmatprep.subr.mxu0 0.0
    %1171 = vmatpush1.msra.mxu0 0.0
    %1172 = vmatprep.subr.mxu0 0.0
    %1173 = vmatpush1.msra.mxu0 0.0
    %1174 = vmatprep.subr.mxu0 0.0
    %1175 = vmatpush1.msra.mxu0 0.0
    %1176 = vmatprep.subr.mxu0 0.0
    %1177 = vmatpush1.msra.mxu0 0.0
    %1178 = vmatprep.subr.mxu0 0.0
    %1179 = vmatpush1.msra.mxu0 0.0
    %1180 = vmatprep.subr.mxu0 0.0
    %1181 = vmatpush1.msra.mxu0 0.0
    %1182 = vmatprep.subr.mxu0 0.0
    %1183 = vmatpush1.msra.mxu0 0.0
    %1184 = vmatprep.subr.mxu0 0.0
    %1185 = vmatpush1.msra.mxu0 0.0
    %1186 = vmatprep.subr.mxu0 0.0
    %1187 = vmatpush1.msra.mxu0 0.0
    %1188 = vmatprep.subr.mxu0 0.0
    %1189 = vmatpush1.msra.mxu0 0.0
    %1190 = vmatprep.subr.mxu0 0.0
    %1191 = vmatpush1.msra.mxu0 0.0
    %1192 = vmatprep.subr.mxu0 0.0
    %1193 = vmatpush1.msra.mxu0 0.0
    %1194 = vmatprep.subr.mxu0 0.0
    %1195 = vmatpush1.msra.mxu0 0.0
    %1196 = vmatprep.subr.mxu0 0.0
    %1197 = vmatpush1.msra.mxu0 0.0
    %1198 = vmatprep.mubr.f32.mxu0 0.0
    %1199 = vmatmul.mubr.f32.gmra.mrb[0].mxu0 %v1132
    %v1200 = vpop.f32.mrb[0].mxu0
    %v1201 = vadd.f32 %v481, %v1200
    %v1202 = vpop.f32.mrb[0].mxu0
    %1203 = vdwg.mxu0
    %v1204 = vxor.u32 %v1201, 2147483648
    %v1205 = vmul.f32 %v1204, 1.442695
    %v1206 = vpow.pop %v1205
    %v1207 = vadd.f32 %v1206, 1.0
    %v1208 = vrcp.pop %v1207
    %v1209 = vmul.f32 1.0, %v1208
    %v1210 = vtanh.pop %v1201
    %v1211 = vmul.f32 %v1209, %v898
    %1213 = vrot.lane.b32.xlu0 %v1210, 64
    %v1214 = vpop.permute.xlu0 %1213
    %v1216 = vmul.f32 %v1209, %v1214
    %1218 = vrot.lane.b32.xlu0 %v1216, 32
    %v1219 = vpop.permute.xlu0 %1218
    %v1221 = vadd.f32 %v1211, %v1219
    %v1222 = vtanh.pop %v1221
    %1224 = vrot.lane.b32.xlu0 %v1222, 64
    %v1225 = vpop.permute.xlu0 %1224
    %v1227 = vmul.f32 %v1209, %v1225
    %1229 = vrot.lane.b32.xlu0 %v1227, 32
    %v1230 = vpop.permute.xlu0 %1229
    %1232 = vst.msk [vmem:[#allocation2 + $0x4] sm:$0x3] %vm588, %v1230
    %v1233 = vrot.slane %v1015, 4
    %1234 = vrot.lane.b32.xlu0 %v1233, 32
    %v1235 = vpop.permute.xlu0 %1234
    %v1236 = vsel %vm132, %v1235, 0
    %1238 = vmatprep.subr.mxu0 0.0
    %1239 = vmatpush1.msra.mxu0 %v214
    %1240 = vmatprep.subr.mxu0 0.0
    %1241 = vmatpush1.msra.mxu0 %v215
    %1242 = vmatprep.subr.mxu0 0.0
    %1243 = vmatpush1.msra.mxu0 %v216
    %1244 = vmatprep.subr.mxu0 0.0
    %1245 = vmatpush1.msra.mxu0 %v217
    %1246 = vmatprep.subr.mxu0 0.0
    %1247 = vmatpush1.msra.mxu0 0.0
    %1248 = vmatprep.subr.mxu0 0.0
    %1249 = vmatpush1.msra.mxu0 0.0
    %1250 = vmatprep.subr.mxu0 0.0
    %1251 = vmatpush1.msra.mxu0 0.0
    %1252 = vmatprep.subr.mxu0 0.0
    %1253 = vmatpush1.msra.mxu0 0.0
    %1254 = vmatprep.subr.mxu0 0.0
    %1255 = vmatpush1.msra.mxu0 0.0
    %1256 = vmatprep.subr.mxu0 0.0
    %1257 = vmatpush1.msra.mxu0 0.0
    %1258 = vmatprep.subr.mxu0 0.0
    %1259 = vmatpush1.msra.mxu0 0.0
    %1260 = vmatprep.subr.mxu0 0.0
    %1261 = vmatpush1.msra.mxu0 0.0
    %1262 = vmatprep.subr.mxu0 0.0
    %1263 = vmatpush1.msra.mxu0 0.0
    %1264 = vmatprep.subr.mxu0 0.0
    %1265 = vmatpush1.msra.mxu0 0.0
    %1266 = vmatprep.subr.mxu0 0.0
    %1267 = vmatpush1.msra.mxu0 0.0
    %1268 = vmatprep.subr.mxu0 0.0
    %1269 = vmatpush1.msra.mxu0 0.0
    %1270 = vmatprep.subr.mxu0 0.0
    %1271 = vmatpush1.msra.mxu0 0.0
    %1272 = vmatprep.subr.mxu0 0.0
    %1273 = vmatpush1.msra.mxu0 0.0
    %1274 = vmatprep.subr.mxu0 0.0
    %1275 = vmatpush1.msra.mxu0 0.0
    %1276 = vmatprep.subr.mxu0 0.0
    %1277 = vmatpush1.msra.mxu0 0.0
    %1278 = vmatprep.subr.mxu0 0.0
    %1279 = vmatpush1.msra.mxu0 0.0
    %1280 = vmatprep.subr.mxu0 0.0
    %1281 = vmatpush1.msra.mxu0 0.0
    %1282 = vmatprep.subr.mxu0 0.0
    %1283 = vmatpush1.msra.mxu0 0.0
    %1284 = vmatprep.subr.mxu0 0.0
    %1285 = vmatpush1.msra.mxu0 0.0
    %1286 = vmatprep.subr.mxu0 0.0
    %1287 = vmatpush1.msra.mxu0 0.0
    %1288 = vmatprep.subr.mxu0 0.0
    %1289 = vmatpush1.msra.mxu0 0.0
    %1290 = vmatprep.subr.mxu0 0.0
    %1291 = vmatpush1.msra.mxu0 0.0
    %1292 = vmatprep.subr.mxu0 0.0
    %1293 = vmatpush1.msra.mxu0 0.0
    %1294 = vmatprep.subr.mxu0 0.0
    %1295 = vmatpush1.msra.mxu0 0.0
    %1296 = vmatprep.subr.mxu0 0.0
    %1297 = vmatpush1.msra.mxu0 0.0
    %1298 = vmatprep.subr.mxu0 0.0
    %1299 = vmatpush1.msra.mxu0 0.0
    %1300 = vmatprep.subr.mxu0 0.0
    %1301 = vmatpush1.msra.mxu0 0.0
    %1302 = vmatprep.mubr.f32.mxu0 0.0
    %1303 = vmatmul.mubr.f32.gmra.mrb[0].mxu0 %v1236
    %v1304 = vpop.f32.mrb[0].mxu0
    %v1305 = vadd.f32 0.0, %v1304
    %v1306 = vpop.f32.mrb[0].mxu0
    %1307 = vdwg.mxu0
    %v1309 = vrot.slane %v1305, 2
    %v1311 = vadd.f32 %v206, %v1309
    %v1312 = vxor.u32 %v1311, 2147483648
    %v1313 = vmul.f32 %v1312, 1.442695
    %v1314 = vpow.pop %v1313
    %v1315 = vadd.f32 %v1314, 1.0
    %v1316 = vrcp.pop %v1315
    %v1317 = vmul.f32 1.0, %v1316
    %v1318 = vtanh.pop %v1311
    %v1320 = vrot.slane %v1009, 6
    %v1322 = vmul.f32 %v1317, %v1320
    %1324 = vrot.lane.b32.xlu0 %v1318, 64
    %v1325 = vpop.permute.xlu0 %1324
    %v1327 = vmul.f32 %v1317, %v1325
    %1329 = vrot.lane.b32.xlu0 %v1327, 32
    %v1330 = vpop.permute.xlu0 %1329
    %v1332 = vadd.f32 %v1322, %v1330
    %v1333 = vtanh.pop %v1332
    %1335 = vrot.lane.b32.xlu0 %v1333, 64
    %v1336 = vpop.permute.xlu0 %1335
    %v1338 = vmul.f32 %v1317, %v1336
    %1340 = vrot.lane.b32.xlu0 %v1338, 32
    %v1341 = vpop.permute.xlu0 %1340
    %v1343 = vrot.slane %v1122, 2
    %1344 = vrot.lane.b32.xlu0 %v1343, 64
    %v1345 = vpop.permute.xlu0 %1344
    %v1347 = vsel %vm132, %v1341, %v1345
    %v1349 = vrot.slane %v1347, 6
    %v1350 = vsel %vm366, %v1349, 0
    %1352 = vmatprep.subr.mxu0 0.0
    %1353 = vmatpush1.msra.mxu0 %v218
    %1354 = vmatprep.subr.mxu0 0.0
    %1355 = vmatpush1.msra.mxu0 %v219
    %1356 = vmatprep.subr.mxu0 0.0
    %1357 = vmatpush1.msra.mxu0 %v220
    %1358 = vmatprep.subr.mxu0 0.0
    %1359 = vmatpush1.msra.mxu0 %v221
    %1360 = vmatprep.subr.mxu0 0.0
    %1361 = vmatpush1.msra.mxu0 %v222
    %1362 = vmatprep.subr.mxu0 0.0
    %1363 = vmatpush1.msra.mxu0 %v223
    %1364 = vmatprep.subr.mxu0 0.0
    %1365 = vmatpush1.msra.mxu0 %v224
    %1366 = vmatprep.subr.mxu0 0.0
    %1367 = vmatpush1.msra.mxu0 %v225
    %1368 = vmatprep.subr.mxu0 0.0
    %1369 = vmatpush1.msra.mxu0 0.0
    %1370 = vmatprep.subr.mxu0 0.0
    %1371 = vmatpush1.msra.mxu0 0.0
    %1372 = vmatprep.subr.mxu0 0.0
    %1373 = vmatpush1.msra.mxu0 0.0
    %1374 = vmatprep.subr.mxu0 0.0
    %1375 = vmatpush1.msra.mxu0 0.0
    %1376 = vmatprep.subr.mxu0 0.0
    %1377 = vmatpush1.msra.mxu0 0.0
    %1378 = vmatprep.subr.mxu0 0.0
    %1379 = vmatpush1.msra.mxu0 0.0
    %1380 = vmatprep.subr.mxu0 0.0
    %1381 = vmatpush1.msra.mxu0 0.0
    %1382 = vmatprep.subr.mxu0 0.0
    %1383 = vmatpush1.msra.mxu0 0.0
    %1384 = vmatprep.subr.mxu0 0.0
    %1385 = vmatpush1.msra.mxu0 0.0
    %1386 = vmatprep.subr.mxu0 0.0
    %1387 = vmatpush1.msra.mxu0 0.0
    %1388 = vmatprep.subr.mxu0 0.0
    %1389 = vmatpush1.msra.mxu0 0.0
    %1390 = vmatprep.subr.mxu0 0.0
    %1391 = vmatpush1.msra.mxu0 0.0
    %1392 = vmatprep.subr.mxu0 0.0
    %1393 = vmatpush1.msra.mxu0 0.0
    %1394 = vmatprep.subr.mxu0 0.0
    %1395 = vmatpush1.msra.mxu0 0.0
    %1396 = vmatprep.subr.mxu0 0.0
    %1397 = vmatpush1.msra.mxu0 0.0
    %1398 = vmatprep.subr.mxu0 0.0
    %1399 = vmatpush1.msra.mxu0 0.0
    %1400 = vmatprep.subr.mxu0 0.0
    %1401 = vmatpush1.msra.mxu0 0.0
    %1402 = vmatprep.subr.mxu0 0.0
    %1403 = vmatpush1.msra.mxu0 0.0
    %1404 = vmatprep.subr.mxu0 0.0
    %1405 = vmatpush1.msra.mxu0 0.0
    %1406 = vmatprep.subr.mxu0 0.0
    %1407 = vmatpush1.msra.mxu0 0.0
    %1408 = vmatprep.subr.mxu0 0.0
    %1409 = vmatpush1.msra.mxu0 0.0
    %1410 = vmatprep.subr.mxu0 0.0
    %1411 = vmatpush1.msra.mxu0 0.0
    %1412 = vmatprep.subr.mxu0 0.0
    %1413 = vmatpush1.msra.mxu0 0.0
    %1414 = vmatprep.subr.mxu0 0.0
    %1415 = vmatpush1.msra.mxu0 0.0
    %1416 = vmatprep.mubr.f32.mxu0 0.0
    %1417 = vmatmul.mubr.f32.gmra.mrb[0].mxu0 %v1350
    %v1418 = vpop.f32.mrb[0].mxu0
    %v1419 = vadd.f32 %v364, %v1418
    %v1420 = vpop.f32.mrb[0].mxu0
    %1421 = vdwg.mxu0
    %v1422 = vxor.u32 %v1419, 2147483648
    %v1423 = vmul.f32 %v1422, 1.442695
    %v1424 = vpow.pop %v1423
    %v1425 = vadd.f32 %v1424, 1.0
    %v1426 = vrcp.pop %v1425
    %v1427 = vmul.f32 1.0, %v1426
    %v1428 = vtanh.pop %v1419
    %v1429 = vmul.f32 %v1427, %v1116
    %1431 = vrot.lane.b32.xlu0 %v1428, 64
    %v1432 = vpop.permute.xlu0 %1431
    %v1434 = vmul.f32 %v1427, %v1432
    %1436 = vrot.lane.b32.xlu0 %v1434, 32
    %v1437 = vpop.permute.xlu0 %1436
    %v1439 = vadd.f32 %v1429, %v1437
    %v1440 = vtanh.pop %v1439
    %1442 = vrot.lane.b32.xlu0 %v1440, 64
    %v1443 = vpop.permute.xlu0 %1442
    %v1445 = vmul.f32 %v1427, %v1443
    %1447 = vrot.lane.b32.xlu0 %v1445, 32
    %v1448 = vpop.permute.xlu0 %1447
    %1450 = vrot.lane.b32.xlu0 %v1227, 64
    %v1451 = vpop.permute.xlu0 %1450
    %v1453 = vsel %vm132, %v1448, %v1451
    %v1455 = vsel %vm366, %v1453, 0
    %1457 = vmatprep.subr.mxu0 0.0
    %1458 = vmatpush1.msra.mxu0 %v227
    %1459 = vmatprep.subr.mxu0 0.0
    %1460 = vmatpush1.msra.mxu0 %v228
    %1461 = vmatprep.subr.mxu0 0.0
    %1462 = vmatpush1.msra.mxu0 %v229
    %1463 = vmatprep.subr.mxu0 0.0
    %1464 = vmatpush1.msra.mxu0 %v230
    %1465 = vmatprep.subr.mxu0 0.0
    %1466 = vmatpush1.msra.mxu0 %v231
    %1467 = vmatprep.subr.mxu0 0.0
    %1468 = vmatpush1.msra.mxu0 %v232
    %1469 = vmatprep.subr.mxu0 0.0
    %1470 = vmatpush1.msra.mxu0 %v233
    %1471 = vmatprep.subr.mxu0 0.0
    %1472 = vmatpush1.msra.mxu0 %v234
    %1473 = vmatprep.subr.mxu0 0.0
    %1474 = vmatpush1.msra.mxu0 0.0
    %1475 = vmatprep.subr.mxu0 0.0
    %1476 = vmatpush1.msra.mxu0 0.0
    %1477 = vmatprep.subr.mxu0 0.0
    %1478 = vmatpush1.msra.mxu0 0.0
    %1479 = vmatprep.subr.mxu0 0.0
    %1480 = vmatpush1.msra.mxu0 0.0
    %1481 = vmatprep.subr.mxu0 0.0
    %1482 = vmatpush1.msra.mxu0 0.0
    %1483 = vmatprep.subr.mxu0 0.0
    %1484 = vmatpush1.msra.mxu0 0.0
    %1485 = vmatprep.subr.mxu0 0.0
    %1486 = vmatpush1.msra.mxu0 0.0
    %1487 = vmatprep.subr.mxu0 0.0
    %1488 = vmatpush1.msra.mxu0 0.0
    %1489 = vmatprep.subr.mxu0 0.0
    %1490 = vmatpush1.msra.mxu0 0.0
    %1491 = vmatprep.subr.mxu0 0.0
    %1492 = vmatpush1.msra.mxu0 0.0
    %1493 = vmatprep.subr.mxu0 0.0
    %1494 = vmatpush1.msra.mxu0 0.0
    %1495 = vmatprep.subr.mxu0 0.0
    %1496 = vmatpush1.msra.mxu0 0.0
    %1497 = vmatprep.subr.mxu0 0.0
    %1498 = vmatpush1.msra.mxu0 0.0
    %1499 = vmatprep.subr.mxu0 0.0
    %1500 = vmatpush1.msra.mxu0 0.0
    %1501 = vmatprep.subr.mxu0 0.0
    %1502 = vmatpush1.msra.mxu0 0.0
    %1503 = vmatprep.subr.mxu0 0.0
    %1504 = vmatpush1.msra.mxu0 0.0
    %1505 = vmatprep.subr.mxu0 0.0
    %1506 = vmatpush1.msra.mxu0 0.0
    %1507 = vmatprep.subr.mxu0 0.0
    %1508 = vmatpush1.msra.mxu0 0.0
    %1509 = vmatprep.subr.mxu0 0.0
    %1510 = vmatpush1.msra.mxu0 0.0
    %1511 = vmatprep.subr.mxu0 0.0
    %1512 = vmatpush1.msra.mxu0 0.0
    %1513 = vmatprep.subr.mxu0 0.0
    %1514 = vmatpush1.msra.mxu0 0.0
    %1515 = vmatprep.subr.mxu0 0.0
    %1516 = vmatpush1.msra.mxu0 0.0
    %1517 = vmatprep.subr.mxu0 0.0
    %1518 = vmatpush1.msra.mxu0 0.0
    %1519 = vmatprep.subr.mxu0 0.0
    %1520 = vmatpush1.msra.mxu0 0.0
    %1521 = vmatprep.mubr.f32.mxu0 0.0
    %1522 = vmatmul.mubr.f32.gmra.mrb[0].mxu0 %v1455
    %v1523 = vpop.f32.mrb[0].mxu0
    %v1524 = vadd.f32 %v481, %v1523
    %v1525 = vpop.f32.mrb[0].mxu0
    %1526 = vdwg.mxu0
    %v1527 = vxor.u32 %v1524, 2147483648
    %v1528 = vmul.f32 %v1527, 1.442695
    %v1529 = vpow.pop %v1528
    %v1530 = vadd.f32 %v1529, 1.0
    %v1531 = vrcp.pop %v1530
    %v1532 = vmul.f32 1.0, %v1531
    %v1533 = vtanh.pop %v1524
    %v1534 = vmul.f32 %v1532, %v1221
    %1536 = vrot.lane.b32.xlu0 %v1533, 64
    %v1537 = vpop.permute.xlu0 %1536
    %v1539 = vmul.f32 %v1532, %v1537
    %1541 = vrot.lane.b32.xlu0 %v1539, 32
    %v1542 = vpop.permute.xlu0 %1541
    %v1544 = vadd.f32 %v1534, %v1542
    %v1545 = vtanh.pop %v1544
    %1547 = vrot.lane.b32.xlu0 %v1545, 64
    %v1548 = vpop.permute.xlu0 %1547
    %v1550 = vmul.f32 %v1532, %v1548
    %1552 = vrot.lane.b32.xlu0 %v1550, 32
    %v1553 = vpop.permute.xlu0 %1552
    %1555 = vst.msk [vmem:[#allocation2 + $0x6] sm:$0x3] %vm588, %v1553
    %v1556 = vrot.slane %v1338, 6
    %1557 = vrot.lane.b32.xlu0 %v1556, 32
    %v1558 = vpop.permute.xlu0 %1557
    %v1559 = vsel %vm132, %v1558, 0
    %1561 = vmatprep.subr.mxu0 0.0
    %1562 = vmatpush1.msra.mxu0 %v214
    %1563 = vmatprep.subr.mxu0 0.0
    %1564 = vmatpush1.msra.mxu0 %v215
    %1565 = vmatprep.subr.mxu0 0.0
    %1566 = vmatpush1.msra.mxu0 %v216
    %1567 = vmatprep.subr.mxu0 0.0
    %1568 = vmatpush1.msra.mxu0 %v217
    %1569 = vmatprep.subr.mxu0 0.0
    %1570 = vmatpush1.msra.mxu0 0.0
    %1571 = vmatprep.subr.mxu0 0.0
    %1572 = vmatpush1.msra.mxu0 0.0
    %1573 = vmatprep.subr.mxu0 0.0
    %1574 = vmatpush1.msra.mxu0 0.0
    %1575 = vmatprep.subr.mxu0 0.0
    %1576 = vmatpush1.msra.mxu0 0.0
    %1577 = vmatprep.subr.mxu0 0.0
    %1578 = vmatpush1.msra.mxu0 0.0
    %1579 = vmatprep.subr.mxu0 0.0
    %1580 = vmatpush1.msra.mxu0 0.0
    %1581 = vmatprep.subr.mxu0 0.0
    %1582 = vmatpush1.msra.mxu0 0.0
    %1583 = vmatprep.subr.mxu0 0.0
    %1584 = vmatpush1.msra.mxu0 0.0
    %1585 = vmatprep.subr.mxu0 0.0
    %1586 = vmatpush1.msra.mxu0 0.0
    %1587 = vmatprep.subr.mxu0 0.0
    %1588 = vmatpush1.msra.mxu0 0.0
    %1589 = vmatprep.subr.mxu0 0.0
    %1590 = vmatpush1.msra.mxu0 0.0
    %1591 = vmatprep.subr.mxu0 0.0
    %1592 = vmatpush1.msra.mxu0 0.0
    %1593 = vmatprep.subr.mxu0 0.0
    %1594 = vmatpush1.msra.mxu0 0.0
    %1595 = vmatprep.subr.mxu0 0.0
    %1596 = vmatpush1.msra.mxu0 0.0
    %1597 = vmatprep.subr.mxu0 0.0
    %1598 = vmatpush1.msra.mxu0 0.0
    %1599 = vmatprep.subr.mxu0 0.0
    %1600 = vmatpush1.msra.mxu0 0.0
    %1601 = vmatprep.subr.mxu0 0.0
    %1602 = vmatpush1.msra.mxu0 0.0
    %1603 = vmatprep.subr.mxu0 0.0
    %1604 = vmatpush1.msra.mxu0 0.0
    %1605 = vmatprep.subr.mxu0 0.0
    %1606 = vmatpush1.msra.mxu0 0.0
    %1607 = vmatprep.subr.mxu0 0.0
    %1608 = vmatpush1.msra.mxu0 0.0
    %1609 = vmatprep.subr.mxu0 0.0
    %1610 = vmatpush1.msra.mxu0 0.0
    %1611 = vmatprep.subr.mxu0 0.0
    %1612 = vmatpush1.msra.mxu0 0.0
    %1613 = vmatprep.subr.mxu0 0.0
    %1614 = vmatpush1.msra.mxu0 0.0
    %1615 = vmatprep.subr.mxu0 0.0
    %1616 = vmatpush1.msra.mxu0 0.0
    %1617 = vmatprep.subr.mxu0 0.0
    %1618 = vmatpush1.msra.mxu0 0.0
    %1619 = vmatprep.subr.mxu0 0.0
    %1620 = vmatpush1.msra.mxu0 0.0
    %1621 = vmatprep.subr.mxu0 0.0
    %1622 = vmatpush1.msra.mxu0 0.0
    %1623 = vmatprep.subr.mxu0 0.0
    %1624 = vmatpush1.msra.mxu0 0.0
    %1625 = vmatprep.mubr.f32.mxu0 0.0
    %1626 = vmatmul.mubr.f32.gmra.mrb[0].mxu0 %v1559
    %v1627 = vpop.f32.mrb[0].mxu0
    %v1628 = vadd.f32 0.0, %v1627
    %v1629 = vpop.f32.mrb[0].mxu0
    %1630 = vdwg.mxu0
    %v1631 = vadd.f32 %v211, %v1628
    %v1632 = vxor.u32 %v1631, 2147483648
    %v1633 = vmul.f32 %v1632, 1.442695
    %v1634 = vpow.pop %v1633
    %v1635 = vadd.f32 %v1634, 1.0
    %v1636 = vrcp.pop %v1635
    %v1637 = vmul.f32 1.0, %v1636
    %v1638 = vtanh.pop %v1631
    %v1640 = vrot.slane %v1332, 6
    %v1642 = vmul.f32 %v1637, %v1640
    %1644 = vrot.lane.b32.xlu0 %v1638, 64
    %v1645 = vpop.permute.xlu0 %1644
    %v1647 = vmul.f32 %v1637, %v1645
    %1649 = vrot.lane.b32.xlu0 %v1647, 32
    %v1650 = vpop.permute.xlu0 %1649
    %v1652 = vadd.f32 %v1642, %v1650
    %v1653 = vtanh.pop %v1652
    %1655 = vrot.lane.b32.xlu0 %v1653, 64
    %v1656 = vpop.permute.xlu0 %1655
    %v1658 = vmul.f32 %v1637, %v1656
    %1660 = vrot.lane.b32.xlu0 %v1658, 32
    %v1661 = vpop.permute.xlu0 %1660
    %1663 = vrot.lane.b32.xlu0 %v1445, 64
    %v1664 = vpop.permute.xlu0 %1663
    %v1666 = vsel %vm132, %v1661, %v1664
    %v1668 = vsel %vm366, %v1666, 0
    %1670 = vmatprep.subr.mxu0 0.0
    %1671 = vmatpush1.msra.mxu0 %v218
    %1672 = vmatprep.subr.mxu0 0.0
    %1673 = vmatpush1.msra.mxu0 %v219
    %1674 = vmatprep.subr.mxu0 0.0
    %1675 = vmatpush1.msra.mxu0 %v220
    %1676 = vmatprep.subr.mxu0 0.0
    %1677 = vmatpush1.msra.mxu0 %v221
    %1678 = vmatprep.subr.mxu0 0.0
    %1679 = vmatpush1.msra.mxu0 %v222
    %1680 = vmatprep.subr.mxu0 0.0
    %1681 = vmatpush1.msra.mxu0 %v223
    %1682 = vmatprep.subr.mxu0 0.0
    %1683 = vmatpush1.msra.mxu0 %v224
    %1684 = vmatprep.subr.mxu0 0.0
    %1685 = vmatpush1.msra.mxu0 %v225
    %1686 = vmatprep.subr.mxu0 0.0
    %1687 = vmatpush1.msra.mxu0 0.0
    %1688 = vmatprep.subr.mxu0 0.0
    %1689 = vmatpush1.msra.mxu0 0.0
    %1690 = vmatprep.subr.mxu0 0.0
    %1691 = vmatpush1.msra.mxu0 0.0
    %1692 = vmatprep.subr.mxu0 0.0
    %1693 = vmatpush1.msra.mxu0 0.0
    %1694 = vmatprep.subr.mxu0 0.0
    %1695 = vmatpush1.msra.mxu0 0.0
    %1696 = vmatprep.subr.mxu0 0.0
    %1697 = vmatpush1.msra.mxu0 0.0
    %1698 = vmatprep.subr.mxu0 0.0
    %1699 = vmatpush1.msra.mxu0 0.0
    %1700 = vmatprep.subr.mxu0 0.0
    %1701 = vmatpush1.msra.mxu0 0.0
    %1702 = vmatprep.subr.mxu0 0.0
    %1703 = vmatpush1.msra.mxu0 0.0
    %1704 = vmatprep.subr.mxu0 0.0
    %1705 = vmatpush1.msra.mxu0 0.0
    %1706 = vmatprep.subr.mxu0 0.0
    %1707 = vmatpush1.msra.mxu0 0.0
    %1708 = vmatprep.subr.mxu0 0.0
    %1709 = vmatpush1.msra.mxu0 0.0
    %1710 = vmatprep.subr.mxu0 0.0
    %1711 = vmatpush1.msra.mxu0 0.0
    %1712 = vmatprep.subr.mxu0 0.0
    %1713 = vmatpush1.msra.mxu0 0.0
    %1714 = vmatprep.subr.mxu0 0.0
    %1715 = vmatpush1.msra.mxu0 0.0
    %1716 = vmatprep.subr.mxu0 0.0
    %1717 = vmatpush1.msra.mxu0 0.0
    %1718 = vmatprep.subr.mxu0 0.0
    %1719 = vmatpush1.msra.mxu0 0.0
    %1720 = vmatprep.subr.mxu0 0.0
    %1721 = vmatpush1.msra.mxu0 0.0
    %1722 = vmatprep.subr.mxu0 0.0
    %1723 = vmatpush1.msra.mxu0 0.0
    %1724 = vmatprep.subr.mxu0 0.0
    %1725 = vmatpush1.msra.mxu0 0.0
    %1726 = vmatprep.subr.mxu0 0.0
    %1727 = vmatpush1.msra.mxu0 0.0
    %1728 = vmatprep.subr.mxu0 0.0
    %1729 = vmatpush1.msra.mxu0 0.0
    %1730 = vmatprep.subr.mxu0 0.0
    %1731 = vmatpush1.msra.mxu0 0.0
    %1732 = vmatprep.subr.mxu0 0.0
    %1733 = vmatpush1.msra.mxu0 0.0
    %1734 = vmatprep.mubr.f32.mxu0 0.0
    %1735 = vmatmul.mubr.f32.gmra.mrb[0].mxu0 %v1668
    %v1736 = vpop.f32.mrb[0].mxu0
    %v1737 = vadd.f32 %v364, %v1736
    %v1738 = vpop.f32.mrb[0].mxu0
    %1739 = vdwg.mxu0
    %v1740 = vxor.u32 %v1737, 2147483648
    %v1741 = vmul.f32 %v1740, 1.442695
    %v1742 = vpow.pop %v1741
    %v1743 = vadd.f32 %v1742, 1.0
    %v1744 = vrcp.pop %v1743
    %v1745 = vmul.f32 1.0, %v1744
    %v1746 = vtanh.pop %v1737
    %v1747 = vmul.f32 %v1745, %v1439
    %1749 = vrot.lane.b32.xlu0 %v1746, 64
    %v1750 = vpop.permute.xlu0 %1749
    %v1752 = vmul.f32 %v1745, %v1750
    %1754 = vrot.lane.b32.xlu0 %v1752, 32
    %v1755 = vpop.permute.xlu0 %1754
    %v1757 = vadd.f32 %v1747, %v1755
    %v1758 = vtanh.pop %v1757
    %1760 = vrot.lane.b32.xlu0 %v1758, 64
    %v1761 = vpop.permute.xlu0 %1760
    %v1763 = vmul.f32 %v1745, %v1761
    %1765 = vrot.lane.b32.xlu0 %v1763, 32
    %v1766 = vpop.permute.xlu0 %1765
    %1768 = vrot.lane.b32.xlu0 %v1550, 64
    %v1769 = vpop.permute.xlu0 %1768
    %v1771 = vsel %vm132, %v1766, %v1769
    %v1773 = vsel %vm366, %v1771, 0
    %1775 = vmatprep.subr.mxu0 0.0
    %1776 = vmatpush1.msra.mxu0 %v227
    %1777 = vmatprep.subr.mxu0 0.0
    %1778 = vmatpush1.msra.mxu0 %v228
    %1779 = vmatprep.subr.mxu0 0.0
    %1780 = vmatpush1.msra.mxu0 %v229
    %1781 = vmatprep.subr.mxu0 0.0
    %1782 = vmatpush1.msra.mxu0 %v230
    %1783 = vmatprep.subr.mxu0 0.0
    %1784 = vmatpush1.msra.mxu0 %v231
    %1785 = vmatprep.subr.mxu0 0.0
    %1786 = vmatpush1.msra.mxu0 %v232
    %1787 = vmatprep.subr.mxu0 0.0
    %1788 = vmatpush1.msra.mxu0 %v233
    %1789 = vmatprep.subr.mxu0 0.0
    %1790 = vmatpush1.msra.mxu0 %v234
    %1791 = vmatprep.subr.mxu0 0.0
    %1792 = vmatpush1.msra.mxu0 0.0
    %1793 = vmatprep.subr.mxu0 0.0
    %1794 = vmatpush1.msra.mxu0 0.0
    %1795 = vmatprep.subr.mxu0 0.0
    %1796 = vmatpush1.msra.mxu0 0.0
    %1797 = vmatprep.subr.mxu0 0.0
    %1798 = vmatpush1.msra.mxu0 0.0
    %1799 = vmatprep.subr.mxu0 0.0
    %1800 = vmatpush1.msra.mxu0 0.0
    %1801 = vmatprep.subr.mxu0 0.0
    %1802 = vmatpush1.msra.mxu0 0.0
    %1803 = vmatprep.subr.mxu0 0.0
    %1804 = vmatpush1.msra.mxu0 0.0
    %1805 = vmatprep.subr.mxu0 0.0
    %1806 = vmatpush1.msra.mxu0 0.0
    %1807 = vmatprep.subr.mxu0 0.0
    %1808 = vmatpush1.msra.mxu0 0.0
    %1809 = vmatprep.subr.mxu0 0.0
    %1810 = vmatpush1.msra.mxu0 0.0
    %1811 = vmatprep.subr.mxu0 0.0
    %1812 = vmatpush1.msra.mxu0 0.0
    %1813 = vmatprep.subr.mxu0 0.0
    %1814 = vmatpush1.msra.mxu0 0.0
    %1815 = vmatprep.subr.mxu0 0.0
    %1816 = vmatpush1.msra.mxu0 0.0
    %1817 = vmatprep.subr.mxu0 0.0
    %1818 = vmatpush1.msra.mxu0 0.0
    %1819 = vmatprep.subr.mxu0 0.0
    %1820 = vmatpush1.msra.mxu0 0.0
    %1821 = vmatprep.subr.mxu0 0.0
    %1822 = vmatpush1.msra.mxu0 0.0
    %1823 = vmatprep.subr.mxu0 0.0
    %1824 = vmatpush1.msra.mxu0 0.0
    %1825 = vmatprep.subr.mxu0 0.0
    %1826 = vmatpush1.msra.mxu0 0.0
    %1827 = vmatprep.subr.mxu0 0.0
    %1828 = vmatpush1.msra.mxu0 0.0
    %1829 = vmatprep.subr.mxu0 0.0
    %1830 = vmatpush1.msra.mxu0 0.0
    %1831 = vmatprep.subr.mxu0 0.0
    %1832 = vmatpush1.msra.mxu0 0.0
    %1833 = vmatprep.subr.mxu0 0.0
    %1834 = vmatpush1.msra.mxu0 0.0
    %1835 = vmatprep.subr.mxu0 0.0
    %1836 = vmatpush1.msra.mxu0 0.0
    %1837 = vmatprep.subr.mxu0 0.0
    %1838 = vmatpush1.msra.mxu0 0.0
    %1839 = vmatprep.mubr.f32.mxu0 0.0
    %1840 = vmatmul.mubr.f32.gmra.mrb[0].mxu0 %v1773
    %v1841 = vpop.f32.mrb[0].mxu0
    %v1842 = vadd.f32 %v481, %v1841
    %v1843 = vpop.f32.mrb[0].mxu0
    %1844 = vdwg.mxu0
    %v1845 = vxor.u32 %v1842, 2147483648
    %v1846 = vmul.f32 %v1845, 1.442695
    %v1847 = vpow.pop %v1846
    %v1848 = vadd.f32 %v1847, 1.0
    %v1849 = vrcp.pop %v1848
    %v1850 = vmul.f32 1.0, %v1849
    %v1851 = vtanh.pop %v1842
    %v1852 = vmul.f32 %v1850, %v1544
    %1854 = vrot.lane.b32.xlu0 %v1851, 64
    %v1855 = vpop.permute.xlu0 %1854
    %v1857 = vmul.f32 %v1850, %v1855
    %1859 = vrot.lane.b32.xlu0 %v1857, 32
    %v1860 = vpop.permute.xlu0 %1859
    %v1862 = vadd.f32 %v1852, %v1860
    %v1863 = vtanh.pop %v1862
    %1865 = vrot.lane.b32.xlu0 %v1863, 64
    %v1866 = vpop.permute.xlu0 %1865
    %v1868 = vmul.f32 %v1850, %v1866
    %1870 = vrot.lane.b32.xlu0 %v1868, 32
    %v1871 = vpop.permute.xlu0 %1870
    %1873 = vst.msk [vmem:[#allocation2 + $0x8] sm:$0x3] %vm588, %v1871
    %v1874 = vsel %vm132, %v1661, 0
    %1876 = vmatprep.subr.mxu0 0.0
    %1877 = vmatpush1.msra.mxu0 %v214
    %1878 = vmatprep.subr.mxu0 0.0
    %1879 = vmatpush1.msra.mxu0 %v215
    %1880 = vmatprep.subr.mxu0 0.0
    %1881 = vmatpush1.msra.mxu0 %v216
    %1882 = vmatprep.subr.mxu0 0.0
    %1883 = vmatpush1.msra.mxu0 %v217
    %1884 = vmatprep.subr.mxu0 0.0
    %1885 = vmatpush1.msra.mxu0 0.0
    %1886 = vmatprep.subr.mxu0 0.0
    %1887 = vmatpush1.msra.mxu0 0.0
    %1888 = vmatprep.subr.mxu0 0.0
    %1889 = vmatpush1.msra.mxu0 0.0
    %1890 = vmatprep.subr.mxu0 0.0
    %1891 = vmatpush1.msra.mxu0 0.0
    %1892 = vmatprep.subr.mxu0 0.0
    %1893 = vmatpush1.msra.mxu0 0.0
    %1894 = vmatprep.subr.mxu0 0.0
    %1895 = vmatpush1.msra.mxu0 0.0
    %1896 = vmatprep.subr.mxu0 0.0
    %1897 = vmatpush1.msra.mxu0 0.0
    %1898 = vmatprep.subr.mxu0 0.0
    %1899 = vmatpush1.msra.mxu0 0.0
    %1900 = vmatprep.subr.mxu0 0.0
    %1901 = vmatpush1.msra.mxu0 0.0
    %1902 = vmatprep.subr.mxu0 0.0
    %1903 = vmatpush1.msra.mxu0 0.0
    %1904 = vmatprep.subr.mxu0 0.0
    %1905 = vmatpush1.msra.mxu0 0.0
    %1906 = vmatprep.subr.mxu0 0.0
    %1907 = vmatpush1.msra.mxu0 0.0
    %1908 = vmatprep.subr.mxu0 0.0
    %1909 = vmatpush1.msra.mxu0 0.0
    %1910 = vmatprep.subr.mxu0 0.0
    %1911 = vmatpush1.msra.mxu0 0.0
    %1912 = vmatprep.subr.mxu0 0.0
    %1913 = vmatpush1.msra.mxu0 0.0
    %1914 = vmatprep.subr.mxu0 0.0
    %1915 = vmatpush1.msra.mxu0 0.0
    %1916 = vmatprep.subr.mxu0 0.0
    %1917 = vmatpush1.msra.mxu0 0.0
    %1918 = vmatprep.subr.mxu0 0.0
    %1919 = vmatpush1.msra.mxu0 0.0
    %1920 = vmatprep.subr.mxu0 0.0
    %1921 = vmatpush1.msra.mxu0 0.0
    %1922 = vmatprep.subr.mxu0 0.0
    %1923 = vmatpush1.msra.mxu0 0.0
    %1924 = vmatprep.subr.mxu0 0.0
    %1925 = vmatpush1.msra.mxu0 0.0
    %1926 = vmatprep.subr.mxu0 0.0
    %1927 = vmatpush1.msra.mxu0 0.0
    %1928 = vmatprep.subr.mxu0 0.0
    %1929 = vmatpush1.msra.mxu0 0.0
    %1930 = vmatprep.subr.mxu0 0.0
    %1931 = vmatpush1.msra.mxu0 0.0
    %1932 = vmatprep.subr.mxu0 0.0
    %1933 = vmatpush1.msra.mxu0 0.0
    %1934 = vmatprep.subr.mxu0 0.0
    %1935 = vmatpush1.msra.mxu0 0.0
    %1936 = vmatprep.subr.mxu0 0.0
    %1937 = vmatpush1.msra.mxu0 0.0
    %1938 = vmatprep.subr.mxu0 0.0
    %1939 = vmatpush1.msra.mxu0 0.0
    %1940 = vmatprep.mubr.f32.mxu0 0.0
    %1941 = vmatmul.mubr.f32.gmra.mrb[0].mxu0 %v1874
    %v1942 = vpop.f32.mrb[0].mxu0
    %v1943 = vadd.f32 0.0, %v1942
    %v1944 = vpop.f32.mrb[0].mxu0
    %1945 = vdwg.mxu0
    %v1947 = vrot.slane %v1943, 6
    %v1949 = vadd.f32 %v211, %v1947
    %v1950 = vxor.u32 %v1949, 2147483648
    %v1951 = vmul.f32 %v1950, 1.442695
    %v1952 = vpow.pop %v1951
    %v1953 = vadd.f32 %v1952, 1.0
    %v1954 = vrcp.pop %v1953
    %v1955 = vmul.f32 1.0, %v1954
    %v1956 = vtanh.pop %v1949
    %v1958 = vrot.slane %v1652, 6
    %v1960 = vmul.f32 %v1955, %v1958
    %1962 = vrot.lane.b32.xlu0 %v1956, 64
    %v1963 = vpop.permute.xlu0 %1962
    %v1965 = vmul.f32 %v1955, %v1963
    %1967 = vrot.lane.b32.xlu0 %v1965, 32
    %v1968 = vpop.permute.xlu0 %1967
    %v1970 = vadd.f32 %v1960, %v1968
    %v1971 = vtanh.pop %v1970
    %1973 = vrot.lane.b32.xlu0 %v1971, 64
    %v1974 = vpop.permute.xlu0 %1973
    %v1976 = vmul.f32 %v1955, %v1974
    %1978 = vrot.lane.b32.xlu0 %v1976, 32
    %v1979 = vpop.permute.xlu0 %1978
    %v1981 = vrot.slane %v1763, 6
    %1982 = vrot.lane.b32.xlu0 %v1981, 64
    %v1983 = vpop.permute.xlu0 %1982
    %v1985 = vsel %vm132, %v1979, %v1983
    %v1987 = vrot.slane %v1985, 2
    %v1988 = vsel %vm366, %v1987, 0
    %1990 = vmatprep.subr.mxu0 0.0
    %1991 = vmatpush1.msra.mxu0 %v218
    %1992 = vmatprep.subr.mxu0 0.0
    %1993 = vmatpush1.msra.mxu0 %v219
    %1994 = vmatprep.subr.mxu0 0.0
    %1995 = vmatpush1.msra.mxu0 %v220
    %1996 = vmatprep.subr.mxu0 0.0
    %1997 = vmatpush1.msra.mxu0 %v221
    %1998 = vmatprep.subr.mxu0 0.0
    %1999 = vmatpush1.msra.mxu0 %v222
    %2000 = vmatprep.subr.mxu0 0.0
    %2001 = vmatpush1.msra.mxu0 %v223
    %2002 = vmatprep.subr.mxu0 0.0
    %2003 = vmatpush1.msra.mxu0 %v224
    %2004 = vmatprep.subr.mxu0 0.0
    %2005 = vmatpush1.msra.mxu0 %v225
    %2006 = vmatprep.subr.mxu0 0.0
    %2007 = vmatpush1.msra.mxu0 0.0
    %2008 = vmatprep.subr.mxu0 0.0
    %2009 = vmatpush1.msra.mxu0 0.0
    %2010 = vmatprep.subr.mxu0 0.0
    %2011 = vmatpush1.msra.mxu0 0.0
    %2012 = vmatprep.subr.mxu0 0.0
    %2013 = vmatpush1.msra.mxu0 0.0
    %2014 = vmatprep.subr.mxu0 0.0
    %2015 = vmatpush1.msra.mxu0 0.0
    %2016 = vmatprep.subr.mxu0 0.0
    %2017 = vmatpush1.msra.mxu0 0.0
    %2018 = vmatprep.subr.mxu0 0.0
    %2019 = vmatpush1.msra.mxu0 0.0
    %2020 = vmatprep.subr.mxu0 0.0
    %2021 = vmatpush1.msra.mxu0 0.0
    %2022 = vmatprep.subr.mxu0 0.0
    %2023 = vmatpush1.msra.mxu0 0.0
    %2024 = vmatprep.subr.mxu0 0.0
    %2025 = vmatpush1.msra.mxu0 0.0
    %2026 = vmatprep.subr.mxu0 0.0
    %2027 = vmatpush1.msra.mxu0 0.0
    %2028 = vmatprep.subr.mxu0 0.0
    %2029 = vmatpush1.msra.mxu0 0.0
    %2030 = vmatprep.subr.mxu0 0.0
    %2031 = vmatpush1.msra.mxu0 0.0
    %2032 = vmatprep.subr.mxu0 0.0
    %2033 = vmatpush1.msra.mxu0 0.0
    %2034 = vmatprep.subr.mxu0 0.0
    %2035 = vmatpush1.msra.mxu0 0.0
    %2036 = vmatprep.subr.mxu0 0.0
    %2037 = vmatpush1.msra.mxu0 0.0
    %2038 = vmatprep.subr.mxu0 0.0
    %2039 = vmatpush1.msra.mxu0 0.0
    %2040 = vmatprep.subr.mxu0 0.0
    %2041 = vmatpush1.msra.mxu0 0.0
    %2042 = vmatprep.subr.mxu0 0.0
    %2043 = vmatpush1.msra.mxu0 0.0
    %2044 = vmatprep.subr.mxu0 0.0
    %2045 = vmatpush1.msra.mxu0 0.0
    %2046 = vmatprep.subr.mxu0 0.0
    %2047 = vmatpush1.msra.mxu0 0.0
    %2048 = vmatprep.subr.mxu0 0.0
    %2049 = vmatpush1.msra.mxu0 0.0
    %2050 = vmatprep.subr.mxu0 0.0
    %2051 = vmatpush1.msra.mxu0 0.0
    %2052 = vmatprep.subr.mxu0 0.0
    %2053 = vmatpush1.msra.mxu0 0.0
    %2054 = vmatprep.mubr.f32.mxu0 0.0
    %2055 = vmatmul.mubr.f32.gmra.mrb[0].mxu0 %v1988
    %v2056 = vpop.f32.mrb[0].mxu0
    %v2057 = vadd.f32 %v364, %v2056
    %v2058 = vpop.f32.mrb[0].mxu0
    %2059 = vdwg.mxu0
    %v2060 = vxor.u32 %v2057, 2147483648
    %v2061 = vmul.f32 %v2060, 1.442695
    %v2062 = vpow.pop %v2061
    %v2063 = vadd.f32 %v2062, 1.0
    %v2064 = vrcp.pop %v2063
    %v2065 = vmul.f32 1.0, %v2064
    %v2066 = vtanh.pop %v2057
    %v2067 = vmul.f32 %v2065, %v1757
    %2069 = vrot.lane.b32.xlu0 %v2066, 64
    %v2070 = vpop.permute.xlu0 %2069
    %v2072 = vmul.f32 %v2065, %v2070
    %2074 = vrot.lane.b32.xlu0 %v2072, 32
    %v2075 = vpop.permute.xlu0 %2074
    %v2077 = vadd.f32 %v2067, %v2075
    %v2078 = vtanh.pop %v2077
    %2080 = vrot.lane.b32.xlu0 %v2078, 64
    %v2081 = vpop.permute.xlu0 %2080
    %v2083 = vmul.f32 %v2065, %v2081
    %2085 = vrot.lane.b32.xlu0 %v2083, 32
    %v2086 = vpop.permute.xlu0 %2085
    %2088 = vrot.lane.b32.xlu0 %v1868, 64
    %v2089 = vpop.permute.xlu0 %2088
    %v2091 = vsel %vm132, %v2086, %v2089
    %v2093 = vsel %vm366, %v2091, 0
    %2095 = vmatprep.subr.mxu0 0.0
    %2096 = vmatpush1.msra.mxu0 %v227
    %2097 = vmatprep.subr.mxu0 0.0
    %2098 = vmatpush1.msra.mxu0 %v228
    %2099 = vmatprep.subr.mxu0 0.0
    %2100 = vmatpush1.msra.mxu0 %v229
    %2101 = vmatprep.subr.mxu0 0.0
    %2102 = vmatpush1.msra.mxu0 %v230
    %2103 = vmatprep.subr.mxu0 0.0
    %2104 = vmatpush1.msra.mxu0 %v231
    %2105 = vmatprep.subr.mxu0 0.0
    %2106 = vmatpush1.msra.mxu0 %v232
    %2107 = vmatprep.subr.mxu0 0.0
    %2108 = vmatpush1.msra.mxu0 %v233
    %2109 = vmatprep.subr.mxu0 0.0
    %2110 = vmatpush1.msra.mxu0 %v234
    %2111 = vmatprep.subr.mxu0 0.0
    %2112 = vmatpush1.msra.mxu0 0.0
    %2113 = vmatprep.subr.mxu0 0.0
    %2114 = vmatpush1.msra.mxu0 0.0
    %2115 = vmatprep.subr.mxu0 0.0
    %2116 = vmatpush1.msra.mxu0 0.0
    %2117 = vmatprep.subr.mxu0 0.0
    %2118 = vmatpush1.msra.mxu0 0.0
    %2119 = vmatprep.subr.mxu0 0.0
    %2120 = vmatpush1.msra.mxu0 0.0
    %2121 = vmatprep.subr.mxu0 0.0
    %2122 = vmatpush1.msra.mxu0 0.0
    %2123 = vmatprep.subr.mxu0 0.0
    %2124 = vmatpush1.msra.mxu0 0.0
    %2125 = vmatprep.subr.mxu0 0.0
    %2126 = vmatpush1.msra.mxu0 0.0
    %2127 = vmatprep.subr.mxu0 0.0
    %2128 = vmatpush1.msra.mxu0 0.0
    %2129 = vmatprep.subr.mxu0 0.0
    %2130 = vmatpush1.msra.mxu0 0.0
    %2131 = vmatprep.subr.mxu0 0.0
    %2132 = vmatpush1.msra.mxu0 0.0
    %2133 = vmatprep.subr.mxu0 0.0
    %2134 = vmatpush1.msra.mxu0 0.0
    %2135 = vmatprep.subr.mxu0 0.0
    %2136 = vmatpush1.msra.mxu0 0.0
    %2137 = vmatprep.subr.mxu0 0.0
    %2138 = vmatpush1.msra.mxu0 0.0
    %2139 = vmatprep.subr.mxu0 0.0
    %2140 = vmatpush1.msra.mxu0 0.0
    %2141 = vmatprep.subr.mxu0 0.0
    %2142 = vmatpush1.msra.mxu0 0.0
    %2143 = vmatprep.subr.mxu0 0.0
    %2144 = vmatpush1.msra.mxu0 0.0
    %2145 = vmatprep.subr.mxu0 0.0
    %2146 = vmatpush1.msra.mxu0 0.0
    %2147 = vmatprep.subr.mxu0 0.0
    %2148 = vmatpush1.msra.mxu0 0.0
    %2149 = vmatprep.subr.mxu0 0.0
    %2150 = vmatpush1.msra.mxu0 0.0
    %2151 = vmatprep.subr.mxu0 0.0
    %2152 = vmatpush1.msra.mxu0 0.0
    %2153 = vmatprep.subr.mxu0 0.0
    %2154 = vmatpush1.msra.mxu0 0.0
    %2155 = vmatprep.subr.mxu0 0.0
    %2156 = vmatpush1.msra.mxu0 0.0
    %2157 = vmatprep.subr.mxu0 0.0
    %2158 = vmatpush1.msra.mxu0 0.0
    %2159 = vmatprep.mubr.f32.mxu0 0.0
    %2160 = vmatmul.mubr.f32.gmra.mrb[0].mxu0 %v2093
    %v2161 = vpop.f32.mrb[0].mxu0
    %v2162 = vadd.f32 %v481, %v2161
    %v2163 = vpop.f32.mrb[0].mxu0
    %2164 = vdwg.mxu0
    %v2165 = vxor.u32 %v2162, 2147483648
    %v2166 = vmul.f32 %v2165, 1.442695
    %v2167 = vpow.pop %v2166
    %v2168 = vadd.f32 %v2167, 1.0
    %v2169 = vrcp.pop %v2168
    %v2170 = vmul.f32 1.0, %v2169
    %v2171 = vtanh.pop %v2162
    %v2172 = vmul.f32 %v2170, %v1862
    %2174 = vrot.lane.b32.xlu0 %v2171, 64
    %v2175 = vpop.permute.xlu0 %2174
    %v2177 = vmul.f32 %v2170, %v2175
    %2179 = vrot.lane.b32.xlu0 %v2177, 32
    %v2180 = vpop.permute.xlu0 %2179
    %v2182 = vadd.f32 %v2172, %v2180
    %v2183 = vtanh.pop %v2182
    %2185 = vrot.lane.b32.xlu0 %v2183, 64
    %v2186 = vpop.permute.xlu0 %2185
    %v2188 = vmul.f32 %v2170, %v2186
    %2190 = vrot.lane.b32.xlu0 %v2188, 32
    %v2191 = vpop.permute.xlu0 %2190
    %2193 = vst.msk [vmem:[#allocation2 + $0xa] sm:$0x3] %vm588, %v2191
    %v2194 = vrot.slane %v1976, 2
    %2195 = vrot.lane.b32.xlu0 %v2194, 32
    %v2196 = vpop.permute.xlu0 %2195
    %v2197 = vsel %vm132, %v2196, 0
    %2199 = vmatprep.subr.mxu0 0.0
    %2200 = vmatpush1.msra.mxu0 %v214
    %2201 = vmatprep.subr.mxu0 0.0
    %2202 = vmatpush1.msra.mxu0 %v215
    %2203 = vmatprep.subr.mxu0 0.0
    %2204 = vmatpush1.msra.mxu0 %v216
    %2205 = vmatprep.subr.mxu0 0.0
    %2206 = vmatpush1.msra.mxu0 %v217
    %2207 = vmatprep.subr.mxu0 0.0
    %2208 = vmatpush1.msra.mxu0 0.0
    %2209 = vmatprep.subr.mxu0 0.0
    %2210 = vmatpush1.msra.mxu0 0.0
    %2211 = vmatprep.subr.mxu0 0.0
    %2212 = vmatpush1.msra.mxu0 0.0
    %2213 = vmatprep.subr.mxu0 0.0
    %2214 = vmatpush1.msra.mxu0 0.0
    %2215 = vmatprep.subr.mxu0 0.0
    %2216 = vmatpush1.msra.mxu0 0.0
    %2217 = vmatprep.subr.mxu0 0.0
    %2218 = vmatpush1.msra.mxu0 0.0
    %2219 = vmatprep.subr.mxu0 0.0
    %2220 = vmatpush1.msra.mxu0 0.0
    %2221 = vmatprep.subr.mxu0 0.0
    %2222 = vmatpush1.msra.mxu0 0.0
    %2223 = vmatprep.subr.mxu0 0.0
    %2224 = vmatpush1.msra.mxu0 0.0
    %2225 = vmatprep.subr.mxu0 0.0
    %2226 = vmatpush1.msra.mxu0 0.0
    %2227 = vmatprep.subr.mxu0 0.0
    %2228 = vmatpush1.msra.mxu0 0.0
    %2229 = vmatprep.subr.mxu0 0.0
    %2230 = vmatpush1.msra.mxu0 0.0
    %2231 = vmatprep.subr.mxu0 0.0
    %2232 = vmatpush1.msra.mxu0 0.0
    %2233 = vmatprep.subr.mxu0 0.0
    %2234 = vmatpush1.msra.mxu0 0.0
    %2235 = vmatprep.subr.mxu0 0.0
    %2236 = vmatpush1.msra.mxu0 0.0
    %2237 = vmatprep.subr.mxu0 0.0
    %2238 = vmatpush1.msra.mxu0 0.0
    %2239 = vmatprep.subr.mxu0 0.0
    %2240 = vmatpush1.msra.mxu0 0.0
    %2241 = vmatprep.subr.mxu0 0.0
    %2242 = vmatpush1.msra.mxu0 0.0
    %2243 = vmatprep.subr.mxu0 0.0
    %2244 = vmatpush1.msra.mxu0 0.0
    %2245 = vmatprep.subr.mxu0 0.0
    %2246 = vmatpush1.msra.mxu0 0.0
    %2247 = vmatprep.subr.mxu0 0.0
    %2248 = vmatpush1.msra.mxu0 0.0
    %2249 = vmatprep.subr.mxu0 0.0
    %2250 = vmatpush1.msra.mxu0 0.0
    %2251 = vmatprep.subr.mxu0 0.0
    %2252 = vmatpush1.msra.mxu0 0.0
    %2253 = vmatprep.subr.mxu0 0.0
    %2254 = vmatpush1.msra.mxu0 0.0
    %2255 = vmatprep.subr.mxu0 0.0
    %2256 = vmatpush1.msra.mxu0 0.0
    %2257 = vmatprep.subr.mxu0 0.0
    %2258 = vmatpush1.msra.mxu0 0.0
    %2259 = vmatprep.subr.mxu0 0.0
    %2260 = vmatpush1.msra.mxu0 0.0
    %2261 = vmatprep.subr.mxu0 0.0
    %2262 = vmatpush1.msra.mxu0 0.0
    %2263 = vmatprep.mubr.f32.mxu0 0.0
    %2264 = vmatmul.mubr.f32.gmra.mrb[0].mxu0 %v2197
    %v2265 = vpop.f32.mrb[0].mxu0
    %v2266 = vadd.f32 0.0, %v2265
    %v2267 = vpop.f32.mrb[0].mxu0
    %2268 = vdwg.mxu0
    %v2270 = vrot.slane %v2266, 4
    %v2272 = vadd.f32 %v211, %v2270
    %v2273 = vxor.u32 %v2272, 2147483648
    %v2274 = vmul.f32 %v2273, 1.442695
    %v2275 = vpow.pop %v2274
    %v2276 = vadd.f32 %v2275, 1.0
    %v2277 = vrcp.pop %v2276
    %v2278 = vmul.f32 1.0, %v2277
    %v2279 = vtanh.pop %v2272
    %v2281 = vrot.slane %v1970, 6
    %v2283 = vmul.f32 %v2278, %v2281
    %2285 = vrot.lane.b32.xlu0 %v2279, 64
    %v2286 = vpop.permute.xlu0 %2285
    %v2288 = vmul.f32 %v2278, %v2286
    %2290 = vrot.lane.b32.xlu0 %v2288, 32
    %v2291 = vpop.permute.xlu0 %2290
    %v2293 = vadd.f32 %v2283, %v2291
    %v2294 = vtanh.pop %v2293
    %2296 = vrot.lane.b32.xlu0 %v2294, 64
    %v2297 = vpop.permute.xlu0 %2296
    %v2299 = vmul.f32 %v2278, %v2297
    %2301 = vrot.lane.b32.xlu0 %v2299, 32
    %v2302 = vpop.permute.xlu0 %2301
    %v2304 = vrot.slane %v2083, 4
    %2305 = vrot.lane.b32.xlu0 %v2304, 64
    %v2306 = vpop.permute.xlu0 %2305
    %v2308 = vsel %vm132, %v2302, %v2306
    %v2310 = vrot.slane %v2308, 4
    %v2311 = vsel %vm366, %v2310, 0
    %2313 = vmatprep.subr.mxu0 0.0
    %2314 = vmatpush1.msra.mxu0 %v218
    %2315 = vmatprep.subr.mxu0 0.0
    %2316 = vmatpush1.msra.mxu0 %v219
    %2317 = vmatprep.subr.mxu0 0.0
    %2318 = vmatpush1.msra.mxu0 %v220
    %2319 = vmatprep.subr.mxu0 0.0
    %2320 = vmatpush1.msra.mxu0 %v221
    %2321 = vmatprep.subr.mxu0 0.0
    %2322 = vmatpush1.msra.mxu0 %v222
    %2323 = vmatprep.subr.mxu0 0.0
    %2324 = vmatpush1.msra.mxu0 %v223
    %2325 = vmatprep.subr.mxu0 0.0
    %2326 = vmatpush1.msra.mxu0 %v224
    %2327 = vmatprep.subr.mxu0 0.0
    %2328 = vmatpush1.msra.mxu0 %v225
    %2329 = vmatprep.subr.mxu0 0.0
    %2330 = vmatpush1.msra.mxu0 0.0
    %2331 = vmatprep.subr.mxu0 0.0
    %2332 = vmatpush1.msra.mxu0 0.0
    %2333 = vmatprep.subr.mxu0 0.0
    %2334 = vmatpush1.msra.mxu0 0.0
    %2335 = vmatprep.subr.mxu0 0.0
    %2336 = vmatpush1.msra.mxu0 0.0
    %2337 = vmatprep.subr.mxu0 0.0
    %2338 = vmatpush1.msra.mxu0 0.0
    %2339 = vmatprep.subr.mxu0 0.0
    %2340 = vmatpush1.msra.mxu0 0.0
    %2341 = vmatprep.subr.mxu0 0.0
    %2342 = vmatpush1.msra.mxu0 0.0
    %2343 = vmatprep.subr.mxu0 0.0
    %2344 = vmatpush1.msra.mxu0 0.0
    %2345 = vmatprep.subr.mxu0 0.0
    %2346 = vmatpush1.msra.mxu0 0.0
    %2347 = vmatprep.subr.mxu0 0.0
    %2348 = vmatpush1.msra.mxu0 0.0
    %2349 = vmatprep.subr.mxu0 0.0
    %2350 = vmatpush1.msra.mxu0 0.0
    %2351 = vmatprep.subr.mxu0 0.0
    %2352 = vmatpush1.msra.mxu0 0.0
    %2353 = vmatprep.subr.mxu0 0.0
    %2354 = vmatpush1.msra.mxu0 0.0
    %2355 = vmatprep.subr.mxu0 0.0
    %2356 = vmatpush1.msra.mxu0 0.0
    %2357 = vmatprep.subr.mxu0 0.0
    %2358 = vmatpush1.msra.mxu0 0.0
    %2359 = vmatprep.subr.mxu0 0.0
    %2360 = vmatpush1.msra.mxu0 0.0
    %2361 = vmatprep.subr.mxu0 0.0
    %2362 = vmatpush1.msra.mxu0 0.0
    %2363 = vmatprep.subr.mxu0 0.0
    %2364 = vmatpush1.msra.mxu0 0.0
    %2365 = vmatprep.subr.mxu0 0.0
    %2366 = vmatpush1.msra.mxu0 0.0
    %2367 = vmatprep.subr.mxu0 0.0
    %2368 = vmatpush1.msra.mxu0 0.0
    %2369 = vmatprep.subr.mxu0 0.0
    %2370 = vmatpush1.msra.mxu0 0.0
    %2371 = vmatprep.subr.mxu0 0.0
    %2372 = vmatpush1.msra.mxu0 0.0
    %2373 = vmatprep.subr.mxu0 0.0
    %2374 = vmatpush1.msra.mxu0 0.0
    %2375 = vmatprep.subr.mxu0 0.0
    %2376 = vmatpush1.msra.mxu0 0.0
    %2377 = vmatprep.mubr.f32.mxu0 0.0
    %2378 = vmatmul.mubr.f32.gmra.mrb[0].mxu0 %v2311
    %v2379 = vpop.f32.mrb[0].mxu0
    %v2380 = vadd.f32 %v364, %v2379
    %v2381 = vpop.f32.mrb[0].mxu0
    %2382 = vdwg.mxu0
    %v2383 = vxor.u32 %v2380, 2147483648
    %v2384 = vmul.f32 %v2383, 1.442695
    %v2385 = vpow.pop %v2384
    %v2386 = vadd.f32 %v2385, 1.0
    %v2387 = vrcp.pop %v2386
    %v2388 = vmul.f32 1.0, %v2387
    %v2389 = vtanh.pop %v2380
    %v2390 = vmul.f32 %v2388, %v2077
    %2392 = vrot.lane.b32.xlu0 %v2389, 64
    %v2393 = vpop.permute.xlu0 %2392
    %v2395 = vmul.f32 %v2388, %v2393
    %2397 = vrot.lane.b32.xlu0 %v2395, 32
    %v2398 = vpop.permute.xlu0 %2397
    %v2400 = vadd.f32 %v2390, %v2398
    %v2401 = vtanh.pop %v2400
    %2403 = vrot.lane.b32.xlu0 %v2401, 64
    %v2404 = vpop.permute.xlu0 %2403
    %v2406 = vmul.f32 %v2388, %v2404
    %2408 = vrot.lane.b32.xlu0 %v2406, 32
    %v2409 = vpop.permute.xlu0 %2408
    %2411 = vrot.lane.b32.xlu0 %v2188, 64
    %v2412 = vpop.permute.xlu0 %2411
    %v2414 = vsel %vm132, %v2409, %v2412
    %v2416 = vsel %vm366, %v2414, 0
    %2418 = vmatprep.subr.mxu0 0.0
    %2419 = vmatpush1.msra.mxu0 %v227
    %2420 = vmatprep.subr.mxu0 0.0
    %2421 = vmatpush1.msra.mxu0 %v228
    %2422 = vmatprep.subr.mxu0 0.0
    %2423 = vmatpush1.msra.mxu0 %v229
    %2424 = vmatprep.subr.mxu0 0.0
    %2425 = vmatpush1.msra.mxu0 %v230
    %2426 = vmatprep.subr.mxu0 0.0
    %2427 = vmatpush1.msra.mxu0 %v231
    %2428 = vmatprep.subr.mxu0 0.0
    %2429 = vmatpush1.msra.mxu0 %v232
    %2430 = vmatprep.subr.mxu0 0.0
    %2431 = vmatpush1.msra.mxu0 %v233
    %2432 = vmatprep.subr.mxu0 0.0
    %2433 = vmatpush1.msra.mxu0 %v234
    %2434 = vmatprep.subr.mxu0 0.0
    %2435 = vmatpush1.msra.mxu0 0.0
    %2436 = vmatprep.subr.mxu0 0.0
    %2437 = vmatpush1.msra.mxu0 0.0
    %2438 = vmatprep.subr.mxu0 0.0
    %2439 = vmatpush1.msra.mxu0 0.0
    %2440 = vmatprep.subr.mxu0 0.0
    %2441 = vmatpush1.msra.mxu0 0.0
    %2442 = vmatprep.subr.mxu0 0.0
    %2443 = vmatpush1.msra.mxu0 0.0
    %2444 = vmatprep.subr.mxu0 0.0
    %2445 = vmatpush1.msra.mxu0 0.0
    %2446 = vmatprep.subr.mxu0 0.0
    %2447 = vmatpush1.msra.mxu0 0.0
    %2448 = vmatprep.subr.mxu0 0.0
    %2449 = vmatpush1.msra.mxu0 0.0
    %2450 = vmatprep.subr.mxu0 0.0
    %2451 = vmatpush1.msra.mxu0 0.0
    %2452 = vmatprep.subr.mxu0 0.0
    %2453 = vmatpush1.msra.mxu0 0.0
    %2454 = vmatprep.subr.mxu0 0.0
    %2455 = vmatpush1.msra.mxu0 0.0
    %2456 = vmatprep.subr.mxu0 0.0
    %2457 = vmatpush1.msra.mxu0 0.0
    %2458 = vmatprep.subr.mxu0 0.0
    %2459 = vmatpush1.msra.mxu0 0.0
    %2460 = vmatprep.subr.mxu0 0.0
    %2461 = vmatpush1.msra.mxu0 0.0
    %2462 = vmatprep.subr.mxu0 0.0
    %2463 = vmatpush1.msra.mxu0 0.0
    %2464 = vmatprep.subr.mxu0 0.0
    %2465 = vmatpush1.msra.mxu0 0.0
    %2466 = vmatprep.subr.mxu0 0.0
    %2467 = vmatpush1.msra.mxu0 0.0
    %2468 = vmatprep.subr.mxu0 0.0
    %2469 = vmatpush1.msra.mxu0 0.0
    %2470 = vmatprep.subr.mxu0 0.0
    %2471 = vmatpush1.msra.mxu0 0.0
    %2472 = vmatprep.subr.mxu0 0.0
    %2473 = vmatpush1.msra.mxu0 0.0
    %2474 = vmatprep.subr.mxu0 0.0
    %2475 = vmatpush1.msra.mxu0 0.0
    %2476 = vmatprep.subr.mxu0 0.0
    %2477 = vmatpush1.msra.mxu0 0.0
    %2478 = vmatprep.subr.mxu0 0.0
    %2479 = vmatpush1.msra.mxu0 0.0
    %2480 = vmatprep.subr.mxu0 0.0
    %2481 = vmatpush1.msra.mxu0 0.0
    %2482 = vmatprep.mubr.f32.mxu0 0.0
    %2483 = vmatmul.mubr.f32.gmra.mrb[0].mxu0 %v2416
    %v2484 = vpop.f32.mrb[0].mxu0
    %v2485 = vadd.f32 %v481, %v2484
    %v2486 = vpop.f32.mrb[0].mxu0
    %2487 = vdwg.mxu0
    %v2488 = vxor.u32 %v2485, 2147483648
    %v2489 = vmul.f32 %v2488, 1.442695
    %v2490 = vpow.pop %v2489
    %v2491 = vadd.f32 %v2490, 1.0
    %v2492 = vrcp.pop %v2491
    %v2493 = vmul.f32 1.0, %v2492
    %v2494 = vtanh.pop %v2485
    %v2495 = vmul.f32 %v2493, %v2182
    %2497 = vrot.lane.b32.xlu0 %v2494, 64
    %v2498 = vpop.permute.xlu0 %2497
    %v2500 = vmul.f32 %v2493, %v2498
    %2502 = vrot.lane.b32.xlu0 %v2500, 32
    %v2503 = vpop.permute.xlu0 %2502
    %v2505 = vadd.f32 %v2495, %v2503
    %v2506 = vtanh.pop %v2505
    %2508 = vrot.lane.b32.xlu0 %v2506, 64
    %v2509 = vpop.permute.xlu0 %2508
    %v2511 = vmul.f32 %v2493, %v2509
    %2513 = vrot.lane.b32.xlu0 %v2511, 32
    %v2514 = vpop.permute.xlu0 %2513
    %2516 = vst.msk [vmem:[#allocation2 + $0xc] sm:$0x3] %vm588, %v2514
    %v2517 = vrot.slane %v2299, 4
    %2518 = vrot.lane.b32.xlu0 %v2517, 32
    %v2519 = vpop.permute.xlu0 %2518
    %v2520 = vsel %vm132, %v2519, 0
    %2522 = vmatprep.subr.mxu0 0.0
    %2523 = vmatpush1.msra.mxu0 %v214
    %2524 = vmatprep.subr.mxu0 0.0
    %2525 = vmatpush1.msra.mxu0 %v215
    %2526 = vmatprep.subr.mxu0 0.0
    %2527 = vmatpush1.msra.mxu0 %v216
    %2528 = vmatprep.subr.mxu0 0.0
    %2529 = vmatpush1.msra.mxu0 %v217
    %2530 = vmatprep.subr.mxu0 0.0
    %2531 = vmatpush1.msra.mxu0 0.0
    %2532 = vmatprep.subr.mxu0 0.0
    %2533 = vmatpush1.msra.mxu0 0.0
    %2534 = vmatprep.subr.mxu0 0.0
    %2535 = vmatpush1.msra.mxu0 0.0
    %2536 = vmatprep.subr.mxu0 0.0
    %2537 = vmatpush1.msra.mxu0 0.0
    %2538 = vmatprep.subr.mxu0 0.0
    %2539 = vmatpush1.msra.mxu0 0.0
    %2540 = vmatprep.subr.mxu0 0.0
    %2541 = vmatpush1.msra.mxu0 0.0
    %2542 = vmatprep.subr.mxu0 0.0
    %2543 = vmatpush1.msra.mxu0 0.0
    %2544 = vmatprep.subr.mxu0 0.0
    %2545 = vmatpush1.msra.mxu0 0.0
    %2546 = vmatprep.subr.mxu0 0.0
    %2547 = vmatpush1.msra.mxu0 0.0
    %2548 = vmatprep.subr.mxu0 0.0
    %2549 = vmatpush1.msra.mxu0 0.0
    %2550 = vmatprep.subr.mxu0 0.0
    %2551 = vmatpush1.msra.mxu0 0.0
    %2552 = vmatprep.subr.mxu0 0.0
    %2553 = vmatpush1.msra.mxu0 0.0
    %2554 = vmatprep.subr.mxu0 0.0
    %2555 = vmatpush1.msra.mxu0 0.0
    %2556 = vmatprep.subr.mxu0 0.0
    %2557 = vmatpush1.msra.mxu0 0.0
    %2558 = vmatprep.subr.mxu0 0.0
    %2559 = vmatpush1.msra.mxu0 0.0
    %2560 = vmatprep.subr.mxu0 0.0
    %2561 = vmatpush1.msra.mxu0 0.0
    %2562 = vmatprep.subr.mxu0 0.0
    %2563 = vmatpush1.msra.mxu0 0.0
    %2564 = vmatprep.subr.mxu0 0.0
    %2565 = vmatpush1.msra.mxu0 0.0
    %2566 = vmatprep.subr.mxu0 0.0
    %2567 = vmatpush1.msra.mxu0 0.0
    %2568 = vmatprep.subr.mxu0 0.0
    %2569 = vmatpush1.msra.mxu0 0.0
    %2570 = vmatprep.subr.mxu0 0.0
    %2571 = vmatpush1.msra.mxu0 0.0
    %2572 = vmatprep.subr.mxu0 0.0
    %2573 = vmatpush1.msra.mxu0 0.0
    %2574 = vmatprep.subr.mxu0 0.0
    %2575 = vmatpush1.msra.mxu0 0.0
    %2576 = vmatprep.subr.mxu0 0.0
    %2577 = vmatpush1.msra.mxu0 0.0
    %2578 = vmatprep.subr.mxu0 0.0
    %2579 = vmatpush1.msra.mxu0 0.0
    %2580 = vmatprep.subr.mxu0 0.0
    %2581 = vmatpush1.msra.mxu0 0.0
    %2582 = vmatprep.subr.mxu0 0.0
    %2583 = vmatpush1.msra.mxu0 0.0
    %2584 = vmatprep.subr.mxu0 0.0
    %2585 = vmatpush1.msra.mxu0 0.0
    %2586 = vmatprep.mubr.f32.mxu0 0.0
    %2587 = vmatmul.mubr.f32.gmra.mrb[0].mxu0 %v2520
    %v2588 = vpop.f32.mrb[0].mxu0
    %v2589 = vadd.f32 0.0, %v2588
    %v2590 = vpop.f32.mrb[0].mxu0
    %2591 = vdwg.mxu0
    %v2593 = vrot.slane %v2589, 2
    %v2595 = vadd.f32 %v211, %v2593
    %v2596 = vxor.u32 %v2595, 2147483648
    %v2597 = vmul.f32 %v2596, 1.442695
    %v2598 = vpow.pop %v2597
    %v2599 = vadd.f32 %v2598, 1.0
    %v2600 = vrcp.pop %v2599
    %v2601 = vmul.f32 1.0, %v2600
    %v2602 = vtanh.pop %v2595
    %v2604 = vrot.slane %v2293, 6
    %v2606 = vmul.f32 %v2601, %v2604
    %2608 = vrot.lane.b32.xlu0 %v2602, 64
    %v2609 = vpop.permute.xlu0 %2608
    %v2611 = vmul.f32 %v2601, %v2609
    %2613 = vrot.lane.b32.xlu0 %v2611, 32
    %v2614 = vpop.permute.xlu0 %2613
    %v2616 = vadd.f32 %v2606, %v2614
    %v2617 = vtanh.pop %v2616
    %2619 = vrot.lane.b32.xlu0 %v2617, 64
    %v2620 = vpop.permute.xlu0 %2619
    %v2622 = vmul.f32 %v2601, %v2620
    %2624 = vrot.lane.b32.xlu0 %v2622, 32
    %v2625 = vpop.permute.xlu0 %2624
    %v2627 = vrot.slane %v2406, 2
    %2628 = vrot.lane.b32.xlu0 %v2627, 64
    %v2629 = vpop.permute.xlu0 %2628
    %v2631 = vsel %vm132, %v2625, %v2629
    %v2633 = vrot.slane %v2631, 6
    %v2634 = vsel %vm366, %v2633, 0
    %2636 = vmatprep.subr.mxu0 0.0
    %2637 = vmatpush1.msra.mxu0 %v218
    %2638 = vmatprep.subr.mxu0 0.0
    %2639 = vmatpush1.msra.mxu0 %v219
    %2640 = vmatprep.subr.mxu0 0.0
    %2641 = vmatpush1.msra.mxu0 %v220
    %2642 = vmatprep.subr.mxu0 0.0
    %2643 = vmatpush1.msra.mxu0 %v221
    %2644 = vmatprep.subr.mxu0 0.0
    %2645 = vmatpush1.msra.mxu0 %v222
    %2646 = vmatprep.subr.mxu0 0.0
    %2647 = vmatpush1.msra.mxu0 %v223
    %2648 = vmatprep.subr.mxu0 0.0
    %2649 = vmatpush1.msra.mxu0 %v224
    %2650 = vmatprep.subr.mxu0 0.0
    %2651 = vmatpush1.msra.mxu0 %v225
    %2652 = vmatprep.subr.mxu0 0.0
    %2653 = vmatpush1.msra.mxu0 0.0
    %2654 = vmatprep.subr.mxu0 0.0
    %2655 = vmatpush1.msra.mxu0 0.0
    %2656 = vmatprep.subr.mxu0 0.0
    %2657 = vmatpush1.msra.mxu0 0.0
    %2658 = vmatprep.subr.mxu0 0.0
    %2659 = vmatpush1.msra.mxu0 0.0
    %2660 = vmatprep.subr.mxu0 0.0
    %2661 = vmatpush1.msra.mxu0 0.0
    %2662 = vmatprep.subr.mxu0 0.0
    %2663 = vmatpush1.msra.mxu0 0.0
    %2664 = vmatprep.subr.mxu0 0.0
    %2665 = vmatpush1.msra.mxu0 0.0
    %2666 = vmatprep.subr.mxu0 0.0
    %2667 = vmatpush1.msra.mxu0 0.0
    %2668 = vmatprep.subr.mxu0 0.0
    %2669 = vmatpush1.msra.mxu0 0.0
    %2670 = vmatprep.subr.mxu0 0.0
    %2671 = vmatpush1.msra.mxu0 0.0
    %2672 = vmatprep.subr.mxu0 0.0
    %2673 = vmatpush1.msra.mxu0 0.0
    %2674 = vmatprep.subr.mxu0 0.0
    %2675 = vmatpush1.msra.mxu0 0.0
    %2676 = vmatprep.subr.mxu0 0.0
    %2677 = vmatpush1.msra.mxu0 0.0
    %2678 = vmatprep.subr.mxu0 0.0
    %2679 = vmatpush1.msra.mxu0 0.0
    %2680 = vmatprep.subr.mxu0 0.0
    %2681 = vmatpush1.msra.mxu0 0.0
    %2682 = vmatprep.subr.mxu0 0.0
    %2683 = vmatpush1.msra.mxu0 0.0
    %2684 = vmatprep.subr.mxu0 0.0
    %2685 = vmatpush1.msra.mxu0 0.0
    %2686 = vmatprep.subr.mxu0 0.0
    %2687 = vmatpush1.msra.mxu0 0.0
    %2688 = vmatprep.subr.mxu0 0.0
    %2689 = vmatpush1.msra.mxu0 0.0
    %2690 = vmatprep.subr.mxu0 0.0
    %2691 = vmatpush1.msra.mxu0 0.0
    %2692 = vmatprep.subr.mxu0 0.0
    %2693 = vmatpush1.msra.mxu0 0.0
    %2694 = vmatprep.subr.mxu0 0.0
    %2695 = vmatpush1.msra.mxu0 0.0
    %2696 = vmatprep.subr.mxu0 0.0
    %2697 = vmatpush1.msra.mxu0 0.0
    %2698 = vmatprep.subr.mxu0 0.0
    %2699 = vmatpush1.msra.mxu0 0.0
    %2700 = vmatprep.mubr.f32.mxu0 0.0
    %2701 = vmatmul.mubr.f32.gmra.mrb[0].mxu0 %v2634
    %v2702 = vpop.f32.mrb[0].mxu0
    %v2703 = vadd.f32 %v364, %v2702
    %v2704 = vpop.f32.mrb[0].mxu0
    %2705 = vdwg.mxu0
    %v2706 = vxor.u32 %v2703, 2147483648
    %v2707 = vmul.f32 %v2706, 1.442695
    %v2708 = vpow.pop %v2707
    %v2709 = vadd.f32 %v2708, 1.0
    %v2710 = vrcp.pop %v2709
    %v2711 = vmul.f32 1.0, %v2710
    %v2712 = vtanh.pop %v2703
    %v2713 = vmul.f32 %v2711, %v2400
    %2715 = vrot.lane.b32.xlu0 %v2712, 64
    %v2716 = vpop.permute.xlu0 %2715
    %v2718 = vmul.f32 %v2711, %v2716
    %2720 = vrot.lane.b32.xlu0 %v2718, 32
    %v2721 = vpop.permute.xlu0 %2720
    %v2723 = vadd.f32 %v2713, %v2721
    %v2724 = vtanh.pop %v2723
    %2726 = vrot.lane.b32.xlu0 %v2724, 64
    %v2727 = vpop.permute.xlu0 %2726
    %v2729 = vmul.f32 %v2711, %v2727
    %2731 = vrot.lane.b32.xlu0 %v2729, 32
    %v2732 = vpop.permute.xlu0 %2731
    %2734 = vrot.lane.b32.xlu0 %v2511, 64
    %v2735 = vpop.permute.xlu0 %2734
    %v2737 = vsel %vm132, %v2732, %v2735
    %v2739 = vsel %vm366, %v2737, 0
    %2741 = vmatprep.subr.mxu0 0.0
    %2742 = vmatpush1.msra.mxu0 %v227
    %2743 = vmatprep.subr.mxu0 0.0
    %2744 = vmatpush1.msra.mxu0 %v228
    %2745 = vmatprep.subr.mxu0 0.0
    %2746 = vmatpush1.msra.mxu0 %v229
    %2747 = vmatprep.subr.mxu0 0.0
    %2748 = vmatpush1.msra.mxu0 %v230
    %2749 = vmatprep.subr.mxu0 0.0
    %2750 = vmatpush1.msra.mxu0 %v231
    %2751 = vmatprep.subr.mxu0 0.0
    %2752 = vmatpush1.msra.mxu0 %v232
    %2753 = vmatprep.subr.mxu0 0.0
    %2754 = vmatpush1.msra.mxu0 %v233
    %2755 = vmatprep.subr.mxu0 0.0
    %2756 = vmatpush1.msra.mxu0 %v234
    %2757 = vmatprep.subr.mxu0 0.0
    %2758 = vmatpush1.msra.mxu0 0.0
    %2759 = vmatprep.subr.mxu0 0.0
    %2760 = vmatpush1.msra.mxu0 0.0
    %2761 = vmatprep.subr.mxu0 0.0
    %2762 = vmatpush1.msra.mxu0 0.0
    %2763 = vmatprep.subr.mxu0 0.0
    %2764 = vmatpush1.msra.mxu0 0.0
    %2765 = vmatprep.subr.mxu0 0.0
    %2766 = vmatpush1.msra.mxu0 0.0
    %2767 = vmatprep.subr.mxu0 0.0
    %2768 = vmatpush1.msra.mxu0 0.0
    %2769 = vmatprep.subr.mxu0 0.0
    %2770 = vmatpush1.msra.mxu0 0.0
    %2771 = vmatprep.subr.mxu0 0.0
    %2772 = vmatpush1.msra.mxu0 0.0
    %2773 = vmatprep.subr.mxu0 0.0
    %2774 = vmatpush1.msra.mxu0 0.0
    %2775 = vmatprep.subr.mxu0 0.0
    %2776 = vmatpush1.msra.mxu0 0.0
    %2777 = vmatprep.subr.mxu0 0.0
    %2778 = vmatpush1.msra.mxu0 0.0
    %2779 = vmatprep.subr.mxu0 0.0
    %2780 = vmatpush1.msra.mxu0 0.0
    %2781 = vmatprep.subr.mxu0 0.0
    %2782 = vmatpush1.msra.mxu0 0.0
    %2783 = vmatprep.subr.mxu0 0.0
    %2784 = vmatpush1.msra.mxu0 0.0
    %2785 = vmatprep.subr.mxu0 0.0
    %2786 = vmatpush1.msra.mxu0 0.0
    %2787 = vmatprep.subr.mxu0 0.0
    %2788 = vmatpush1.msra.mxu0 0.0
    %2789 = vmatprep.subr.mxu0 0.0
    %2790 = vmatpush1.msra.mxu0 0.0
    %2791 = vmatprep.subr.mxu0 0.0
    %2792 = vmatpush1.msra.mxu0 0.0
    %2793 = vmatprep.subr.mxu0 0.0
    %2794 = vmatpush1.msra.mxu0 0.0
    %2795 = vmatprep.subr.mxu0 0.0
    %2796 = vmatpush1.msra.mxu0 0.0
    %2797 = vmatprep.subr.mxu0 0.0
    %2798 = vmatpush1.msra.mxu0 0.0
    %2799 = vmatprep.subr.mxu0 0.0
    %2800 = vmatpush1.msra.mxu0 0.0
    %2801 = vmatprep.subr.mxu0 0.0
    %2802 = vmatpush1.msra.mxu0 0.0
    %2803 = vmatprep.subr.mxu0 0.0
    %2804 = vmatpush1.msra.mxu0 0.0
    %2805 = vmatprep.mubr.f32.mxu0 0.0
    %2806 = vmatmul.mubr.f32.gmra.mrb[0].mxu0 %v2739
    %v2807 = vpop.f32.mrb[0].mxu0
    %v2808 = vadd.f32 %v481, %v2807
    %v2809 = vpop.f32.mrb[0].mxu0
    %2810 = vdwg.mxu0
    %v2811 = vxor.u32 %v2808, 2147483648
    %v2812 = vmul.f32 %v2811, 1.442695
    %v2813 = vpow.pop %v2812
    %v2814 = vadd.f32 %v2813, 1.0
    %v2815 = vrcp.pop %v2814
    %v2816 = vmul.f32 1.0, %v2815
    %v2817 = vtanh.pop %v2808
    %v2818 = vmul.f32 %v2816, %v2505
    %2820 = vrot.lane.b32.xlu0 %v2817, 64
    %v2821 = vpop.permute.xlu0 %2820
    %v2823 = vmul.f32 %v2816, %v2821
    %2825 = vrot.lane.b32.xlu0 %v2823, 32
    %v2826 = vpop.permute.xlu0 %2825
    %v2828 = vadd.f32 %v2818, %v2826
    %v2829 = vtanh.pop %v2828
    %2831 = vrot.lane.b32.xlu0 %v2829, 64
    %v2832 = vpop.permute.xlu0 %2831
    %v2834 = vmul.f32 %v2816, %v2832
    %2836 = vrot.lane.b32.xlu0 %v2834, 32
    %v2837 = vpop.permute.xlu0 %2836
    %2839 = vst.msk [vmem:[#allocation2 + $0xe] sm:$0x3] %vm588, %v2837
    %v2840 = vld [vmem:[#allocation2] sm:$0xff]
    %v2841 = vld [vmem:[#allocation2 + $0x8] sm:$0xff]
    %v2842 = vld [vmem:[#allocation12] sm:$0xff]
    %v2843 = vld [vmem:[#allocation12 + $0x8] sm:$0xff]
    %v2844 = vld [vmem:[#allocation12 + $0x10] sm:$0xff]
    %v2845 = vld [vmem:[#allocation12 + $0x18] sm:$0xff]
    %v2846 = vld [vmem:[%s8] sm:$0x1]
    %v2848 = vlaneseq
    %v2849 = vshrl.u32 %v2848, 7
    %v2850 = vsub.s32 0, %v2849
    %v2851 = vrot.slane %v2846, %v2850
    %v2854 = vsel %vm132, %v2840, 0
    %v2857 = vsel %vm132, %v2841, 0
    %2859 = vmatprep.subr.mxu0 0.0
    %2860 = vmatpush1.msra.mxu0 %v2842
    %2861 = vmatprep.subr.mxu0 0.0
    %2862 = vmatpush1.msra.mxu0 %v2843
    %2863 = vmatprep.subr.mxu0 0.0
    %2864 = vmatpush1.msra.mxu0 %v2844
    %2865 = vmatprep.subr.mxu0 0.0
    %2866 = vmatpush1.msra.mxu0 %v2845
    %2867 = vmatprep.subr.mxu0 0.0
    %2868 = vmatpush1.msra.mxu0 0.0
    %2869 = vmatprep.subr.mxu0 0.0
    %2870 = vmatpush1.msra.mxu0 0.0
    %2871 = vmatprep.subr.mxu0 0.0
    %2872 = vmatpush1.msra.mxu0 0.0
    %2873 = vmatprep.subr.mxu0 0.0
    %2874 = vmatpush1.msra.mxu0 0.0
    %2875 = vmatprep.subr.mxu0 0.0
    %2876 = vmatpush1.msra.mxu0 0.0
    %2877 = vmatprep.subr.mxu0 0.0
    %2878 = vmatpush1.msra.mxu0 0.0
    %2879 = vmatprep.subr.mxu0 0.0
    %2880 = vmatpush1.msra.mxu0 0.0
    %2881 = vmatprep.subr.mxu0 0.0
    %2882 = vmatpush1.msra.mxu0 0.0
    %2883 = vmatprep.subr.mxu0 0.0
    %2884 = vmatpush1.msra.mxu0 0.0
    %2885 = vmatprep.subr.mxu0 0.0
    %2886 = vmatpush1.msra.mxu0 0.0
    %2887 = vmatprep.subr.mxu0 0.0
    %2888 = vmatpush1.msra.mxu0 0.0
    %2889 = vmatprep.subr.mxu0 0.0
    %2890 = vmatpush1.msra.mxu0 0.0
    %2891 = vmatprep.subr.mxu0 0.0
    %2892 = vmatpush1.msra.mxu0 0.0
    %2893 = vmatprep.subr.mxu0 0.0
    %2894 = vmatpush1.msra.mxu0 0.0
    %2895 = vmatprep.subr.mxu0 0.0
    %2896 = vmatpush1.msra.mxu0 0.0
    %2897 = vmatprep.subr.mxu0 0.0
    %2898 = vmatpush1.msra.mxu0 0.0
    %2899 = vmatprep.subr.mxu0 0.0
    %2900 = vmatpush1.msra.mxu0 0.0
    %2901 = vmatprep.subr.mxu0 0.0
    %2902 = vmatpush1.msra.mxu0 0.0
    %2903 = vmatprep.subr.mxu0 0.0
    %2904 = vmatpush1.msra.mxu0 0.0
    %2905 = vmatprep.subr.mxu0 0.0
    %2906 = vmatpush1.msra.mxu0 0.0
    %2907 = vmatprep.subr.mxu0 0.0
    %2908 = vmatpush1.msra.mxu0 0.0
    %2909 = vmatprep.subr.mxu0 0.0
    %2910 = vmatpush1.msra.mxu0 0.0
    %2911 = vmatprep.subr.mxu0 0.0
    %2912 = vmatpush1.msra.mxu0 0.0
    %2913 = vmatprep.subr.mxu0 0.0
    %2914 = vmatpush1.msra.mxu0 0.0
    %2915 = vmatprep.subr.mxu0 0.0
    %2916 = vmatpush1.msra.mxu0 0.0
    %2917 = vmatprep.subr.mxu0 0.0
    %2918 = vmatpush1.msra.mxu0 0.0
    %2919 = vmatprep.subr.mxu0 0.0
    %2920 = vmatpush1.msra.mxu0 0.0
    %2921 = vmatprep.subr.mxu0 0.0
    %2922 = vmatpush1.msra.mxu0 0.0
    %2923 = vmatprep.mubr.f32.mxu0 0.0
    %2924 = vmatmul.mubr.f32.gmra.mrb[0].mxu0 %v2854
    %v2925 = vpop.f32.mrb[0].mxu0
    %v2926 = vadd.f32 %v2851, %v2925
    %v2927 = vpop.f32.mrb[0].mxu0
    %2928 = vmatprep.mubr.f32.mxu0 0.0
    %2929 = vmatmul.mubr.f32.gmra.mrb[0].mxu0 %v2857
    %v2930 = vpop.f32.mrb[0].mxu0
    %v2931 = vadd.f32 %v2851, %v2930
    %v2932 = vpop.f32.mrb[0].mxu0
    %2933 = vdwg.mxu0
    %2934 = vst [vmem:[#allocation14] sm:$0xff] %v2926
    %2935 = vst [vmem:[#allocation14 + $0x8] sm:$0xff] %v2931
    %vm2936 = vcmask 261126
    %2937 = vst.msk [vmem:[#allocation15 - $0x6] sm:$0xc0] %vm2936, %v2625
    %2939 = vrot.lane.b32.xlu0 %v2616, 96
    %v2940 = vpop.permute.xlu0 %2939
    %2942 = vst.msk [vmem:[#allocation17 - $0x6] sm:$0xc0] %vm2936, %v2940
    %s2943 = scalar_lea.vmem [#allocation15], 2
    %2944 = vst.msk [vmem:[%s2943] sm:$0x3] %vm588, %v2732
    %2946 = vrot.lane.b32.xlu0 %v2723, 96
    %v2947 = vpop.permute.xlu0 %2946
    %s2949 = scalar_lea.vmem [#allocation17], 2
    %2950 = vst.msk [vmem:[%s2949] sm:$0x3] %vm588, %v2947
    %s2951 = scalar_lea.vmem [#allocation15], 4
    %2952 = vst.msk [vmem:[%s2951] sm:$0x3] %vm588, %v2837
    %2954 = vrot.lane.b32.xlu0 %v2828, 96
    %v2955 = vpop.permute.xlu0 %2954
    %s2957 = scalar_lea.vmem [#allocation17], 4
    %2958 = vst.msk [vmem:[%s2957] sm:$0x3] %vm588, %v2955
    // Predicated region
    $region62: #{tpu_custom_call.1} parent=1 // pred_check
      _
    $region63: #{tpu_custom_call.1} parent=1 // pred_check_branch
      %2960 = sbr.rel (0) target = $region65
    $region64: #{tpu_custom_call.1} parent=1 // pred_region
      %s2962 = ssub.s32 256, 256
      %2963 = vsyncadd [#allocation5], %s2962
      %s2964 = sshll.u32 [#allocation14], 4
      %s2965 = int_to_ptr.vmem [resolvable:$true] %s2964
      %2970 = dma.vmem_to_hbm [thread:$0]  %s2965, 256, %s9, [#allocation5], 128, 128, 8
    $region65: #{tpu_custom_call.1} parent=1 // pred_fallthru
      _
    // Predicated region
    $region66: #{tpu_custom_call.1} parent=1 // pred_check
      _
    $region67: #{tpu_custom_call.1} parent=1 // pred_check_branch
      %2972 = sbr.rel (0) target = $region69
    $region68: #{tpu_custom_call.1} parent=1 // pred_region
      %s2974 = ssub.s32 96, 96
      %2975 = vsyncadd [#allocation16], %s2974
      %s2976 = sshll.u32 [#allocation15], 4
      %s2977 = int_to_ptr.vmem [resolvable:$true] %s2976
      %2982 = dma.vmem_to_hbm [thread:$0]  %s2977, 96, %s10, [#allocation16], 32, 32, 2
    $region69: #{tpu_custom_call.1} parent=1 // pred_fallthru
      _
    // Predicated region
    $region70: #{tpu_custom_call.1} parent=1 // pred_check
      _
    $region71: #{tpu_custom_call.1} parent=1 // pred_check_branch
      %2984 = sbr.rel (0) target = $region73
    $region72: #{tpu_custom_call.1} parent=1 // pred_region
      %s2986 = ssub.s32 96, 96
      %2987 = vsyncadd [#allocation16], %s2986
      %s2988 = sshll.u32 [#allocation17], 4
      %s2989 = int_to_ptr.vmem [resolvable:$true] %s2988
      %2994 = dma.vmem_to_hbm [thread:$0]  %s2989, 96, %s11, [#allocation16], 32, 32, 2
    $region73: #{tpu_custom_call.1} parent=1 // pred_fallthru
      _
    // Predicated region
    $region74: #{tpu_custom_call.1} parent=1 // pred_check
      _
    $region75: #{tpu_custom_call.1} parent=1 // pred_check_branch
      %2996 = sbr.rel (0) target = $region77
    $region76: #{tpu_custom_call.1} parent=1 // pred_region
      %2997 = dma.done [#allocation5], 256
    $region77: #{tpu_custom_call.1} parent=1 // pred_fallthru
      _
    // Predicated region
    $region78: #{tpu_custom_call.1} parent=1 // pred_check
      _
    $region79: #{tpu_custom_call.1} parent=1 // pred_check_branch
      %2999 = sbr.rel (0) target = $region81
    $region80: #{tpu_custom_call.1} parent=1 // pred_region
      %3000 = dma.done [#allocation16], 96
    $region81: #{tpu_custom_call.1} parent=1 // pred_fallthru
      _
    // Predicated region
    $region82: #{tpu_custom_call.1} parent=1 // pred_check
      _
    $region83: #{tpu_custom_call.1} parent=1 // pred_check_branch
      %3002 = sbr.rel (0) target = $region85
    $region84: #{tpu_custom_call.1} parent=1 // pred_region
      %3003 = dma.done [#allocation16], 96
    $region85: #{tpu_custom_call.1} parent=1 // pred_fallthru
      _
    %3004 = vsyncpa [#allocation4], 1
    %3005 = vsyncpa [#allocation7], 1
    %3006 = vsyncpa [#allocation10], 1
    %3007 = vsyncpa [#allocation13], 1
    %3008 = vsyncpa [#allocation5], 1
    %3009 = vsyncpa [#allocation16], 1

</llo_original>
